<compile_context>
chip_gen: v6e
topology: v6e:2x2x1
jax: 0.10.0
libtpu: 0.0.40
codegen_flags: <defaults>
</compile_context>

<pallas_src>
import functools

import numpy as np
import jax
import jax.numpy as jnp
from jax import lax
from jax.experimental import pallas as pl
from jax.experimental.pallas import tpu as pltpu


VMEM_LIMIT_BYTES = 64 * 1024 * 1024


# ----------------------------------------------------------------------------
# Host-side weight fusion: depthwise (4x4, stride 2) + pointwise (1x1)
# ----------------------------------------------------------------------------
def fuse_weights(dw_w, dw_b, pw_w, pw_b):
    """dw_w: (4,4,Cin) [kh,kw,c];  pw_w: (Cin,Cout).

    Returns
      wf: (4, 4*Cin, Cout)  wf[2*dh+dw, (2*p+q)*Cin + c, co]
                              = dw_w[2*dh+p, 2*dw+q, c] * pw_w[c, co]
      b : (Cout,)           = dw_b @ pw_w + pw_b
    """
    cin = dw_w.shape[2]
    cout = pw_w.shape[1]
    d = dw_w.reshape(2, 2, 2, 2, cin)          # [dh, p, dw, q, c]
    d = d.transpose(0, 2, 1, 3, 4)             # [dh, dw, p, q, c]
    wf = d[..., None] * pw_w[None, None, None, None, :, :]    # (2,2,2,2,cin,cout)
    wf = wf.reshape(4, 4 * cin, cout)
    b = dw_b @ pw_w + pw_b
    return wf, b


# ----------------------------------------------------------------------------
# Glue: pad=1 + space-to-depth (channel order (2p+q)*C + c) + row-strip gather
# ----------------------------------------------------------------------------
def space_to_depth_pad(x):
    """(N,H,W,C) -> (N, H//2+1, W//2+1, 4C); s2d[n,i,j,(2p+q)C+c] = xpad[n,2i+p,2j+q,c]."""
    n, h, w, c = x.shape
    xp = jnp.pad(x, ((0, 0), (1, 1), (1, 1), (0, 0)))
    s2d = xp.reshape(n, h // 2 + 1, 2, w // 2 + 1, 2, c)
    s2d = s2d.transpose(0, 1, 3, 2, 4, 5).reshape(n, h // 2 + 1, w // 2 + 1, 4 * c)
    return s2d


def make_row_strips(s2d, rows):
    """(N, OH+1, OW+1, C4) -> (N, S, rows+1, OW+1, C4), duplicating the 1-row halo."""
    n, oh1, ow1, c4 = s2d.shape
    s = (oh1 - 1) // rows
    return jnp.stack([s2d[:, i * rows:i * rows + rows + 1] for i in range(s)], axis=1)


# ----------------------------------------------------------------------------
# Depthwise-separable conv layer: 4 accumulated MXU matmuls with K = 4*Cin
# ----------------------------------------------------------------------------
def dsconv_kernel(x_ref, wf_ref, b_ref, o_ref, *, rows, ow, apply_lrelu):
    # x_ref : (1, 1, rows+1, ow+1, 4*Cin)  space-to-depth input strip (+1-row halo)
    # wf_ref: (4, 4*Cin, Cout)             fused depthwise*pointwise weight
    # b_ref : (1, Cout)                    fused bias (f32)
    # o_ref : (1, rows*ow, Cout)
    c4 = wf_ref.shape[1]
    cout = wf_ref.shape[2]
    acc = jnp.zeros((rows * ow, cout), dtype=jnp.float32)
    for d in range(4):                       # 2x2 / stride-1 conv over the s2d tensor
        dh, dw = d // 2, d % 2
        xd = x_ref[0, 0, dh:dh + rows, dw:dw + ow, :]             # (rows, ow, 4*Cin)
        acc = acc + jnp.dot(xd.reshape(rows * ow, c4), wf_ref[d, :, :],
                            preferred_element_type=jnp.float32)
    acc = acc + b_ref[...].astype(jnp.float32)
    if apply_lrelu:
        acc = jnp.where(acc >= 0, acc, 0.2 * acc)
    o_ref[0, :, :] = acc.astype(o_ref.dtype)


def dsconv_layer(x_nhwc, wf, b, *, apply_lrelu, act_dtype=jnp.float32, max_rows=64):
    """x_nhwc: (N, H, W, Cin) -> (N, H//2, W//2, Cout)."""
    n, h, w, cin = x_nhwc.shape
    c4, cout = wf.shape[1], wf.shape[2]
    assert c4 == 4 * cin
    oh, ow = h // 2, w // 2

    rows = min(oh, max_rows)
    while oh % rows != 0:
        rows -= 1
    num_strips = oh // rows

    s2d = space_to_depth_pad(x_nhwc.astype(act_dtype))
    strips = make_row_strips(s2d, rows)                 # (N, S, rows+1, ow+1, 4*Cin)

    out = pl.pallas_call(
        functools.partial(dsconv_kernel, rows=rows, ow=ow, apply_lrelu=apply_lrelu),
        out_shape=jax.ShapeDtypeStruct((n, oh * ow, cout), act_dtype),
        grid_spec=pltpu.PrefetchScalarGridSpec(
            num_scalar_prefetch=0,
            grid=(n, num_strips),
            in_specs=[
                pl.BlockSpec((1, 1, rows + 1, ow + 1, c4),
                             lambda b_, s_: (b_, s_, 0, 0, 0)),
                pl.BlockSpec((4, c4, cout), lambda b_, s_: (0, 0, 0)),
                pl.BlockSpec((1, cout), lambda b_, s_: (0, 0)),
            ],
            out_specs=pl.BlockSpec((1, rows * ow, cout), lambda b_, s_: (b_, s_, 0)),
        ),
        compiler_params=pltpu.CompilerParams(
            dimension_semantics=("parallel", "parallel"),
            vmem_limit_bytes=VMEM_LIMIT_BYTES),
    )(strips, wf.astype(act_dtype), b.reshape(1, cout).astype(jnp.float32))
    return out.reshape(n, oh, ow, cout)


# ----------------------------------------------------------------------------
# Fused classifier (Cout=1) + x32 bilinear upsample (two MXU matmuls)
# ----------------------------------------------------------------------------
def classifier_upsample_kernel(x_ref, wf_ref, b_ref, wh_ref, wwt_ref, o_ref, *, sh, sw):
    # x_ref  : (1, sh+1, sw+1, 4*Cin)   s2d input of the classifier layer
    # wf_ref : (4, 1, 4*Cin)            fused classifier weight (Cout == 1)
    # b_ref  : (1, 1)                   fused classifier bias
    # wh_ref : (Hout, sh); wwt_ref: (sw, Wout)  bilinear interpolation matrices
    # o_ref  : (1, Hout, Wout)          lane-dense upsampled score map
    c4 = wf_ref.shape[2]
    s = jnp.zeros((sh, sw), dtype=jnp.float32)
    for d in range(4):
        dh, dw = d // 2, d % 2
        xd = x_ref[0, dh:dh + sh, dw:dw + sw, :].astype(jnp.float32)   # (sh, sw, 4*Cin)
        wd = wf_ref[d, :, :].astype(jnp.float32).reshape(1, 1, c4)
        s = s + jnp.sum(xd * wd, axis=-1)                              # lane reduce (XLU)
    s = s + b_ref[...].astype(jnp.float32)
    tmp = jnp.dot(wh_ref[...], s, preferred_element_type=jnp.float32)      # (Hout, sw)
    out = jnp.dot(tmp, wwt_ref[...], preferred_element_type=jnp.float32)   # (Hout, Wout)
    o_ref[0, :, :] = out.astype(o_ref.dtype)


def classifier_upsample_layer(x_nhwc, wf, b, wh, wwt, *, act_dtype=jnp.float32):
    """x_nhwc: (N, H, W, Cin) -> (N, (H//2)*32, (W//2)*32) upsampled score map."""
    n, h, w, cin = x_nhwc.shape
    sh, sw = h // 2, w // 2
    c4 = 4 * cin
    hout, wout = wh.shape[0], wwt.shape[1]

    s2d = space_to_depth_pad(x_nhwc.astype(act_dtype))            # (N, sh+1, sw+1, 4*Cin)
    wf_t = jnp.transpose(wf, (0, 2, 1)).astype(act_dtype)         # (4, 1, 4*Cin)

    return pl.pallas_call(
        functools.partial(classifier_upsample_kernel, sh=sh, sw=sw),
        out_shape=jax.ShapeDtypeStruct((n, hout, wout), jnp.float32),
        grid_spec=pltpu.PrefetchScalarGridSpec(
            num_scalar_prefetch=0,
            grid=(n,),
            in_specs=[
                pl.BlockSpec((1, sh + 1, sw + 1, c4), lambda b_: (b_, 0, 0, 0)),
                pl.BlockSpec((4, 1, c4), lambda b_: (0, 0, 0)),
                pl.BlockSpec((1, 1), lambda b_: (0, 0)),
                pl.BlockSpec((hout, sh), lambda b_: (0, 0)),
                pl.BlockSpec((sw, wout), lambda b_: (0, 0)),
            ],
            out_specs=pl.BlockSpec((1, hout, wout), lambda b_: (b_, 0, 0)),
        ),
        compiler_params=pltpu.CompilerParams(
            dimension_semantics=("parallel",),
            vmem_limit_bytes=VMEM_LIMIT_BYTES),
    )(s2d, wf_t, b.reshape(1, 1).astype(jnp.float32), wh, wwt)


# ----------------------------------------------------------------------------
# PyTorch bilinear (align_corners=False) interpolation matrix (out, in)
# ----------------------------------------------------------------------------
def upsample_matrix(in_size, scale):
    out_size = in_size * scale
    m = np.zeros((out_size, in_size), dtype=np.float32)
    for o in range(out_size):
        real = (o + 0.5) / scale - 0.5
        real = max(real, 0.0)
        i0 = min(int(np.floor(real)), in_size - 1)
        i1 = min(i0 + 1, in_size - 1)
        lam = real - i0
        m[o, i0] += 1.0 - lam
        m[o, i1] += lam
    return jnp.asarray(m)


# ----------------------------------------------------------------------------
# Full model forward (NCHW in / NCHW out, like the PyTorch module)
# ----------------------------------------------------------------------------
def light_fc_discriminator(x_nchw, params, *, scale=32,
                           act_dtype=jnp.float32, max_rows=64):
    fused = [fuse_weights(dw_w, dw_b, pw_w, pw_b)
             for (dw_w, dw_b, pw_w, pw_b) in params]
    x = jnp.transpose(x_nchw, (0, 2, 3, 1))                      # NCHW -> NHWC
    for i in range(4):
        wf, b = fused[i]
        x = dsconv_layer(x, wf, b, apply_lrelu=True,
                         act_dtype=act_dtype, max_rows=max_rows)
    wf5, b5 = fused[4]
    n, h, w, _ = x.shape
    sh, sw = h // 2, w // 2
    wh = upsample_matrix(sh, scale)
    wwt = upsample_matrix(sw, scale).T
    y = classifier_upsample_layer(x, wf5, b5, wh, wwt, act_dtype=act_dtype)  # (N, H, W)
    return y[:, None, :, :]                                      # (N, 1, H, W)


# ----------------------------------------------------------------------------
# Pure-JAX reference (for correctness check)
# ----------------------------------------------------------------------------
def ref_forward(x_nchw, params, scale=32):
    h = x_nchw
    for idx, (dw_w, dw_b, pw_w, pw_b) in enumerate(params):
        cin = dw_w.shape[2]
        w_oihw = jnp.transpose(dw_w, (2, 0, 1))[:, None, :, :]   # (cin, 1, 4, 4)
        h = lax.conv_general_dilated(h, w_oihw, window_strides=(2, 2),
                                     padding=((1, 1), (1, 1)),
                                     feature_group_count=cin,
                                     dimension_numbers=('NCHW', 'OIHW', 'NCHW'),
                                     precision=lax.Precision.HIGHEST)
        h = h + dw_b[None, :, None, None]
        h = jnp.einsum('nchw,cd->ndhw', h, pw_w,
                       precision=lax.Precision.HIGHEST) + pw_b[None, :, None, None]
        if idx < 4:
            h = jnp.where(h >= 0, h, 0.2 * h)
    wh = upsample_matrix(h.shape[2], scale)
    ww = upsample_matrix(h.shape[3], scale)
    return jnp.einsum('ha,ncab,wb->nchw', wh, h, ww, precision=lax.Precision.HIGHEST)


if __name__ == "__main__":
    key = jax.random.PRNGKey(0)

    # Spatial must be >= 32 (five stride-2 convs); small channels: ndf=8.
    N, num_classes, H, W = 2, 4, 32, 32
    ndf = 8
    chans = [num_classes, ndf, ndf * 2, ndf * 4, ndf * 8, 1]

    params = []
    k = key
    for i in range(5):
        cin, cout = chans[i], chans[i + 1]
        k, k1, k2, k3, k4 = jax.random.split(k, 5)
        dw_w = jax.random.normal(k1, (4, 4, cin), jnp.float32) * 0.25      # (kh, kw, c)
        dw_b = jax.random.normal(k2, (cin,), jnp.float32) * 0.1
        pw_w = jax.random.normal(k3, (cin, cout), jnp.float32) * (1.0 / np.sqrt(cin))
        pw_b = jax.random.normal(k4, (cout,), jnp.float32) * 0.1
        params.append((dw_w, dw_b, pw_w, pw_b))

    k, kx = jax.random.split(k)
    x_nchw = jax.random.normal(kx, (N, num_classes, H, W), jnp.float32)

    fwd = jax.jit(light_fc_discriminator,
                  static_argnames=("scale", "act_dtype", "max_rows"))

    # f32 path (max_rows=8 so the multi-row-strip grid path is exercised on layer 1).
    out = jax.block_until_ready(fwd(x_nchw, params,
                                    act_dtype=jnp.float32, max_rows=8))
    assert out.shape == (N, 1, H, W), out.shape

    ref = jax.block_until_ready(ref_forward(x_nchw, params))
    np.testing.assert_allclose(np.asarray(out), np.asarray(ref), rtol=3e-2, atol=3e-2)

    # bf16 activation/weight path (v6e/v7x perf config): compile + sanity check.
    out_bf16 = jax.block_until_ready(fwd(x_nchw, params,
                                         act_dtype=jnp.bfloat16, max_rows=8))
    assert out_bf16.shape == (N, 1, H, W)
    assert bool(jnp.isfinite(out_bf16).all())

    print("KERNEL_OK")
</pallas_src>

<mosaic_0001>
module attributes {stable_mosaic.version = 11 : i64} {
  func.func @dsconv_kernel(%arg0: i32, %arg1: i32, %arg2: memref<1x1x9x17x16xf32, #tpu.memory_space<vmem>>, %arg3: memref<4x16x8xf32, #tpu.memory_space<vmem>>, %arg4: memref<1x8xf32, #tpu.memory_space<vmem>>, %arg5: memref<1x128x8xf32, #tpu.memory_space<vmem>>) attributes {dimension_semantics = [#tpu.dimension_semantics<parallel>, #tpu.dimension_semantics<parallel>], iteration_bounds = array<i64: 2, 2>, scalar_prefetch = 0 : i64, scratch_operands = 0 : i64, tpu.core_type = #tpu.core_type<tc>, window_params = [{transform_indices = @transform_0, window_bounds = array<i64: 1, 1, 9, 17, 16>}, {pipeline_mode = #tpu.pipeline_mode<synchronous>, transform_indices = @transform_1, window_bounds = array<i64: 4, 16, 8>}, {pipeline_mode = #tpu.pipeline_mode<synchronous>, transform_indices = @transform_2, window_bounds = array<i64: 1, 8>}, {transform_indices = @transform_3, window_bounds = array<i64: 1, 128, 8>}]} {
    %cst = arith.constant 0.000000e+00 : f32
    %0 = vector.broadcast %cst : f32 to vector<128x8xf32>
    %c0 = arith.constant 0 : index
    %c0_0 = arith.constant 0 : index
    %c0_1 = arith.constant 0 : index
    %c0_2 = arith.constant 0 : index
    %c0_3 = arith.constant 0 : index
    %1 = vector.load %arg2[%c0, %c0_0, %c0_1, %c0_2, %c0_3] : memref<1x1x9x17x16xf32, #tpu.memory_space<vmem>>, vector<1x1x8x16x16xf32>
    %2 = vector.shape_cast %1 : vector<1x1x8x16x16xf32> to vector<8x16x16xf32>
    %3 = vector.shape_cast %2 : vector<8x16x16xf32> to vector<128x16xf32>
    %c0_4 = arith.constant 0 : index
    %c0_5 = arith.constant 0 : index
    %c0_6 = arith.constant 0 : index
    %4 = vector.load %arg3[%c0_4, %c0_5, %c0_6] : memref<4x16x8xf32, #tpu.memory_space<vmem>>, vector<1x16x8xf32>
    %5 = vector.shape_cast %4 : vector<1x16x8xf32> to vector<16x8xf32>
    %cst_7 = arith.constant dense<0.000000e+00> : vector<128x8xf32>
    %6 = tpu.matmul %3, %5, %cst_7 {dimension_numbers = #tpu.dot_dimension_numbers<[1], [0], [0], [1], [0, 0, 1, 1], [], []>} : vector<128x16xf32>, vector<16x8xf32>, vector<128x8xf32> -> vector<128x8xf32>
    %7 = arith.addf %0, %6 : vector<128x8xf32>
    %c0_8 = arith.constant 0 : index
    %c0_9 = arith.constant 0 : index
    %c0_10 = arith.constant 0 : index
    %c1 = arith.constant 1 : index
    %c0_11 = arith.constant 0 : index
    %8 = vector.load %arg2[%c0_8, %c0_9, %c0_10, %c1, %c0_11] : memref<1x1x9x17x16xf32, #tpu.memory_space<vmem>>, vector<1x1x8x16x16xf32>
    %9 = vector.shape_cast %8 : vector<1x1x8x16x16xf32> to vector<8x16x16xf32>
    %10 = vector.shape_cast %9 : vector<8x16x16xf32> to vector<128x16xf32>
    %c1_12 = arith.constant 1 : index
    %c0_13 = arith.constant 0 : index
    %c0_14 = arith.constant 0 : index
    %11 = vector.load %arg3[%c1_12, %c0_13, %c0_14] : memref<4x16x8xf32, #tpu.memory_space<vmem>>, vector<1x16x8xf32>
    %12 = vector.shape_cast %11 : vector<1x16x8xf32> to vector<16x8xf32>
    %cst_15 = arith.constant dense<0.000000e+00> : vector<128x8xf32>
    %13 = tpu.matmul %10, %12, %cst_15 {dimension_numbers = #tpu.dot_dimension_numbers<[1], [0], [0], [1], [0, 0, 1, 1], [], []>} : vector<128x16xf32>, vector<16x8xf32>, vector<128x8xf32> -> vector<128x8xf32>
    %14 = arith.addf %7, %13 : vector<128x8xf32>
    %c0_16 = arith.constant 0 : index
    %c0_17 = arith.constant 0 : index
    %c1_18 = arith.constant 1 : index
    %c0_19 = arith.constant 0 : index
    %c0_20 = arith.constant 0 : index
    %15 = vector.load %arg2[%c0_16, %c0_17, %c1_18, %c0_19, %c0_20] : memref<1x1x9x17x16xf32, #tpu.memory_space<vmem>>, vector<1x1x8x16x16xf32>
    %16 = vector.shape_cast %15 : vector<1x1x8x16x16xf32> to vector<8x16x16xf32>
    %17 = vector.shape_cast %16 : vector<8x16x16xf32> to vector<128x16xf32>
    %c2 = arith.constant 2 : index
    %c0_21 = arith.constant 0 : index
    %c0_22 = arith.constant 0 : index
    %18 = vector.load %arg3[%c2, %c0_21, %c0_22] : memref<4x16x8xf32, #tpu.memory_space<vmem>>, vector<1x16x8xf32>
    %19 = vector.shape_cast %18 : vector<1x16x8xf32> to vector<16x8xf32>
    %cst_23 = arith.constant dense<0.000000e+00> : vector<128x8xf32>
    %20 = tpu.matmul %17, %19, %cst_23 {dimension_numbers = #tpu.dot_dimension_numbers<[1], [0], [0], [1], [0, 0, 1, 1], [], []>} : vector<128x16xf32>, vector<16x8xf32>, vector<128x8xf32> -> vector<128x8xf32>
    %21 = arith.addf %14, %20 : vector<128x8xf32>
    %c0_24 = arith.constant 0 : index
    %c0_25 = arith.constant 0 : index
    %c1_26 = arith.constant 1 : index
    %c1_27 = arith.constant 1 : index
    %c0_28 = arith.constant 0 : index
    %22 = vector.load %arg2[%c0_24, %c0_25, %c1_26, %c1_27, %c0_28] : memref<1x1x9x17x16xf32, #tpu.memory_space<vmem>>, vector<1x1x8x16x16xf32>
    %23 = vector.shape_cast %22 : vector<1x1x8x16x16xf32> to vector<8x16x16xf32>
    %24 = vector.shape_cast %23 : vector<8x16x16xf32> to vector<128x16xf32>
    %c3 = arith.constant 3 : index
    %c0_29 = arith.constant 0 : index
    %c0_30 = arith.constant 0 : index
    %25 = vector.load %arg3[%c3, %c0_29, %c0_30] : memref<4x16x8xf32, #tpu.memory_space<vmem>>, vector<1x16x8xf32>
    %26 = vector.shape_cast %25 : vector<1x16x8xf32> to vector<16x8xf32>
    %cst_31 = arith.constant dense<0.000000e+00> : vector<128x8xf32>
    %27 = tpu.matmul %24, %26, %cst_31 {dimension_numbers = #tpu.dot_dimension_numbers<[1], [0], [0], [1], [0, 0, 1, 1], [], []>} : vector<128x16xf32>, vector<16x8xf32>, vector<128x8xf32> -> vector<128x8xf32>
    %28 = arith.addf %21, %27 : vector<128x8xf32>
    %c0_32 = arith.constant 0 : index
    %c0_33 = arith.constant 0 : index
    %29 = vector.load %arg4[%c0_32, %c0_33] : memref<1x8xf32, #tpu.memory_space<vmem>>, vector<1x8xf32>
    %30 = vector.broadcast %29 : vector<1x8xf32> to vector<128x8xf32>
    %31 = arith.addf %28, %30 : vector<128x8xf32>
    %cst_34 = arith.constant 0.000000e+00 : f32
    %32 = vector.broadcast %cst_34 : f32 to vector<128x8xf32>
    %33 = arith.cmpf oge, %31, %32 : vector<128x8xf32>
    %cst_35 = arith.constant 2.000000e-01 : f32
    %34 = vector.broadcast %cst_35 : f32 to vector<128x8xf32>
    %35 = arith.mulf %34, %31 : vector<128x8xf32>
    %36 = arith.select %33, %31, %35 : vector<128x8xi1>, vector<128x8xf32>
    %c0_36 = arith.constant 0 : index
    %c0_37 = arith.constant 0 : index
    %c0_38 = arith.constant 0 : index
    %37 = vector.load %arg5[%c0_36, %c0_37, %c0_38] : memref<1x128x8xf32, #tpu.memory_space<vmem>>, vector<1x128x8xf32>
    %38 = vector.shape_cast %37 : vector<1x128x8xf32> to vector<128x8xf32>
    %39 = vector.shape_cast %36 : vector<128x8xf32> to vector<1x128x8xf32>
    tpu.vector_store %arg5[%c0_36, %c0_37, %c0_38], %39 {strides = array<i32>} : memref<1x128x8xf32, #tpu.memory_space<vmem>>, vector<1x128x8xf32>,
    return
  }
  func.func @transform_0(%arg0: i32, %arg1: i32) -> (i32, i32, i32, i32, i32) {
    %c0_i32 = arith.constant 0 : i32
    %c0_i32_0 = arith.constant 0 : i32
    %c0_i32_1 = arith.constant 0 : i32
    %c0_i32_2 = arith.constant 0 : i32
    return %arg0, %arg1, %c0_i32, %c0_i32_0, %c0_i32_1 : i32, i32, i32, i32, i32
  }
  func.func @transform_1(%arg0: i32, %arg1: i32) -> (i32, i32, i32) {
    %c0_i32 = arith.constant 0 : i32
    %c0_i32_0 = arith.constant 0 : i32
    %c0_i32_1 = arith.constant 0 : i32
    %c0_i32_2 = arith.constant 0 : i32
    return %c0_i32, %c0_i32_0, %c0_i32_1 : i32, i32, i32
  }
  func.func @transform_2(%arg0: i32, %arg1: i32) -> (i32, i32) {
    %c0_i32 = arith.constant 0 : i32
    %c0_i32_0 = arith.constant 0 : i32
    %c0_i32_1 = arith.constant 0 : i32
    return %c0_i32, %c0_i32_0 : i32, i32
  }
  func.func @transform_3(%arg0: i32, %arg1: i32) -> (i32, i32, i32) {
    %c0_i32 = arith.constant 0 : i32
    %c0_i32_0 = arith.constant 0 : i32
    return %arg0, %arg1, %c0_i32 : i32, i32, i32
  }
}

module attributes {stable_mosaic.version = 11 : i64} {
  func.func @dsconv_kernel(%arg0: i32, %arg1: i32, %arg2: memref<1x1x9x9x32xf32, #tpu.memory_space<vmem>>, %arg3: memref<4x32x16xf32, #tpu.memory_space<vmem>>, %arg4: memref<1x16xf32, #tpu.memory_space<vmem>>, %arg5: memref<1x64x16xf32, #tpu.memory_space<vmem>>) attributes {dimension_semantics = [#tpu.dimension_semantics<parallel>, #tpu.dimension_semantics<parallel>], iteration_bounds = array<i64: 2, 1>, scalar_prefetch = 0 : i64, scratch_operands = 0 : i64, tpu.core_type = #tpu.core_type<tc>, window_params = [{transform_indices = @transform_0, window_bounds = array<i64: 1, 1, 9, 9, 32>}, {pipeline_mode = #tpu.pipeline_mode<synchronous>, transform_indices = @transform_1, window_bounds = array<i64: 4, 32, 16>}, {pipeline_mode = #tpu.pipeline_mode<synchronous>, transform_indices = @transform_2, window_bounds = array<i64: 1, 16>}, {transform_indices = @transform_3, window_bounds = array<i64: 1, 64, 16>}]} {
    %cst = arith.constant 0.000000e+00 : f32
    %0 = vector.broadcast %cst : f32 to vector<64x16xf32>
    %c0 = arith.constant 0 : index
    %c0_0 = arith.constant 0 : index
    %c0_1 = arith.constant 0 : index
    %c0_2 = arith.constant 0 : index
    %c0_3 = arith.constant 0 : index
    %1 = vector.load %arg2[%c0, %c0_0, %c0_1, %c0_2, %c0_3] : memref<1x1x9x9x32xf32, #tpu.memory_space<vmem>>, vector<1x1x8x8x32xf32>
    %2 = vector.shape_cast %1 : vector<1x1x8x8x32xf32> to vector<8x8x32xf32>
    %3 = vector.shape_cast %2 : vector<8x8x32xf32> to vector<64x32xf32>
    %c0_4 = arith.constant 0 : index
    %c0_5 = arith.constant 0 : index
    %c0_6 = arith.constant 0 : index
    %4 = vector.load %arg3[%c0_4, %c0_5, %c0_6] : memref<4x32x16xf32, #tpu.memory_space<vmem>>, vector<1x32x16xf32>
    %5 = vector.shape_cast %4 : vector<1x32x16xf32> to vector<32x16xf32>
    %cst_7 = arith.constant dense<0.000000e+00> : vector<64x16xf32>
    %6 = tpu.matmul %3, %5, %cst_7 {dimension_numbers = #tpu.dot_dimension_numbers<[1], [0], [0], [1], [0, 0, 1, 1], [], []>} : vector<64x32xf32>, vector<32x16xf32>, vector<64x16xf32> -> vector<64x16xf32>
    %7 = arith.addf %0, %6 : vector<64x16xf32>
    %c0_8 = arith.constant 0 : index
    %c0_9 = arith.constant 0 : index
    %c0_10 = arith.constant 0 : index
    %c1 = arith.constant 1 : index
    %c0_11 = arith.constant 0 : index
    %8 = vector.load %arg2[%c0_8, %c0_9, %c0_10, %c1, %c0_11] : memref<1x1x9x9x32xf32, #tpu.memory_space<vmem>>, vector<1x1x8x8x32xf32>
    %9 = vector.shape_cast %8 : vector<1x1x8x8x32xf32> to vector<8x8x32xf32>
    %10 = vector.shape_cast %9 : vector<8x8x32xf32> to vector<64x32xf32>
    %c1_12 = arith.constant 1 : index
    %c0_13 = arith.constant 0 : index
    %c0_14 = arith.constant 0 : index
    %11 = vector.load %arg3[%c1_12, %c0_13, %c0_14] : memref<4x32x16xf32, #tpu.memory_space<vmem>>, vector<1x32x16xf32>
    %12 = vector.shape_cast %11 : vector<1x32x16xf32> to vector<32x16xf32>
    %cst_15 = arith.constant dense<0.000000e+00> : vector<64x16xf32>
    %13 = tpu.matmul %10, %12, %cst_15 {dimension_numbers = #tpu.dot_dimension_numbers<[1], [0], [0], [1], [0, 0, 1, 1], [], []>} : vector<64x32xf32>, vector<32x16xf32>, vector<64x16xf32> -> vector<64x16xf32>
    %14 = arith.addf %7, %13 : vector<64x16xf32>
    %c0_16 = arith.constant 0 : index
    %c0_17 = arith.constant 0 : index
    %c1_18 = arith.constant 1 : index
    %c0_19 = arith.constant 0 : index
    %c0_20 = arith.constant 0 : index
    %15 = vector.load %arg2[%c0_16, %c0_17, %c1_18, %c0_19, %c0_20] : memref<1x1x9x9x32xf32, #tpu.memory_space<vmem>>, vector<1x1x8x8x32xf32>
    %16 = vector.shape_cast %15 : vector<1x1x8x8x32xf32> to vector<8x8x32xf32>
    %17 = vector.shape_cast %16 : vector<8x8x32xf32> to vector<64x32xf32>
    %c2 = arith.constant 2 : index
    %c0_21 = arith.constant 0 : index
    %c0_22 = arith.constant 0 : index
    %18 = vector.load %arg3[%c2, %c0_21, %c0_22] : memref<4x32x16xf32, #tpu.memory_space<vmem>>, vector<1x32x16xf32>
    %19 = vector.shape_cast %18 : vector<1x32x16xf32> to vector<32x16xf32>
    %cst_23 = arith.constant dense<0.000000e+00> : vector<64x16xf32>
    %20 = tpu.matmul %17, %19, %cst_23 {dimension_numbers = #tpu.dot_dimension_numbers<[1], [0], [0], [1], [0, 0, 1, 1], [], []>} : vector<64x32xf32>, vector<32x16xf32>, vector<64x16xf32> -> vector<64x16xf32>
    %21 = arith.addf %14, %20 : vector<64x16xf32>
    %c0_24 = arith.constant 0 : index
    %c0_25 = arith.constant 0 : index
    %c1_26 = arith.constant 1 : index
    %c1_27 = arith.constant 1 : index
    %c0_28 = arith.constant 0 : index
    %22 = vector.load %arg2[%c0_24, %c0_25, %c1_26, %c1_27, %c0_28] : memref<1x1x9x9x32xf32, #tpu.memory_space<vmem>>, vector<1x1x8x8x32xf32>
    %23 = vector.shape_cast %22 : vector<1x1x8x8x32xf32> to vector<8x8x32xf32>
    %24 = vector.shape_cast %23 : vector<8x8x32xf32> to vector<64x32xf32>
    %c3 = arith.constant 3 : index
    %c0_29 = arith.constant 0 : index
    %c0_30 = arith.constant 0 : index
    %25 = vector.load %arg3[%c3, %c0_29, %c0_30] : memref<4x32x16xf32, #tpu.memory_space<vmem>>, vector<1x32x16xf32>
    %26 = vector.shape_cast %25 : vector<1x32x16xf32> to vector<32x16xf32>
    %cst_31 = arith.constant dense<0.000000e+00> : vector<64x16xf32>
    %27 = tpu.matmul %24, %26, %cst_31 {dimension_numbers = #tpu.dot_dimension_numbers<[1], [0], [0], [1], [0, 0, 1, 1], [], []>} : vector<64x32xf32>, vector<32x16xf32>, vector<64x16xf32> -> vector<64x16xf32>
    %28 = arith.addf %21, %27 : vector<64x16xf32>
    %c0_32 = arith.constant 0 : index
    %c0_33 = arith.constant 0 : index
    %29 = vector.load %arg4[%c0_32, %c0_33] : memref<1x16xf32, #tpu.memory_space<vmem>>, vector<1x16xf32>
    %30 = vector.broadcast %29 : vector<1x16xf32> to vector<64x16xf32>
    %31 = arith.addf %28, %30 : vector<64x16xf32>
    %cst_34 = arith.constant 0.000000e+00 : f32
    %32 = vector.broadcast %cst_34 : f32 to vector<64x16xf32>
    %33 = arith.cmpf oge, %31, %32 : vector<64x16xf32>
    %cst_35 = arith.constant 2.000000e-01 : f32
    %34 = vector.broadcast %cst_35 : f32 to vector<64x16xf32>
    %35 = arith.mulf %34, %31 : vector<64x16xf32>
    %36 = arith.select %33, %31, %35 : vector<64x16xi1>, vector<64x16xf32>
    %c0_36 = arith.constant 0 : index
    %c0_37 = arith.constant 0 : index
    %c0_38 = arith.constant 0 : index
    %37 = vector.load %arg5[%c0_36, %c0_37, %c0_38] : memref<1x64x16xf32, #tpu.memory_space<vmem>>, vector<1x64x16xf32>
    %38 = vector.shape_cast %37 : vector<1x64x16xf32> to vector<64x16xf32>
    %39 = vector.shape_cast %36 : vector<64x16xf32> to vector<1x64x16xf32>
    tpu.vector_store %arg5[%c0_36, %c0_37, %c0_38], %39 {strides = array<i32>} : memref<1x64x16xf32, #tpu.memory_space<vmem>>, vector<1x64x16xf32>,
    return
  }
  func.func @transform_0(%arg0: i32, %arg1: i32) -> (i32, i32, i32, i32, i32) {
    %c0_i32 = arith.constant 0 : i32
    %c0_i32_0 = arith.constant 0 : i32
    %c0_i32_1 = arith.constant 0 : i32
    %c0_i32_2 = arith.constant 0 : i32
    return %arg0, %arg1, %c0_i32, %c0_i32_0, %c0_i32_1 : i32, i32, i32, i32, i32
  }
  func.func @transform_1(%arg0: i32, %arg1: i32) -> (i32, i32, i32) {
    %c0_i32 = arith.constant 0 : i32
    %c0_i32_0 = arith.constant 0 : i32
    %c0_i32_1 = arith.constant 0 : i32
    %c0_i32_2 = arith.constant 0 : i32
    return %c0_i32, %c0_i32_0, %c0_i32_1 : i32, i32, i32
  }
  func.func @transform_2(%arg0: i32, %arg1: i32) -> (i32, i32) {
    %c0_i32 = arith.constant 0 : i32
    %c0_i32_0 = arith.constant 0 : i32
    %c0_i32_1 = arith.constant 0 : i32
    return %c0_i32, %c0_i32_0 : i32, i32
  }
  func.func @transform_3(%arg0: i32, %arg1: i32) -> (i32, i32, i32) {
    %c0_i32 = arith.constant 0 : i32
    %c0_i32_0 = arith.constant 0 : i32
    return %arg0, %arg1, %c0_i32 : i32, i32, i32
  }
}

module attributes {stable_mosaic.version = 11 : i64} {
  func.func @dsconv_kernel(%arg0: i32, %arg1: i32, %arg2: memref<1x1x5x5x64xf32, #tpu.memory_space<vmem>>, %arg3: memref<4x64x32xf32, #tpu.memory_space<vmem>>, %arg4: memref<1x32xf32, #tpu.memory_space<vmem>>, %arg5: memref<1x16x32xf32, #tpu.memory_space<vmem>>) attributes {dimension_semantics = [#tpu.dimension_semantics<parallel>, #tpu.dimension_semantics<parallel>], iteration_bounds = array<i64: 2, 1>, scalar_prefetch = 0 : i64, scratch_operands = 0 : i64, tpu.core_type = #tpu.core_type<tc>, window_params = [{transform_indices = @transform_0, window_bounds = array<i64: 1, 1, 5, 5, 64>}, {pipeline_mode = #tpu.pipeline_mode<synchronous>, transform_indices = @transform_1, window_bounds = array<i64: 4, 64, 32>}, {pipeline_mode = #tpu.pipeline_mode<synchronous>, transform_indices = @transform_2, window_bounds = array<i64: 1, 32>}, {transform_indices = @transform_3, window_bounds = array<i64: 1, 16, 32>}]} {
    %cst = arith.constant 0.000000e+00 : f32
    %0 = vector.broadcast %cst : f32 to vector<16x32xf32>
    %c0 = arith.constant 0 : index
    %c0_0 = arith.constant 0 : index
    %c0_1 = arith.constant 0 : index
    %c0_2 = arith.constant 0 : index
    %c0_3 = arith.constant 0 : index
    %1 = vector.load %arg2[%c0, %c0_0, %c0_1, %c0_2, %c0_3] : memref<1x1x5x5x64xf32, #tpu.memory_space<vmem>>, vector<1x1x4x4x64xf32>
    %2 = vector.shape_cast %1 : vector<1x1x4x4x64xf32> to vector<4x4x64xf32>
    %3 = vector.shape_cast %2 : vector<4x4x64xf32> to vector<16x64xf32>
    %c0_4 = arith.constant 0 : index
    %c0_5 = arith.constant 0 : index
    %c0_6 = arith.constant 0 : index
    %4 = vector.load %arg3[%c0_4, %c0_5, %c0_6] : memref<4x64x32xf32, #tpu.memory_space<vmem>>, vector<1x64x32xf32>
    %5 = vector.shape_cast %4 : vector<1x64x32xf32> to vector<64x32xf32>
    %cst_7 = arith.constant dense<0.000000e+00> : vector<16x32xf32>
    %6 = tpu.matmul %3, %5, %cst_7 {dimension_numbers = #tpu.dot_dimension_numbers<[1], [0], [0], [1], [0, 0, 1, 1], [], []>} : vector<16x64xf32>, vector<64x32xf32>, vector<16x32xf32> -> vector<16x32xf32>
    %7 = arith.addf %0, %6 : vector<16x32xf32>
    %c0_8 = arith.constant 0 : index
    %c0_9 = arith.constant 0 : index
    %c0_10 = arith.constant 0 : index
    %c1 = arith.constant 1 : index
    %c0_11 = arith.constant 0 : index
    %8 = vector.load %arg2[%c0_8, %c0_9, %c0_10, %c1, %c0_11] : memref<1x1x5x5x64xf32, #tpu.memory_space<vmem>>, vector<1x1x4x4x64xf32>
    %9 = vector.shape_cast %8 : vector<1x1x4x4x64xf32> to vector<4x4x64xf32>
    %10 = vector.shape_cast %9 : vector<4x4x64xf32> to vector<16x64xf32>
    %c1_12 = arith.constant 1 : index
    %c0_13 = arith.constant 0 : index
    %c0_14 = arith.constant 0 : index
    %11 = vector.load %arg3[%c1_12, %c0_13, %c0_14] : memref<4x64x32xf32, #tpu.memory_space<vmem>>, vector<1x64x32xf32>
    %12 = vector.shape_cast %11 : vector<1x64x32xf32> to vector<64x32xf32>
    %cst_15 = arith.constant dense<0.000000e+00> : vector<16x32xf32>
    %13 = tpu.matmul %10, %12, %cst_15 {dimension_numbers = #tpu.dot_dimension_numbers<[1], [0], [0], [1], [0, 0, 1, 1], [], []>} : vector<16x64xf32>, vector<64x32xf32>, vector<16x32xf32> -> vector<16x32xf32>
    %14 = arith.addf %7, %13 : vector<16x32xf32>
    %c0_16 = arith.constant 0 : index
    %c0_17 = arith.constant 0 : index
    %c1_18 = arith.constant 1 : index
    %c0_19 = arith.constant 0 : index
    %c0_20 = arith.constant 0 : index
    %15 = vector.load %arg2[%c0_16, %c0_17, %c1_18, %c0_19, %c0_20] : memref<1x1x5x5x64xf32, #tpu.memory_space<vmem>>, vector<1x1x4x4x64xf32>
    %16 = vector.shape_cast %15 : vector<1x1x4x4x64xf32> to vector<4x4x64xf32>
    %17 = vector.shape_cast %16 : vector<4x4x64xf32> to vector<16x64xf32>
    %c2 = arith.constant 2 : index
    %c0_21 = arith.constant 0 : index
    %c0_22 = arith.constant 0 : index
    %18 = vector.load %arg3[%c2, %c0_21, %c0_22] : memref<4x64x32xf32, #tpu.memory_space<vmem>>, vector<1x64x32xf32>
    %19 = vector.shape_cast %18 : vector<1x64x32xf32> to vector<64x32xf32>
    %cst_23 = arith.constant dense<0.000000e+00> : vector<16x32xf32>
    %20 = tpu.matmul %17, %19, %cst_23 {dimension_numbers = #tpu.dot_dimension_numbers<[1], [0], [0], [1], [0, 0, 1, 1], [], []>} : vector<16x64xf32>, vector<64x32xf32>, vector<16x32xf32> -> vector<16x32xf32>
    %21 = arith.addf %14, %20 : vector<16x32xf32>
    %c0_24 = arith.constant 0 : index
    %c0_25 = arith.constant 0 : index
    %c1_26 = arith.constant 1 : index
    %c1_27 = arith.constant 1 : index
    %c0_28 = arith.constant 0 : index
    %22 = vector.load %arg2[%c0_24, %c0_25, %c1_26, %c1_27, %c0_28] : memref<1x1x5x5x64xf32, #tpu.memory_space<vmem>>, vector<1x1x4x4x64xf32>
    %23 = vector.shape_cast %22 : vector<1x1x4x4x64xf32> to vector<4x4x64xf32>
    %24 = vector.shape_cast %23 : vector<4x4x64xf32> to vector<16x64xf32>
    %c3 = arith.constant 3 : index
    %c0_29 = arith.constant 0 : index
    %c0_30 = arith.constant 0 : index
    %25 = vector.load %arg3[%c3, %c0_29, %c0_30] : memref<4x64x32xf32, #tpu.memory_space<vmem>>, vector<1x64x32xf32>
    %26 = vector.shape_cast %25 : vector<1x64x32xf32> to vector<64x32xf32>
    %cst_31 = arith.constant dense<0.000000e+00> : vector<16x32xf32>
    %27 = tpu.matmul %24, %26, %cst_31 {dimension_numbers = #tpu.dot_dimension_numbers<[1], [0], [0], [1], [0, 0, 1, 1], [], []>} : vector<16x64xf32>, vector<64x32xf32>, vector<16x32xf32> -> vector<16x32xf32>
    %28 = arith.addf %21, %27 : vector<16x32xf32>
    %c0_32 = arith.constant 0 : index
    %c0_33 = arith.constant 0 : index
    %29 = vector.load %arg4[%c0_32, %c0_33] : memref<1x32xf32, #tpu.memory_space<vmem>>, vector<1x32xf32>
    %30 = vector.broadcast %29 : vector<1x32xf32> to vector<16x32xf32>
    %31 = arith.addf %28, %30 : vector<16x32xf32>
    %cst_34 = arith.constant 0.000000e+00 : f32
    %32 = vector.broadcast %cst_34 : f32 to vector<16x32xf32>
    %33 = arith.cmpf oge, %31, %32 : vector<16x32xf32>
    %cst_35 = arith.constant 2.000000e-01 : f32
    %34 = vector.broadcast %cst_35 : f32 to vector<16x32xf32>
    %35 = arith.mulf %34, %31 : vector<16x32xf32>
    %36 = arith.select %33, %31, %35 : vector<16x32xi1>, vector<16x32xf32>
    %c0_36 = arith.constant 0 : index
    %c0_37 = arith.constant 0 : index
    %c0_38 = arith.constant 0 : index
    %37 = vector.load %arg5[%c0_36, %c0_37, %c0_38] : memref<1x16x32xf32, #tpu.memory_space<vmem>>, vector<1x16x32xf32>
    %38 = vector.shape_cast %37 : vector<1x16x32xf32> to vector<16x32xf32>
    %39 = vector.shape_cast %36 : vector<16x32xf32> to vector<1x16x32xf32>
    tpu.vector_store %arg5[%c0_36, %c0_37, %c0_38], %39 {strides = array<i32>} : memref<1x16x32xf32, #tpu.memory_space<vmem>>, vector<1x16x32xf32>,
    return
  }
  func.func @transform_0(%arg0: i32, %arg1: i32) -> (i32, i32, i32, i32, i32) {
    %c0_i32 = arith.constant 0 : i32
    %c0_i32_0 = arith.constant 0 : i32
    %c0_i32_1 = arith.constant 0 : i32
    %c0_i32_2 = arith.constant 0 : i32
    return %arg0, %arg1, %c0_i32, %c0_i32_0, %c0_i32_1 : i32, i32, i32, i32, i32
  }
  func.func @transform_1(%arg0: i32, %arg1: i32) -> (i32, i32, i32) {
    %c0_i32 = arith.constant 0 : i32
    %c0_i32_0 = arith.constant 0 : i32
    %c0_i32_1 = arith.constant 0 : i32
    %c0_i32_2 = arith.constant 0 : i32
    return %c0_i32, %c0_i32_0, %c0_i32_1 : i32, i32, i32
  }
  func.func @transform_2(%arg0: i32, %arg1: i32) -> (i32, i32) {
    %c0_i32 = arith.constant 0 : i32
    %c0_i32_0 = arith.constant 0 : i32
    %c0_i32_1 = arith.constant 0 : i32
    return %c0_i32, %c0_i32_0 : i32, i32
  }
  func.func @transform_3(%arg0: i32, %arg1: i32) -> (i32, i32, i32) {
    %c0_i32 = arith.constant 0 : i32
    %c0_i32_0 = arith.constant 0 : i32
    return %arg0, %arg1, %c0_i32 : i32, i32, i32
  }
}

module attributes {stable_mosaic.version = 11 : i64} {
  func.func @dsconv_kernel(%arg0: i32, %arg1: i32, %arg2: memref<1x1x3x3x128xf32, #tpu.memory_space<vmem>>, %arg3: memref<4x128x64xf32, #tpu.memory_space<vmem>>, %arg4: memref<1x64xf32, #tpu.memory_space<vmem>>, %arg5: memref<1x4x64xf32, #tpu.memory_space<vmem>>) attributes {dimension_semantics = [#tpu.dimension_semantics<parallel>, #tpu.dimension_semantics<parallel>], iteration_bounds = array<i64: 2, 1>, scalar_prefetch = 0 : i64, scratch_operands = 0 : i64, tpu.core_type = #tpu.core_type<tc>, window_params = [{transform_indices = @transform_0, window_bounds = array<i64: 1, 1, 3, 3, 128>}, {pipeline_mode = #tpu.pipeline_mode<synchronous>, transform_indices = @transform_1, window_bounds = array<i64: 4, 128, 64>}, {pipeline_mode = #tpu.pipeline_mode<synchronous>, transform_indices = @transform_2, window_bounds = array<i64: 1, 64>}, {transform_indices = @transform_3, window_bounds = array<i64: 1, 4, 64>}]} {
    %cst = arith.constant 0.000000e+00 : f32
    %0 = vector.broadcast %cst : f32 to vector<4x64xf32>
    %c0 = arith.constant 0 : index
    %c0_0 = arith.constant 0 : index
    %c0_1 = arith.constant 0 : index
    %c0_2 = arith.constant 0 : index
    %c0_3 = arith.constant 0 : index
    %1 = vector.load %arg2[%c0, %c0_0, %c0_1, %c0_2, %c0_3] : memref<1x1x3x3x128xf32, #tpu.memory_space<vmem>>, vector<1x1x2x2x128xf32>
    %2 = vector.shape_cast %1 : vector<1x1x2x2x128xf32> to vector<2x2x128xf32>
    %3 = vector.shape_cast %2 : vector<2x2x128xf32> to vector<4x128xf32>
    %c0_4 = arith.constant 0 : index
    %c0_5 = arith.constant 0 : index
    %c0_6 = arith.constant 0 : index
    %4 = vector.load %arg3[%c0_4, %c0_5, %c0_6] : memref<4x128x64xf32, #tpu.memory_space<vmem>>, vector<1x128x64xf32>
    %5 = vector.shape_cast %4 : vector<1x128x64xf32> to vector<128x64xf32>
    %cst_7 = arith.constant dense<0.000000e+00> : vector<4x64xf32>
    %6 = tpu.matmul %3, %5, %cst_7 {dimension_numbers = #tpu.dot_dimension_numbers<[1], [0], [0], [1], [0, 0, 1, 1], [], []>} : vector<4x128xf32>, vector<128x64xf32>, vector<4x64xf32> -> vector<4x64xf32>
    %7 = arith.addf %0, %6 : vector<4x64xf32>
    %c0_8 = arith.constant 0 : index
    %c0_9 = arith.constant 0 : index
    %c0_10 = arith.constant 0 : index
    %c1 = arith.constant 1 : index
    %c0_11 = arith.constant 0 : index
    %8 = vector.load %arg2[%c0_8, %c0_9, %c0_10, %c1, %c0_11] : memref<1x1x3x3x128xf32, #tpu.memory_space<vmem>>, vector<1x1x2x2x128xf32>
    %9 = vector.shape_cast %8 : vector<1x1x2x2x128xf32> to vector<2x2x128xf32>
    %10 = vector.shape_cast %9 : vector<2x2x128xf32> to vector<4x128xf32>
    %c1_12 = arith.constant 1 : index
    %c0_13 = arith.constant 0 : index
    %c0_14 = arith.constant 0 : index
    %11 = vector.load %arg3[%c1_12, %c0_13, %c0_14] : memref<4x128x64xf32, #tpu.memory_space<vmem>>, vector<1x128x64xf32>
    %12 = vector.shape_cast %11 : vector<1x128x64xf32> to vector<128x64xf32>
    %cst_15 = arith.constant dense<0.000000e+00> : vector<4x64xf32>
    %13 = tpu.matmul %10, %12, %cst_15 {dimension_numbers = #tpu.dot_dimension_numbers<[1], [0], [0], [1], [0, 0, 1, 1], [], []>} : vector<4x128xf32>, vector<128x64xf32>, vector<4x64xf32> -> vector<4x64xf32>
    %14 = arith.addf %7, %13 : vector<4x64xf32>
    %c0_16 = arith.constant 0 : index
    %c0_17 = arith.constant 0 : index
    %c1_18 = arith.constant 1 : index
    %c0_19 = arith.constant 0 : index
    %c0_20 = arith.constant 0 : index
    %15 = vector.load %arg2[%c0_16, %c0_17, %c1_18, %c0_19, %c0_20] : memref<1x1x3x3x128xf32, #tpu.memory_space<vmem>>, vector<1x1x2x2x128xf32>
    %16 = vector.shape_cast %15 : vector<1x1x2x2x128xf32> to vector<2x2x128xf32>
    %17 = vector.shape_cast %16 : vector<2x2x128xf32> to vector<4x128xf32>
    %c2 = arith.constant 2 : index
    %c0_21 = arith.constant 0 : index
    %c0_22 = arith.constant 0 : index
    %18 = vector.load %arg3[%c2, %c0_21, %c0_22] : memref<4x128x64xf32, #tpu.memory_space<vmem>>, vector<1x128x64xf32>
    %19 = vector.shape_cast %18 : vector<1x128x64xf32> to vector<128x64xf32>
    %cst_23 = arith.constant dense<0.000000e+00> : vector<4x64xf32>
    %20 = tpu.matmul %17, %19, %cst_23 {dimension_numbers = #tpu.dot_dimension_numbers<[1], [0], [0], [1], [0, 0, 1, 1], [], []>} : vector<4x128xf32>, vector<128x64xf32>, vector<4x64xf32> -> vector<4x64xf32>
    %21 = arith.addf %14, %20 : vector<4x64xf32>
    %c0_24 = arith.constant 0 : index
    %c0_25 = arith.constant 0 : index
    %c1_26 = arith.constant 1 : index
    %c1_27 = arith.constant 1 : index
    %c0_28 = arith.constant 0 : index
    %22 = vector.load %arg2[%c0_24, %c0_25, %c1_26, %c1_27, %c0_28] : memref<1x1x3x3x128xf32, #tpu.memory_space<vmem>>, vector<1x1x2x2x128xf32>
    %23 = vector.shape_cast %22 : vector<1x1x2x2x128xf32> to vector<2x2x128xf32>
    %24 = vector.shape_cast %23 : vector<2x2x128xf32> to vector<4x128xf32>
    %c3 = arith.constant 3 : index
    %c0_29 = arith.constant 0 : index
    %c0_30 = arith.constant 0 : index
    %25 = vector.load %arg3[%c3, %c0_29, %c0_30] : memref<4x128x64xf32, #tpu.memory_space<vmem>>, vector<1x128x64xf32>
    %26 = vector.shape_cast %25 : vector<1x128x64xf32> to vector<128x64xf32>
    %cst_31 = arith.constant dense<0.000000e+00> : vector<4x64xf32>
    %27 = tpu.matmul %24, %26, %cst_31 {dimension_numbers = #tpu.dot_dimension_numbers<[1], [0], [0], [1], [0, 0, 1, 1], [], []>} : vector<4x128xf32>, vector<128x64xf32>, vector<4x64xf32> -> vector<4x64xf32>
    %28 = arith.addf %21, %27 : vector<4x64xf32>
    %c0_32 = arith.constant 0 : index
    %c0_33 = arith.constant 0 : index
    %29 = vector.load %arg4[%c0_32, %c0_33] : memref<1x64xf32, #tpu.memory_space<vmem>>, vector<1x64xf32>
    %30 = vector.broadcast %29 : vector<1x64xf32> to vector<4x64xf32>
    %31 = arith.addf %28, %30 : vector<4x64xf32>
    %cst_34 = arith.constant 0.000000e+00 : f32
    %32 = vector.broadcast %cst_34 : f32 to vector<4x64xf32>
    %33 = arith.cmpf oge, %31, %32 : vector<4x64xf32>
    %cst_35 = arith.constant 2.000000e-01 : f32
    %34 = vector.broadcast %cst_35 : f32 to vector<4x64xf32>
    %35 = arith.mulf %34, %31 : vector<4x64xf32>
    %36 = arith.select %33, %31, %35 : vector<4x64xi1>, vector<4x64xf32>
    %c0_36 = arith.constant 0 : index
    %c0_37 = arith.constant 0 : index
    %c0_38 = arith.constant 0 : index
    %37 = vector.load %arg5[%c0_36, %c0_37, %c0_38] : memref<1x4x64xf32, #tpu.memory_space<vmem>>, vector<1x4x64xf32>
    %38 = vector.shape_cast %37 : vector<1x4x64xf32> to vector<4x64xf32>
    %39 = vector.shape_cast %36 : vector<4x64xf32> to vector<1x4x64xf32>
    tpu.vector_store %arg5[%c0_36, %c0_37, %c0_38], %39 {strides = array<i32>} : memref<1x4x64xf32, #tpu.memory_space<vmem>>, vector<1x4x64xf32>,
    return
  }
  func.func @transform_0(%arg0: i32, %arg1: i32) -> (i32, i32, i32, i32, i32) {
    %c0_i32 = arith.constant 0 : i32
    %c0_i32_0 = arith.constant 0 : i32
    %c0_i32_1 = arith.constant 0 : i32
    %c0_i32_2 = arith.constant 0 : i32
    return %arg0, %arg1, %c0_i32, %c0_i32_0, %c0_i32_1 : i32, i32, i32, i32, i32
  }
  func.func @transform_1(%arg0: i32, %arg1: i32) -> (i32, i32, i32) {
    %c0_i32 = arith.constant 0 : i32
    %c0_i32_0 = arith.constant 0 : i32
    %c0_i32_1 = arith.constant 0 : i32
    %c0_i32_2 = arith.constant 0 : i32
    return %c0_i32, %c0_i32_0, %c0_i32_1 : i32, i32, i32
  }
  func.func @transform_2(%arg0: i32, %arg1: i32) -> (i32, i32) {
    %c0_i32 = arith.constant 0 : i32
    %c0_i32_0 = arith.constant 0 : i32
    %c0_i32_1 = arith.constant 0 : i32
    return %c0_i32, %c0_i32_0 : i32, i32
  }
  func.func @transform_3(%arg0: i32, %arg1: i32) -> (i32, i32, i32) {
    %c0_i32 = arith.constant 0 : i32
    %c0_i32_0 = arith.constant 0 : i32
    return %arg0, %arg1, %c0_i32 : i32, i32, i32
  }
}

module attributes {stable_mosaic.version = 11 : i64} {
  func.func @classifier_upsample_kernel(%arg0: i32, %arg1: memref<1x2x2x256xf32, #tpu.memory_space<vmem>>, %arg2: memref<4x1x256xf32, #tpu.memory_space<vmem>>, %arg3: memref<1x1xf32, #tpu.memory_space<vmem>>, %arg4: memref<32x1xf32, #tpu.memory_space<vmem>>, %arg5: memref<1x32xf32, #tpu.memory_space<vmem>>, %arg6: memref<1x32x32xf32, #tpu.memory_space<vmem>>) attributes {dimension_semantics = [#tpu.dimension_semantics<parallel>], iteration_bounds = array<i64: 2>, scalar_prefetch = 0 : i64, scratch_operands = 0 : i64, tpu.core_type = #tpu.core_type<tc>, window_params = [{transform_indices = @transform_0, window_bounds = array<i64: 1, 2, 2, 256>}, {pipeline_mode = #tpu.pipeline_mode<synchronous>, transform_indices = @transform_1, window_bounds = array<i64: 4, 1, 256>}, {pipeline_mode = #tpu.pipeline_mode<synchronous>, transform_indices = @transform_2, window_bounds = array<i64: 1, 1>}, {pipeline_mode = #tpu.pipeline_mode<synchronous>, transform_indices = @transform_3, window_bounds = array<i64: 32, 1>}, {pipeline_mode = #tpu.pipeline_mode<synchronous>, transform_indices = @transform_4, window_bounds = array<i64: 1, 32>}, {transform_indices = @transform_5, window_bounds = array<i64: 1, 32, 32>}]} {
    %cst = arith.constant 0.000000e+00 : f32
    %0 = vector.broadcast %cst : f32 to vector<1x1xf32>
    %c0 = arith.constant 0 : index
    %c0_0 = arith.constant 0 : index
    %c0_1 = arith.constant 0 : index
    %c0_2 = arith.constant 0 : index
    %1 = vector.load %arg1[%c0, %c0_0, %c0_1, %c0_2] : memref<1x2x2x256xf32, #tpu.memory_space<vmem>>, vector<1x1x1x256xf32>
    %2 = vector.shape_cast %1 : vector<1x1x1x256xf32> to vector<1x1x256xf32>
    %c0_3 = arith.constant 0 : index
    %c0_4 = arith.constant 0 : index
    %c0_5 = arith.constant 0 : index
    %3 = vector.load %arg2[%c0_3, %c0_4, %c0_5] : memref<4x1x256xf32, #tpu.memory_space<vmem>>, vector<1x1x256xf32>
    %4 = vector.shape_cast %3 : vector<1x1x256xf32> to vector<1x256xf32>
    %5 = vector.shape_cast %4 : vector<1x256xf32> to vector<1x1x256xf32>
    %6 = arith.mulf %2, %5 : vector<1x1x256xf32>
    %cst_6 = arith.constant dense<0.000000e+00> : vector<1x1xf32>
    %7 = vector.multi_reduction <add>, %6, %cst_6 [2] : vector<1x1x256xf32> to vector<1x1xf32>
    %8 = arith.addf %0, %7 : vector<1x1xf32>
    %c0_7 = arith.constant 0 : index
    %c0_8 = arith.constant 0 : index
    %c1 = arith.constant 1 : index
    %c0_9 = arith.constant 0 : index
    %9 = vector.load %arg1[%c0_7, %c0_8, %c1, %c0_9] : memref<1x2x2x256xf32, #tpu.memory_space<vmem>>, vector<1x1x1x256xf32>
    %10 = vector.shape_cast %9 : vector<1x1x1x256xf32> to vector<1x1x256xf32>
    %c1_10 = arith.constant 1 : index
    %c0_11 = arith.constant 0 : index
    %c0_12 = arith.constant 0 : index
    %11 = vector.load %arg2[%c1_10, %c0_11, %c0_12] : memref<4x1x256xf32, #tpu.memory_space<vmem>>, vector<1x1x256xf32>
    %12 = vector.shape_cast %11 : vector<1x1x256xf32> to vector<1x256xf32>
    %13 = vector.shape_cast %12 : vector<1x256xf32> to vector<1x1x256xf32>
    %14 = arith.mulf %10, %13 : vector<1x1x256xf32>
    %cst_13 = arith.constant dense<0.000000e+00> : vector<1x1xf32>
    %15 = vector.multi_reduction <add>, %14, %cst_13 [2] : vector<1x1x256xf32> to vector<1x1xf32>
    %16 = arith.addf %8, %15 : vector<1x1xf32>
    %c0_14 = arith.constant 0 : index
    %c1_15 = arith.constant 1 : index
    %c0_16 = arith.constant 0 : index
    %c0_17 = arith.constant 0 : index
    %17 = vector.load %arg1[%c0_14, %c1_15, %c0_16, %c0_17] : memref<1x2x2x256xf32, #tpu.memory_space<vmem>>, vector<1x1x1x256xf32>
    %18 = vector.shape_cast %17 : vector<1x1x1x256xf32> to vector<1x1x256xf32>
    %c2 = arith.constant 2 : index
    %c0_18 = arith.constant 0 : index
    %c0_19 = arith.constant 0 : index
    %19 = vector.load %arg2[%c2, %c0_18, %c0_19] : memref<4x1x256xf32, #tpu.memory_space<vmem>>, vector<1x1x256xf32>
    %20 = vector.shape_cast %19 : vector<1x1x256xf32> to vector<1x256xf32>
    %21 = vector.shape_cast %20 : vector<1x256xf32> to vector<1x1x256xf32>
    %22 = arith.mulf %18, %21 : vector<1x1x256xf32>
    %cst_20 = arith.constant dense<0.000000e+00> : vector<1x1xf32>
    %23 = vector.multi_reduction <add>, %22, %cst_20 [2] : vector<1x1x256xf32> to vector<1x1xf32>
    %24 = arith.addf %16, %23 : vector<1x1xf32>
    %c0_21 = arith.constant 0 : index
    %c1_22 = arith.constant 1 : index
    %c1_23 = arith.constant 1 : index
    %c0_24 = arith.constant 0 : index
    %25 = vector.load %arg1[%c0_21, %c1_22, %c1_23, %c0_24] : memref<1x2x2x256xf32, #tpu.memory_space<vmem>>, vector<1x1x1x256xf32>
    %26 = vector.shape_cast %25 : vector<1x1x1x256xf32> to vector<1x1x256xf32>
    %c3 = arith.constant 3 : index
    %c0_25 = arith.constant 0 : index
    %c0_26 = arith.constant 0 : index
    %27 = vector.load %arg2[%c3, %c0_25, %c0_26] : memref<4x1x256xf32, #tpu.memory_space<vmem>>, vector<1x1x256xf32>
    %28 = vector.shape_cast %27 : vector<1x1x256xf32> to vector<1x256xf32>
    %29 = vector.shape_cast %28 : vector<1x256xf32> to vector<1x1x256xf32>
    %30 = arith.mulf %26, %29 : vector<1x1x256xf32>
    %cst_27 = arith.constant dense<0.000000e+00> : vector<1x1xf32>
    %31 = vector.multi_reduction <add>, %30, %cst_27 [2] : vector<1x1x256xf32> to vector<1x1xf32>
    %32 = arith.addf %24, %31 : vector<1x1xf32>
    %c0_28 = arith.constant 0 : index
    %c0_29 = arith.constant 0 : index
    %33 = vector.load %arg3[%c0_28, %c0_29] : memref<1x1xf32, #tpu.memory_space<vmem>>, vector<1x1xf32>
    %34 = arith.addf %32, %33 : vector<1x1xf32>
    %c0_30 = arith.constant 0 : index
    %c0_31 = arith.constant 0 : index
    %35 = vector.load %arg4[%c0_30, %c0_31] : memref<32x1xf32, #tpu.memory_space<vmem>>, vector<32x1xf32>
    %cst_32 = arith.constant dense<0.000000e+00> : vector<32x1xf32>
    %36 = tpu.matmul %35, %34, %cst_32 {dimension_numbers = #tpu.dot_dimension_numbers<[1], [0], [0], [1], [0, 0, 1, 1], [], []>} : vector<32x1xf32>, vector<1x1xf32>, vector<32x1xf32> -> vector<32x1xf32>
    %c0_33 = arith.constant 0 : index
    %c0_34 = arith.constant 0 : index
    %37 = vector.load %arg5[%c0_33, %c0_34] : memref<1x32xf32, #tpu.memory_space<vmem>>, vector<1x32xf32>
    %cst_35 = arith.constant dense<0.000000e+00> : vector<32x32xf32>
    %38 = tpu.matmul %36, %37, %cst_35 {dimension_numbers = #tpu.dot_dimension_numbers<[1], [0], [0], [1], [0, 0, 1, 1], [], []>} : vector<32x1xf32>, vector<1x32xf32>, vector<32x32xf32> -> vector<32x32xf32>
    %c0_36 = arith.constant 0 : index
    %c0_37 = arith.constant 0 : index
    %c0_38 = arith.constant 0 : index
    %39 = vector.load %arg6[%c0_36, %c0_37, %c0_38] : memref<1x32x32xf32, #tpu.memory_space<vmem>>, vector<1x32x32xf32>
    %40 = vector.shape_cast %39 : vector<1x32x32xf32> to vector<32x32xf32>
    %41 = vector.shape_cast %38 : vector<32x32xf32> to vector<1x32x32xf32>
    tpu.vector_store %arg6[%c0_36, %c0_37, %c0_38], %41 {strides = array<i32>} : memref<1x32x32xf32, #tpu.memory_space<vmem>>, vector<1x32x32xf32>,
    return
  }
  func.func @transform_0(%arg0: i32) -> (i32, i32, i32, i32) {
    %c0_i32 = arith.constant 0 : i32
    %c0_i32_0 = arith.constant 0 : i32
    %c0_i32_1 = arith.constant 0 : i32
    %c0_i32_2 = arith.constant 0 : i32
    return %arg0, %c0_i32, %c0_i32_0, %c0_i32_1 : i32, i32, i32, i32
  }
  func.func @transform_1(%arg0: i32) -> (i32, i32, i32) {
    %c0_i32 = arith.constant 0 : i32
    %c0_i32_0 = arith.constant 0 : i32
    %c0_i32_1 = arith.constant 0 : i32
    %c0_i32_2 = arith.constant 0 : i32
    return %c0_i32, %c0_i32_0, %c0_i32_1 : i32, i32, i32
  }
  func.func @transform_2(%arg0: i32) -> (i32, i32) {
    %c0_i32 = arith.constant 0 : i32
    %c0_i32_0 = arith.constant 0 : i32
    %c0_i32_1 = arith.constant 0 : i32
    return %c0_i32, %c0_i32_0 : i32, i32
  }
  func.func @transform_3(%arg0: i32) -> (i32, i32) {
    %c0_i32 = arith.constant 0 : i32
    %c0_i32_0 = arith.constant 0 : i32
    %c0_i32_1 = arith.constant 0 : i32
    return %c0_i32, %c0_i32_0 : i32, i32
  }
  func.func @transform_4(%arg0: i32) -> (i32, i32) {
    %c0_i32 = arith.constant 0 : i32
    %c0_i32_0 = arith.constant 0 : i32
    %c0_i32_1 = arith.constant 0 : i32
    return %c0_i32, %c0_i32_0 : i32, i32
  }
  func.func @transform_5(%arg0: i32) -> (i32, i32, i32) {
    %c0_i32 = arith.constant 0 : i32
    %c0_i32_0 = arith.constant 0 : i32
    %c0_i32_1 = arith.constant 0 : i32
    return %arg0, %c0_i32, %c0_i32_0 : i32, i32, i32
  }
}

</mosaic_0001>

<llo_original>
// kernel: light_fc_discriminator.5
$region0: #{light_fc_discriminator.5}
  #allocation0 [shape = 'u32[]', space=smem, size = 0x4, offset = 0x4, fixed_abs, tag = 'smem constant byte address 0x4 - core index']
  #allocation1 [shape = 'u32[144,128]{1,0:T(1,128)}', space=vmem, size = 0x12000, scoped, tag = 'internal scratch']
  %s0 = inlined_call_operand.vmem [shape: f32[2,2,9,17,16], index: 0, kind: input, shape index: {}]
  %s1 = inlined_call_operand.vmem [shape: f32[4,16,8], index: 1, kind: input, shape index: {}]
  %s2 = inlined_call_operand.vmem [shape: f32[1,8], index: 2, kind: input, shape index: {}]
  %s3 = inlined_call_operand.vmem [shape: f32[2,256,8], index: 3, kind: output, shape index: {}]
  %s4 = sld [smem:[#allocation0]]
  $region45: #{light_fc_discriminator.5} parent=0
    _
  %s6 = ssub.s32 1, %s4
  %s7 = scalar_select 0, %s6, %s4
  loop: start=0, step=1, limit=6
  $region2: #{light_fc_discriminator.5} parent=0 // loop_pre_header
    _
  $region3: #{light_fc_discriminator.5} parent=0 // loop_header
    %s9 = sphi 0, %s13
    %p10 = scmp.ge.s32.totalorder %s9, 6
    %s16 = sphi 0, %s28
    %s17 = sphi 0, %s24
    %s18 = sphi 0, %s16
    %s19 = sphi 0, %s17
    %s20 = sphi 0, %s18
    %s21 = sphi 0, %s19
    %s33 = sphi 0, %s35
    %s36 = sphi 0, %s33
    %s37 = sphi 0, %s36
    %s53 = sphi 0, %s37
    %s57 = sphi 0, %s57
    %s59 = sphi 0, %s57
    %s60 = sphi 0, %s59
    %s74 = sphi 0, %s60
    %s78 = sphi 0, %s78
    %s80 = sphi 0, %s78
    %s81 = sphi 0, %s80
    %s95 = sphi 0, %s81
    %s103 = sphi 0, %s105
    %s106 = sphi 0, %s103
    %s107 = sphi 0, %s106
    %s123 = sphi 0, %s107
  $region4: #{light_fc_discriminator.5} parent=0 // loop_header_branch
    %12 = sbr.rel (%p10) target = $region8
  $region5: #{light_fc_discriminator.5} parent=0 // loop_body
    %s14 = ssub.s32 %s9, 1
    %s15 = ssub.s32 %s9, 2
    %s22 = sadd.s32 1, %s17
    %p23 = scmp.ge.s32.totalorder %s22, 2
    %s24 = scalar_select %p23, 0, %s22
    %s25 = sadd.s32 1, %s16
    %s26 = scalar_select %p23, %s25, %s16
    %p27 = scmp.ge.s32.totalorder %s26, 2
    %s28 = scalar_select %p27, 0, %s26
    %s29 = ssub.s32 %s16, %s28
    %s30 = ssub.s32 %s17, %s24
    %s31 = sor.u32 %s29, %s30
    %p32 = scmp.eq.s32.totalorder %s31, 0
    %s34 = sadd.s32 %s33, 1
    %s35 = scalar_select %p32, %s33, %s34
    %p38 = pneg %p32
    %p39 = scmp.eq.s32.totalorder %s9, 3
    %p40 = por %p38, %p39
    %p41 = scmp.ne.s32.totalorder %s33, %s36
    %p42 = scmp.eq.s32.totalorder %s9, 0
    %p43 = por %p41, %p42
    %p44 = scmp.ne.s32.totalorder %s33, %s36
    %p45 = scmp.eq.s32.totalorder %s14, 3
    %p46 = por %p44, %p45
    %p47 = scmp.ne.s32.totalorder %s36, %s37
    %p48 = scmp.eq.s32.totalorder %s14, 0
    %p49 = por %p47, %p48
    %p50 = scmp.ne.s32.totalorder %s36, %s37
    %p51 = scmp.eq.s32.totalorder %s15, 3
    %p52 = por %p50, %p51
    %p54 = scmp.ne.s32.totalorder %s37, %s53
    %p55 = scmp.eq.s32.totalorder %s15, 0
    %p56 = por %p54, %p55
    %s58 = sadd.s32 %s57, 1
    %p61 = scmp.eq.s32.totalorder %s9, 3
    %p62 = scmp.ne.s32.totalorder %s57, %s59
    %p63 = scmp.eq.s32.totalorder %s9, 0
    %p64 = por %p62, %p63
    %p65 = scmp.ne.s32.totalorder %s57, %s59
    %p66 = scmp.eq.s32.totalorder %s14, 3
    %p67 = por %p65, %p66
    %p68 = scmp.ne.s32.totalorder %s59, %s60
    %p69 = scmp.eq.s32.totalorder %s14, 0
    %p70 = por %p68, %p69
    %p71 = scmp.ne.s32.totalorder %s59, %s60
    %p72 = scmp.eq.s32.totalorder %s15, 3
    %p73 = por %p71, %p72
    %p75 = scmp.ne.s32.totalorder %s60, %s74
    %p76 = scmp.eq.s32.totalorder %s15, 0
    %p77 = por %p75, %p76
    %s79 = sadd.s32 %s78, 1
    %p82 = scmp.eq.s32.totalorder %s9, 3
    %p83 = scmp.ne.s32.totalorder %s78, %s80
    %p84 = scmp.eq.s32.totalorder %s9, 0
    %p85 = por %p83, %p84
    %p86 = scmp.ne.s32.totalorder %s78, %s80
    %p87 = scmp.eq.s32.totalorder %s14, 3
    %p88 = por %p86, %p87
    %p89 = scmp.ne.s32.totalorder %s80, %s81
    %p90 = scmp.eq.s32.totalorder %s14, 0
    %p91 = por %p89, %p90
    %p92 = scmp.ne.s32.totalorder %s80, %s81
    %p93 = scmp.eq.s32.totalorder %s15, 3
    %p94 = por %p92, %p93
    %p96 = scmp.ne.s32.totalorder %s81, %s95
    %p97 = scmp.eq.s32.totalorder %s15, 0
    %p98 = por %p96, %p97
    %s99 = ssub.s32 %s16, %s28
    %s100 = ssub.s32 %s17, %s24
    %s101 = sor.u32 %s99, %s100
    %p102 = scmp.eq.s32.totalorder %s101, 0
    %s104 = sadd.s32 %s103, 1
    %s105 = scalar_select %p102, %s103, %s104
    %p108 = pneg %p102
    %p109 = scmp.eq.s32.totalorder %s9, 3
    %p110 = por %p108, %p109
    %p111 = scmp.ne.s32.totalorder %s103, %s106
    %p112 = scmp.eq.s32.totalorder %s9, 0
    %p113 = por %p111, %p112
    %p114 = scmp.ne.s32.totalorder %s103, %s106
    %p115 = scmp.eq.s32.totalorder %s14, 3
    %p116 = por %p114, %p115
    %p117 = scmp.ne.s32.totalorder %s106, %s107
    %p118 = scmp.eq.s32.totalorder %s14, 0
    %p119 = por %p117, %p118
    %p120 = scmp.ne.s32.totalorder %s106, %s107
    %p121 = scmp.eq.s32.totalorder %s15, 3
    %p122 = por %p120, %p121
    %p124 = scmp.ne.s32.totalorder %s107, %s123
    %p125 = scmp.eq.s32.totalorder %s15, 0
    %p126 = por %p124, %p125
    %p127 = scmp.le.s32.totalorder 1, %s9
    %p128 = scmp.lt.s32.totalorder %s9, 5
    %p129 = pnand %p127, %p128
    %p130 = pneg %p129
    // Predicated region
    $region9: #{light_fc_discriminator.5} parent=5 // pred_check
      _
    $region10: #{light_fc_discriminator.5} parent=5 // pred_check_branch
      %132 = sbr.rel (%p129) target = $region12
    $region11: #{light_fc_discriminator.5} parent=5 // pred_region
      %s133 = ssub.s32 %s9, 1
      // Predicated region
      $region13: #{light_fc_discriminator.5} parent=11 // pred_check
        %p134 = pneg %p70
      $region14: #{light_fc_discriminator.5} parent=11 // pred_check_branch
        %136 = sbr.rel (%p134) target = $region16
      $region15: #{light_fc_discriminator.5} parent=11 // pred_region
        _
      $region16: #{light_fc_discriminator.5} parent=11 // pred_fallthru
        _
      // Predicated region
      $region17: #{light_fc_discriminator.5} parent=11 // pred_check
        %p137 = pneg %p91
      $region18: #{light_fc_discriminator.5} parent=11 // pred_check_branch
        %139 = sbr.rel (%p137) target = $region20
      $region19: #{light_fc_discriminator.5} parent=11 // pred_region
        _
      $region20: #{light_fc_discriminator.5} parent=11 // pred_fallthru
        _
    $region12: #{light_fc_discriminator.5} parent=5 // pred_fallthru
      _
    %p140 = scmp.lt.s32.totalorder %s9, 4
    // Predicated region
    $region21: #{light_fc_discriminator.5} parent=5 // pred_check
      %p141 = pneg %p140
    $region22: #{light_fc_discriminator.5} parent=5 // pred_check_branch
      %143 = sbr.rel (%p141) target = $region24
    $region23: #{light_fc_discriminator.5} parent=5 // pred_region
      // Predicated region
      $region25: #{light_fc_discriminator.5} parent=23 // pred_check
        %p144 = pneg %p43
      $region26: #{light_fc_discriminator.5} parent=23 // pred_check_branch
        %146 = sbr.rel (%p144) target = $region28
      $region27: #{light_fc_discriminator.5} parent=23 // pred_region
        %p147 = scmp.lt.s32.totalorder %s16, 1
        %s148 = scalar_select %p147, %s16, 1
        %p149 = scmp.lt.s32.totalorder %s17, 1
        %s150 = scalar_select %p149, %s17, 1
        %s151 = smul.addr %s150, 27
        %s152 = smul.addr %s148, 54
        %s153 = sadd.s32 %s151, %s152
        %s154 = smul.addr %s153, 8
        %s155 = scalar_lea.vmem %s0, %s154
      $region28: #{light_fc_discriminator.5} parent=23 // pred_fallthru
        _
    $region24: #{light_fc_discriminator.5} parent=5 // pred_fallthru
      _
    %p156 = scmp.le.s32.totalorder 1, %s9
    %p157 = scmp.lt.s32.totalorder %s9, 5
    %p158 = pnand %p156, %p157
    %p159 = pneg %p158
    // Predicated region
    $region29: #{light_fc_discriminator.5} parent=5 // pred_check
      _
    $region30: #{light_fc_discriminator.5} parent=5 // pred_check_branch
      %161 = sbr.rel (%p158) target = $region32
    $region31: #{light_fc_discriminator.5} parent=5 // pred_region
      %s162 = ssub.s32 %s9, 1
      %p163 = scmp.lt.s32.totalorder %s18, 1
      %s164 = scalar_select %p163, %s18, 1
      %p165 = scmp.lt.s32.totalorder %s19, 1
      %s166 = scalar_select %p165, %s19, 1
      %s167 = smul.addr %s166, 27
      %s168 = smul.addr %s164, 54
      %s169 = sadd.s32 %s167, %s168
      %s170 = smul.addr %s169, 8
      %s171 = scalar_lea.vmem %s0, %s170
      %p172 = pneg %p49
      %p173 = pneg %p46
      %p174 = pneg %p70
      %p175 = pneg %p67
      %p176 = pneg %p91
      %p177 = pneg %p88
      %p178 = pneg %p119
      %p179 = pneg %p116
      %s180 = smul.u32 16, %s19
      %p181 = scmp.lt.s32.totalorder %s18, 1
      %s182 = scalar_select %p181, %s18, 1
      %p183 = scmp.lt.s32.totalorder %s180, 31
      %s184 = scalar_select %p183, %s180, 31
      %s185 = smul.addr %s182, 32
      %s186 = sadd.s32 %s184, %s185
      %s187 = smul.addr %s186, 8
      %s188 = scalar_lea.vmem %s3, %s187
      %p189 = scmp.lt.s32.totalorder %s18, 1
      %s190 = scalar_select %p189, %s18, 1
      %p191 = scmp.lt.s32.totalorder %s19, 1
      %s192 = scalar_select %p191, %s19, 1
      %s193 = smul.addr %s192, 27
      %s194 = smul.addr %s190, 54
      %s195 = sadd.s32 %s193, %s194
      %s196 = smul.addr %s195, 8
      %s197 = scalar_lea.vmem %s0, %s196
      %s198 = smul.u32 16, %s19
      %p199 = scmp.lt.s32.totalorder %s18, 1
      %s200 = scalar_select %p199, %s18, 1
      %p201 = scmp.lt.s32.totalorder %s198, 31
      %s202 = scalar_select %p201, %s198, 31
      %s203 = smul.addr %s200, 32
      %s204 = sadd.s32 %s202, %s203
      %s205 = smul.addr %s204, 8
      %s206 = scalar_lea.vmem %s3, %s205
      %s207 = smul.u32 16, %s19
      %v208 = vld [vmem:[%s197] sm:$0xff]
      %v209 = vld [vmem:[%s197 + $0x8] sm:$0xff]
      %v210 = vld [vmem:[%s197 + $0x18] sm:$0xff]
      %v211 = vld [vmem:[%s197 + $0x20] sm:$0xff]
      %v212 = vld [vmem:[%s197 + $0x30] sm:$0xff]
      %v213 = vld [vmem:[%s197 + $0x38] sm:$0xff]
      %v214 = vld [vmem:[%s197 + $0x48] sm:$0xff]
      %v215 = vld [vmem:[%s197 + $0x50] sm:$0xff]
      %v216 = vld [vmem:[%s197 + $0x60] sm:$0xff]
      %v217 = vld [vmem:[%s197 + $0x68] sm:$0xff]
      %v218 = vld [vmem:[%s197 + $0x78] sm:$0xff]
      %v219 = vld [vmem:[%s197 + $0x80] sm:$0xff]
      %v220 = vld [vmem:[%s197 + $0x90] sm:$0xff]
      %v221 = vld [vmem:[%s197 + $0x98] sm:$0xff]
      %v222 = vld [vmem:[%s197 + $0xa8] sm:$0xff]
      %v223 = vld [vmem:[%s197 + $0xb0] sm:$0xff]
      %v224 = vld [vmem:[%s1] sm:$0xff]
      %v225 = vld [vmem:[%s1 + $0x8] sm:$0xff]
      %v226 = vld [vmem:[%s197 + $0x1] sm:$0xff]
      %v227 = vld [vmem:[%s197 + $0x9] sm:$0xff]
      %v228 = vld [vmem:[%s197 + $0x19] sm:$0xff]
      %v229 = vld [vmem:[%s197 + $0x21] sm:$0xff]
      %v230 = vld [vmem:[%s197 + $0x31] sm:$0xff]
      %v231 = vld [vmem:[%s197 + $0x39] sm:$0xff]
      %v232 = vld [vmem:[%s197 + $0x49] sm:$0xff]
      %v233 = vld [vmem:[%s197 + $0x51] sm:$0xff]
      %v234 = vld [vmem:[%s197 + $0x61] sm:$0xff]
      %v235 = vld [vmem:[%s197 + $0x69] sm:$0xff]
      %v236 = vld [vmem:[%s197 + $0x79] sm:$0xff]
      %v237 = vld [vmem:[%s197 + $0x81] sm:$0xff]
      %v238 = vld [vmem:[%s197 + $0x91] sm:$0xff]
      %v239 = vld [vmem:[%s197 + $0x99] sm:$0xff]
      %v240 = vld [vmem:[%s197 + $0xa9] sm:$0xff]
      %v241 = vld [vmem:[%s197 + $0xb1] sm:$0xff]
      %s242 = scalar_lea.vmem %s1, 16
      %v243 = vld [vmem:[%s242] sm:$0xff]
      %v244 = vld [vmem:[%s242 + $0x8] sm:$0xff]
      %vm245 = vcmask 130048
      %v247 = vsel %vm245, %v226, 0
      %v250 = vsel %vm245, %v227, 0
      %v253 = vsel %vm245, %v228, 0
      %v256 = vsel %vm245, %v229, 0
      %v259 = vsel %vm245, %v230, 0
      %v262 = vsel %vm245, %v231, 0
      %v265 = vsel %vm245, %v232, 0
      %v268 = vsel %vm245, %v233, 0
      %v271 = vsel %vm245, %v234, 0
      %v274 = vsel %vm245, %v235, 0
      %v277 = vsel %vm245, %v236, 0
      %v280 = vsel %vm245, %v237, 0
      %v283 = vsel %vm245, %v238, 0
      %v286 = vsel %vm245, %v239, 0
      %v289 = vsel %vm245, %v240, 0
      %v292 = vsel %vm245, %v241, 0
      %294 = vmatprep.subr.mxu0 0.0
      %295 = vmatpush1.msra.mxu0 0.0
      %296 = vmatprep.subr.mxu0 0.0
      %297 = vmatpush1.msra.mxu0 0.0
      %298 = vmatprep.subr.mxu0 0.0
      %299 = vmatpush1.msra.mxu0 0.0
      %300 = vmatprep.subr.mxu0 0.0
      %301 = vmatpush1.msra.mxu0 0.0
      %302 = vmatprep.subr.mxu0 0.0
      %303 = vmatpush1.msra.mxu0 0.0
      %304 = vmatprep.subr.mxu0 0.0
      %305 = vmatpush1.msra.mxu0 0.0
      %306 = vmatprep.subr.mxu0 0.0
      %307 = vmatpush1.msra.mxu0 0.0
      %308 = vmatprep.subr.mxu0 0.0
      %309 = vmatpush1.msra.mxu0 0.0
      %310 = vmatprep.subr.mxu0 0.0
      %311 = vmatpush1.msra.mxu0 0.0
      %312 = vmatprep.subr.mxu0 0.0
      %313 = vmatpush1.msra.mxu0 0.0
      %314 = vmatprep.subr.mxu0 0.0
      %315 = vmatpush1.msra.mxu0 0.0
      %316 = vmatprep.subr.mxu0 0.0
      %317 = vmatpush1.msra.mxu0 0.0
      %318 = vmatprep.subr.mxu0 0.0
      %319 = vmatpush1.msra.mxu0 0.0
      %320 = vmatprep.subr.mxu0 0.0
      %321 = vmatpush1.msra.mxu0 0.0
      %322 = vmatprep.subr.mxu0 0.0
      %323 = vmatpush1.msra.mxu0 %v244
      %324 = vmatprep.subr.mxu0 0.0
      %325 = vmatpush1.msra.mxu0 %v243
      %326 = vmatprep.subr.mxu0 0.0
      %327 = vmatpush2.msra.mxu0 0.0
      %328 = vmatprep.subr.mxu0 0.0
      %329 = vmatpush2.msra.mxu0 0.0
      %330 = vmatprep.subr.mxu0 0.0
      %331 = vmatpush2.msra.mxu0 0.0
      %332 = vmatprep.subr.mxu0 0.0
      %333 = vmatpush2.msra.mxu0 0.0
      %334 = vmatprep.subr.mxu0 0.0
      %335 = vmatpush2.msra.mxu0 0.0
      %336 = vmatprep.subr.mxu0 0.0
      %337 = vmatpush2.msra.mxu0 0.0
      %338 = vmatprep.subr.mxu0 0.0
      %339 = vmatpush2.msra.mxu0 0.0
      %340 = vmatprep.subr.mxu0 0.0
      %341 = vmatpush2.msra.mxu0 0.0
      %342 = vmatprep.subr.mxu0 0.0
      %343 = vmatpush2.msra.mxu0 0.0
      %344 = vmatprep.subr.mxu0 0.0
      %345 = vmatpush2.msra.mxu0 0.0
      %346 = vmatprep.subr.mxu0 0.0
      %347 = vmatpush2.msra.mxu0 0.0
      %348 = vmatprep.subr.mxu0 0.0
      %349 = vmatpush2.msra.mxu0 0.0
      %350 = vmatprep.subr.mxu0 0.0
      %351 = vmatpush2.msra.mxu0 0.0
      %352 = vmatprep.subr.mxu0 0.0
      %353 = vmatpush2.msra.mxu0 0.0
      %354 = vmatprep.subr.mxu0 0.0
      %355 = vmatpush2.msra.mxu0 0.0
      %356 = vmatprep.subr.mxu0 0.0
      %357 = vmatpush2.msra.mxu0 0.0
      %358 = vmatprep.mubr.f32.mxu0 0.0
      %359 = vmatmul.mubr.f32.gmra.mxu0 %v247
      %v360 = vpop.f32.mrf.mxu0
      %v361 = vadd.f32 0.0, %v360
      %v362 = vpop.f32.mrf.mxu0
      %363 = vmatprep.mubr.f32.mxu0 0.0
      %364 = vmatmul.mubr.f32.gmra.mxu0 %v250
      %v365 = vpop.f32.mrf.mxu0
      %v366 = vadd.f32 0.0, %v365
      %v367 = vpop.f32.mrf.mxu0
      %368 = vmatprep.mubr.f32.mxu0 0.0
      %369 = vmatmul.mubr.f32.gmra.mxu0 %v253
      %v370 = vpop.f32.mrf.mxu0
      %v371 = vadd.f32 0.0, %v370
      %v372 = vpop.f32.mrf.mxu0
      %373 = vmatprep.mubr.f32.mxu0 0.0
      %374 = vmatmul.mubr.f32.gmra.mxu0 %v256
      %v375 = vpop.f32.mrf.mxu0
      %v376 = vadd.f32 0.0, %v375
      %v377 = vpop.f32.mrf.mxu0
      %378 = vmatprep.mubr.f32.mxu0 0.0
      %379 = vmatmul.mubr.f32.gmra.mxu0 %v259
      %v380 = vpop.f32.mrf.mxu0
      %v381 = vadd.f32 0.0, %v380
      %v382 = vpop.f32.mrf.mxu0
      %383 = vmatprep.mubr.f32.mxu0 0.0
      %384 = vmatmul.mubr.f32.gmra.mxu0 %v262
      %v385 = vpop.f32.mrf.mxu0
      %v386 = vadd.f32 0.0, %v385
      %v387 = vpop.f32.mrf.mxu0
      %388 = vmatprep.mubr.f32.mxu0 0.0
      %389 = vmatmul.mubr.f32.gmra.mxu0 %v265
      %v390 = vpop.f32.mrf.mxu0
      %v391 = vadd.f32 0.0, %v390
      %v392 = vpop.f32.mrf.mxu0
      %393 = vmatprep.mubr.f32.mxu0 0.0
      %394 = vmatmul.mubr.f32.gmra.mxu0 %v268
      %v395 = vpop.f32.mrf.mxu0
      %v396 = vadd.f32 0.0, %v395
      %v397 = vpop.f32.mrf.mxu0
      %398 = vmatprep.mubr.f32.mxu0 0.0
      %399 = vmatmul.mubr.f32.gmra.mxu0 %v271
      %v400 = vpop.f32.mrf.mxu0
      %v401 = vadd.f32 0.0, %v400
      %v402 = vpop.f32.mrf.mxu0
      %403 = vmatprep.mubr.f32.mxu0 0.0
      %404 = vmatmul.mubr.f32.gmra.mxu0 %v274
      %v405 = vpop.f32.mrf.mxu0
      %v406 = vadd.f32 0.0, %v405
      %v407 = vpop.f32.mrf.mxu0
      %408 = vmatprep.mubr.f32.mxu0 0.0
      %409 = vmatmul.mubr.f32.gmra.mxu0 %v277
      %v410 = vpop.f32.mrf.mxu0
      %v411 = vadd.f32 0.0, %v410
      %v412 = vpop.f32.mrf.mxu0
      %413 = vmatprep.mubr.f32.mxu0 0.0
      %414 = vmatmul.mubr.f32.gmra.mxu0 %v280
      %v415 = vpop.f32.mrf.mxu0
      %v416 = vadd.f32 0.0, %v415
      %v417 = vpop.f32.mrf.mxu0
      %418 = vmatprep.mubr.f32.mxu0 0.0
      %419 = vmatmul.mubr.f32.gmra.mxu0 %v283
      %v420 = vpop.f32.mrf.mxu0
      %v421 = vadd.f32 0.0, %v420
      %v422 = vpop.f32.mrf.mxu0
      %423 = vmatprep.mubr.f32.mxu0 0.0
      %424 = vmatmul.mubr.f32.gmra.mxu0 %v286
      %v425 = vpop.f32.mrf.mxu0
      %v426 = vadd.f32 0.0, %v425
      %v427 = vpop.f32.mrf.mxu0
      %428 = vmatprep.mubr.f32.mxu0 0.0
      %429 = vmatmul.mubr.f32.gmra.mxu0 %v289
      %v430 = vpop.f32.mrf.mxu0
      %v431 = vadd.f32 0.0, %v430
      %v432 = vpop.f32.mrf.mxu0
      %433 = vmatprep.mubr.f32.mxu0 0.0
      %434 = vmatmul.mubr.f32.gmra.mxu0 %v292
      %v435 = vpop.f32.mrf.mxu0
      %v436 = vadd.f32 0.0, %v435
      %v437 = vpop.f32.mrf.mxu0
      %438 = vdwg.mxu0
      %v440 = vsel %vm245, %v208, 0
      %v443 = vsel %vm245, %v209, 0
      %v446 = vsel %vm245, %v210, 0
      %v449 = vsel %vm245, %v211, 0
      %v452 = vsel %vm245, %v212, 0
      %v455 = vsel %vm245, %v213, 0
      %v458 = vsel %vm245, %v214, 0
      %v461 = vsel %vm245, %v215, 0
      %v464 = vsel %vm245, %v216, 0
      %v467 = vsel %vm245, %v217, 0
      %v470 = vsel %vm245, %v218, 0
      %v473 = vsel %vm245, %v219, 0
      %v476 = vsel %vm245, %v220, 0
      %v479 = vsel %vm245, %v221, 0
      %v482 = vsel %vm245, %v222, 0
      %v485 = vsel %vm245, %v223, 0
      %487 = vmatprep.subr.mxu0 0.0
      %488 = vmatpush1.msra.mxu0 0.0
      %489 = vmatprep.subr.mxu0 0.0
      %490 = vmatpush1.msra.mxu0 0.0
      %491 = vmatprep.subr.mxu0 0.0
      %492 = vmatpush1.msra.mxu0 0.0
      %493 = vmatprep.subr.mxu0 0.0
      %494 = vmatpush1.msra.mxu0 0.0
      %495 = vmatprep.subr.mxu0 0.0
      %496 = vmatpush1.msra.mxu0 0.0
      %497 = vmatprep.subr.mxu0 0.0
      %498 = vmatpush1.msra.mxu0 0.0
      %499 = vmatprep.subr.mxu0 0.0
      %500 = vmatpush1.msra.mxu0 0.0
      %501 = vmatprep.subr.mxu0 0.0
      %502 = vmatpush1.msra.mxu0 0.0
      %503 = vmatprep.subr.mxu0 0.0
      %504 = vmatpush1.msra.mxu0 0.0
      %505 = vmatprep.subr.mxu0 0.0
      %506 = vmatpush1.msra.mxu0 0.0
      %507 = vmatprep.subr.mxu0 0.0
      %508 = vmatpush1.msra.mxu0 0.0
      %509 = vmatprep.subr.mxu0 0.0
      %510 = vmatpush1.msra.mxu0 0.0
      %511 = vmatprep.subr.mxu0 0.0
      %512 = vmatpush1.msra.mxu0 0.0
      %513 = vmatprep.subr.mxu0 0.0
      %514 = vmatpush1.msra.mxu0 0.0
      %515 = vmatprep.subr.mxu0 0.0
      %516 = vmatpush1.msra.mxu0 %v225
      %517 = vmatprep.subr.mxu0 0.0
      %518 = vmatpush1.msra.mxu0 %v224
      %519 = vmatprep.subr.mxu0 0.0
      %520 = vmatpush2.msra.mxu0 0.0
      %521 = vmatprep.subr.mxu0 0.0
      %522 = vmatpush2.msra.mxu0 0.0
      %523 = vmatprep.subr.mxu0 0.0
      %524 = vmatpush2.msra.mxu0 0.0
      %525 = vmatprep.subr.mxu0 0.0
      %526 = vmatpush2.msra.mxu0 0.0
      %527 = vmatprep.subr.mxu0 0.0
      %528 = vmatpush2.msra.mxu0 0.0
      %529 = vmatprep.subr.mxu0 0.0
      %530 = vmatpush2.msra.mxu0 0.0
      %531 = vmatprep.subr.mxu0 0.0
      %532 = vmatpush2.msra.mxu0 0.0
      %533 = vmatprep.subr.mxu0 0.0
      %534 = vmatpush2.msra.mxu0 0.0
      %535 = vmatprep.subr.mxu0 0.0
      %536 = vmatpush2.msra.mxu0 0.0
      %537 = vmatprep.subr.mxu0 0.0
      %538 = vmatpush2.msra.mxu0 0.0
      %539 = vmatprep.subr.mxu0 0.0
      %540 = vmatpush2.msra.mxu0 0.0
      %541 = vmatprep.subr.mxu0 0.0
      %542 = vmatpush2.msra.mxu0 0.0
      %543 = vmatprep.subr.mxu0 0.0
      %544 = vmatpush2.msra.mxu0 0.0
      %545 = vmatprep.subr.mxu0 0.0
      %546 = vmatpush2.msra.mxu0 0.0
      %547 = vmatprep.subr.mxu0 0.0
      %548 = vmatpush2.msra.mxu0 0.0
      %549 = vmatprep.subr.mxu0 0.0
      %550 = vmatpush2.msra.mxu0 0.0
      %551 = vmatprep.mubr.f32.mxu0 0.0
      %552 = vmatmul.mubr.f32.gmra.mxu0 %v440
      %v553 = vpop.f32.mrf.mxu0
      %v554 = vadd.f32 %v361, %v553
      %v555 = vpop.f32.mrf.mxu0
      %556 = vmatprep.mubr.f32.mxu0 0.0
      %557 = vmatmul.mubr.f32.gmra.mxu0 %v443
      %v558 = vpop.f32.mrf.mxu0
      %v559 = vadd.f32 %v366, %v558
      %v560 = vpop.f32.mrf.mxu0
      %561 = vmatprep.mubr.f32.mxu0 0.0
      %562 = vmatmul.mubr.f32.gmra.mxu0 %v446
      %v563 = vpop.f32.mrf.mxu0
      %v564 = vadd.f32 %v371, %v563
      %v565 = vpop.f32.mrf.mxu0
      %566 = vmatprep.mubr.f32.mxu0 0.0
      %567 = vmatmul.mubr.f32.gmra.mxu0 %v449
      %v568 = vpop.f32.mrf.mxu0
      %v569 = vadd.f32 %v376, %v568
      %v570 = vpop.f32.mrf.mxu0
      %571 = vmatprep.mubr.f32.mxu0 0.0
      %572 = vmatmul.mubr.f32.gmra.mxu0 %v452
      %v573 = vpop.f32.mrf.mxu0
      %v574 = vadd.f32 %v381, %v573
      %v575 = vpop.f32.mrf.mxu0
      %576 = vmatprep.mubr.f32.mxu0 0.0
      %577 = vmatmul.mubr.f32.gmra.mxu0 %v455
      %v578 = vpop.f32.mrf.mxu0
      %v579 = vadd.f32 %v386, %v578
      %v580 = vpop.f32.mrf.mxu0
      %581 = vmatprep.mubr.f32.mxu0 0.0
      %582 = vmatmul.mubr.f32.gmra.mxu0 %v458
      %v583 = vpop.f32.mrf.mxu0
      %v584 = vadd.f32 %v391, %v583
      %v585 = vpop.f32.mrf.mxu0
      %586 = vmatprep.mubr.f32.mxu0 0.0
      %587 = vmatmul.mubr.f32.gmra.mxu0 %v461
      %v588 = vpop.f32.mrf.mxu0
      %v589 = vadd.f32 %v396, %v588
      %v590 = vpop.f32.mrf.mxu0
      %591 = vmatprep.mubr.f32.mxu0 0.0
      %592 = vmatmul.mubr.f32.gmra.mxu0 %v464
      %v593 = vpop.f32.mrf.mxu0
      %v594 = vadd.f32 %v401, %v593
      %v595 = vpop.f32.mrf.mxu0
      %596 = vmatprep.mubr.f32.mxu0 0.0
      %597 = vmatmul.mubr.f32.gmra.mxu0 %v467
      %v598 = vpop.f32.mrf.mxu0
      %v599 = vadd.f32 %v406, %v598
      %v600 = vpop.f32.mrf.mxu0
      %601 = vmatprep.mubr.f32.mxu0 0.0
      %602 = vmatmul.mubr.f32.gmra.mxu0 %v470
      %v603 = vpop.f32.mrf.mxu0
      %v604 = vadd.f32 %v411, %v603
      %v605 = vpop.f32.mrf.mxu0
      %606 = vmatprep.mubr.f32.mxu0 0.0
      %607 = vmatmul.mubr.f32.gmra.mxu0 %v473
      %v608 = vpop.f32.mrf.mxu0
      %v609 = vadd.f32 %v416, %v608
      %v610 = vpop.f32.mrf.mxu0
      %611 = vmatprep.mubr.f32.mxu0 0.0
      %612 = vmatmul.mubr.f32.gmra.mxu0 %v476
      %v613 = vpop.f32.mrf.mxu0
      %v614 = vadd.f32 %v421, %v613
      %v615 = vpop.f32.mrf.mxu0
      %616 = vmatprep.mubr.f32.mxu0 0.0
      %617 = vmatmul.mubr.f32.gmra.mxu0 %v479
      %v618 = vpop.f32.mrf.mxu0
      %v619 = vadd.f32 %v426, %v618
      %v620 = vpop.f32.mrf.mxu0
      %621 = vmatprep.mubr.f32.mxu0 0.0
      %622 = vmatmul.mubr.f32.gmra.mxu0 %v482
      %v623 = vpop.f32.mrf.mxu0
      %v624 = vadd.f32 %v431, %v623
      %v625 = vpop.f32.mrf.mxu0
      %626 = vmatprep.mubr.f32.mxu0 0.0
      %627 = vmatmul.mubr.f32.gmra.mxu0 %v485
      %v628 = vpop.f32.mrf.mxu0
      %v629 = vadd.f32 %v436, %v628
      %v630 = vpop.f32.mrf.mxu0
      %631 = vdwg.mxu0
      %s632 = scalar_lea.vmem %s197, 24
      %v633 = vld [vmem:[%s632] sm:$0xff]
      %v634 = vld [vmem:[%s632 + $0x8] sm:$0xff]
      %v635 = vld [vmem:[%s632 + $0x18] sm:$0xff]
      %v636 = vld [vmem:[%s632 + $0x20] sm:$0xff]
      %v637 = vld [vmem:[%s632 + $0x30] sm:$0xff]
      %v638 = vld [vmem:[%s632 + $0x38] sm:$0xff]
      %v639 = vld [vmem:[%s632 + $0x48] sm:$0xff]
      %v640 = vld [vmem:[%s632 + $0x50] sm:$0xff]
      %v641 = vld [vmem:[%s632 + $0x60] sm:$0xff]
      %v642 = vld [vmem:[%s632 + $0x68] sm:$0xff]
      %v643 = vld [vmem:[%s632 + $0x78] sm:$0xff]
      %v644 = vld [vmem:[%s632 + $0x80] sm:$0xff]
      %v645 = vld [vmem:[%s632 + $0x90] sm:$0xff]
      %v646 = vld [vmem:[%s632 + $0x98] sm:$0xff]
      %v647 = vld [vmem:[%s632 + $0xa8] sm:$0xff]
      %v648 = vld [vmem:[%s632 + $0xb0] sm:$0xff]
      %s649 = scalar_lea.vmem %s1, 32
      %v650 = vld [vmem:[%s649] sm:$0xff]
      %v651 = vld [vmem:[%s649 + $0x8] sm:$0xff]
      %v653 = vsel %vm245, %v633, 0
      %v656 = vsel %vm245, %v634, 0
      %v659 = vsel %vm245, %v635, 0
      %v662 = vsel %vm245, %v636, 0
      %v665 = vsel %vm245, %v637, 0
      %v668 = vsel %vm245, %v638, 0
      %v671 = vsel %vm245, %v639, 0
      %v674 = vsel %vm245, %v640, 0
      %v677 = vsel %vm245, %v641, 0
      %v680 = vsel %vm245, %v642, 0
      %v683 = vsel %vm245, %v643, 0
      %v686 = vsel %vm245, %v644, 0
      %v689 = vsel %vm245, %v645, 0
      %v692 = vsel %vm245, %v646, 0
      %v695 = vsel %vm245, %v647, 0
      %v698 = vsel %vm245, %v648, 0
      %700 = vmatprep.subr.mxu0 0.0
      %701 = vmatpush1.msra.mxu0 0.0
      %702 = vmatprep.subr.mxu0 0.0
      %703 = vmatpush1.msra.mxu0 0.0
      %704 = vmatprep.subr.mxu0 0.0
      %705 = vmatpush1.msra.mxu0 0.0
      %706 = vmatprep.subr.mxu0 0.0
      %707 = vmatpush1.msra.mxu0 0.0
      %708 = vmatprep.subr.mxu0 0.0
      %709 = vmatpush1.msra.mxu0 0.0
      %710 = vmatprep.subr.mxu0 0.0
      %711 = vmatpush1.msra.mxu0 0.0
      %712 = vmatprep.subr.mxu0 0.0
      %713 = vmatpush1.msra.mxu0 0.0
      %714 = vmatprep.subr.mxu0 0.0
      %715 = vmatpush1.msra.mxu0 0.0
      %716 = vmatprep.subr.mxu0 0.0
      %717 = vmatpush1.msra.mxu0 0.0
      %718 = vmatprep.subr.mxu0 0.0
      %719 = vmatpush1.msra.mxu0 0.0
      %720 = vmatprep.subr.mxu0 0.0
      %721 = vmatpush1.msra.mxu0 0.0
      %722 = vmatprep.subr.mxu0 0.0
      %723 = vmatpush1.msra.mxu0 0.0
      %724 = vmatprep.subr.mxu0 0.0
      %725 = vmatpush1.msra.mxu0 0.0
      %726 = vmatprep.subr.mxu0 0.0
      %727 = vmatpush1.msra.mxu0 0.0
      %728 = vmatprep.subr.mxu0 0.0
      %729 = vmatpush1.msra.mxu0 %v651
      %730 = vmatprep.subr.mxu0 0.0
      %731 = vmatpush1.msra.mxu0 %v650
      %732 = vmatprep.subr.mxu0 0.0
      %733 = vmatpush2.msra.mxu0 0.0
      %734 = vmatprep.subr.mxu0 0.0
      %735 = vmatpush2.msra.mxu0 0.0
      %736 = vmatprep.subr.mxu0 0.0
      %737 = vmatpush2.msra.mxu0 0.0
      %738 = vmatprep.subr.mxu0 0.0
      %739 = vmatpush2.msra.mxu0 0.0
      %740 = vmatprep.subr.mxu0 0.0
      %741 = vmatpush2.msra.mxu0 0.0
      %742 = vmatprep.subr.mxu0 0.0
      %743 = vmatpush2.msra.mxu0 0.0
      %744 = vmatprep.subr.mxu0 0.0
      %745 = vmatpush2.msra.mxu0 0.0
      %746 = vmatprep.subr.mxu0 0.0
      %747 = vmatpush2.msra.mxu0 0.0
      %748 = vmatprep.subr.mxu0 0.0
      %749 = vmatpush2.msra.mxu0 0.0
      %750 = vmatprep.subr.mxu0 0.0
      %751 = vmatpush2.msra.mxu0 0.0
      %752 = vmatprep.subr.mxu0 0.0
      %753 = vmatpush2.msra.mxu0 0.0
      %754 = vmatprep.subr.mxu0 0.0
      %755 = vmatpush2.msra.mxu0 0.0
      %756 = vmatprep.subr.mxu0 0.0
      %757 = vmatpush2.msra.mxu0 0.0
      %758 = vmatprep.subr.mxu0 0.0
      %759 = vmatpush2.msra.mxu0 0.0
      %760 = vmatprep.subr.mxu0 0.0
      %761 = vmatpush2.msra.mxu0 0.0
      %762 = vmatprep.subr.mxu0 0.0
      %763 = vmatpush2.msra.mxu0 0.0
      %764 = vmatprep.mubr.f32.mxu0 0.0
      %765 = vmatmul.mubr.f32.gmra.mxu0 %v653
      %v766 = vpop.f32.mrf.mxu0
      %v767 = vadd.f32 0.0, %v766
      %v768 = vpop.f32.mrf.mxu0
      %769 = vmatprep.mubr.f32.mxu0 0.0
      %770 = vmatmul.mubr.f32.gmra.mxu0 %v656
      %v771 = vpop.f32.mrf.mxu0
      %v772 = vadd.f32 0.0, %v771
      %v773 = vpop.f32.mrf.mxu0
      %774 = vmatprep.mubr.f32.mxu0 0.0
      %775 = vmatmul.mubr.f32.gmra.mxu0 %v659
      %v776 = vpop.f32.mrf.mxu0
      %v777 = vadd.f32 0.0, %v776
      %v778 = vpop.f32.mrf.mxu0
      %779 = vmatprep.mubr.f32.mxu0 0.0
      %780 = vmatmul.mubr.f32.gmra.mxu0 %v662
      %v781 = vpop.f32.mrf.mxu0
      %v782 = vadd.f32 0.0, %v781
      %v783 = vpop.f32.mrf.mxu0
      %784 = vmatprep.mubr.f32.mxu0 0.0
      %785 = vmatmul.mubr.f32.gmra.mxu0 %v665
      %v786 = vpop.f32.mrf.mxu0
      %v787 = vadd.f32 0.0, %v786
      %v788 = vpop.f32.mrf.mxu0
      %789 = vmatprep.mubr.f32.mxu0 0.0
      %790 = vmatmul.mubr.f32.gmra.mxu0 %v668
      %v791 = vpop.f32.mrf.mxu0
      %v792 = vadd.f32 0.0, %v791
      %v793 = vpop.f32.mrf.mxu0
      %794 = vmatprep.mubr.f32.mxu0 0.0
      %795 = vmatmul.mubr.f32.gmra.mxu0 %v671
      %v796 = vpop.f32.mrf.mxu0
      %v797 = vadd.f32 0.0, %v796
      %v798 = vpop.f32.mrf.mxu0
      %799 = vmatprep.mubr.f32.mxu0 0.0
      %800 = vmatmul.mubr.f32.gmra.mxu0 %v674
      %v801 = vpop.f32.mrf.mxu0
      %v802 = vadd.f32 0.0, %v801
      %v803 = vpop.f32.mrf.mxu0
      %804 = vmatprep.mubr.f32.mxu0 0.0
      %805 = vmatmul.mubr.f32.gmra.mxu0 %v677
      %v806 = vpop.f32.mrf.mxu0
      %v807 = vadd.f32 0.0, %v806
      %v808 = vpop.f32.mrf.mxu0
      %809 = vmatprep.mubr.f32.mxu0 0.0
      %810 = vmatmul.mubr.f32.gmra.mxu0 %v680
      %v811 = vpop.f32.mrf.mxu0
      %v812 = vadd.f32 0.0, %v811
      %v813 = vpop.f32.mrf.mxu0
      %814 = vmatprep.mubr.f32.mxu0 0.0
      %815 = vmatmul.mubr.f32.gmra.mxu0 %v683
      %v816 = vpop.f32.mrf.mxu0
      %v817 = vadd.f32 0.0, %v816
      %v818 = vpop.f32.mrf.mxu0
      %819 = vmatprep.mubr.f32.mxu0 0.0
      %820 = vmatmul.mubr.f32.gmra.mxu0 %v686
      %v821 = vpop.f32.mrf.mxu0
      %v822 = vadd.f32 0.0, %v821
      %v823 = vpop.f32.mrf.mxu0
      %824 = vmatprep.mubr.f32.mxu0 0.0
      %825 = vmatmul.mubr.f32.gmra.mxu0 %v689
      %v826 = vpop.f32.mrf.mxu0
      %v827 = vadd.f32 0.0, %v826
      %v828 = vpop.f32.mrf.mxu0
      %829 = vmatprep.mubr.f32.mxu0 0.0
      %830 = vmatmul.mubr.f32.gmra.mxu0 %v692
      %v831 = vpop.f32.mrf.mxu0
      %v832 = vadd.f32 0.0, %v831
      %v833 = vpop.f32.mrf.mxu0
      %834 = vmatprep.mubr.f32.mxu0 0.0
      %835 = vmatmul.mubr.f32.gmra.mxu0 %v695
      %v836 = vpop.f32.mrf.mxu0
      %v837 = vadd.f32 0.0, %v836
      %v838 = vpop.f32.mrf.mxu0
      %839 = vmatprep.mubr.f32.mxu0 0.0
      %840 = vmatmul.mubr.f32.gmra.mxu0 %v698
      %v841 = vpop.f32.mrf.mxu0
      %v842 = vadd.f32 0.0, %v841
      %v843 = vpop.f32.mrf.mxu0
      %844 = vdwg.mxu0
      %v845 = vadd.f32 %v554, %v767
      %v846 = vadd.f32 %v559, %v772
      %v847 = vadd.f32 %v564, %v777
      %v848 = vadd.f32 %v569, %v782
      %v849 = vadd.f32 %v574, %v787
      %v850 = vadd.f32 %v579, %v792
      %v851 = vadd.f32 %v584, %v797
      %v852 = vadd.f32 %v589, %v802
      %v853 = vadd.f32 %v594, %v807
      %v854 = vadd.f32 %v599, %v812
      %v855 = vadd.f32 %v604, %v817
      %v856 = vadd.f32 %v609, %v822
      %v857 = vadd.f32 %v614, %v827
      %v858 = vadd.f32 %v619, %v832
      %v859 = vadd.f32 %v624, %v837
      %v860 = vadd.f32 %v629, %v842
      %v861 = vld [vmem:[%s632 + $0x1] sm:$0xff]
      %v862 = vld [vmem:[%s632 + $0x9] sm:$0xff]
      %v863 = vld [vmem:[%s632 + $0x19] sm:$0xff]
      %v864 = vld [vmem:[%s632 + $0x21] sm:$0xff]
      %v865 = vld [vmem:[%s632 + $0x31] sm:$0xff]
      %v866 = vld [vmem:[%s632 + $0x39] sm:$0xff]
      %v867 = vld [vmem:[%s632 + $0x49] sm:$0xff]
      %v868 = vld [vmem:[%s632 + $0x51] sm:$0xff]
      %v869 = vld [vmem:[%s632 + $0x61] sm:$0xff]
      %v870 = vld [vmem:[%s632 + $0x69] sm:$0xff]
      %v871 = vld [vmem:[%s632 + $0x79] sm:$0xff]
      %v872 = vld [vmem:[%s632 + $0x81] sm:$0xff]
      %v873 = vld [vmem:[%s632 + $0x91] sm:$0xff]
      %v874 = vld [vmem:[%s632 + $0x99] sm:$0xff]
      %v875 = vld [vmem:[%s632 + $0xa9] sm:$0xff]
      %v876 = vld [vmem:[%s632 + $0xb1] sm:$0xff]
      %s877 = scalar_lea.vmem %s1, 48
      %v878 = vld [vmem:[%s877] sm:$0xff]
      %v879 = vld [vmem:[%s877 + $0x8] sm:$0xff]
      %v881 = vsel %vm245, %v861, 0
      %v884 = vsel %vm245, %v862, 0
      %v887 = vsel %vm245, %v863, 0
      %v890 = vsel %vm245, %v864, 0
      %v893 = vsel %vm245, %v865, 0
      %v896 = vsel %vm245, %v866, 0
      %v899 = vsel %vm245, %v867, 0
      %v902 = vsel %vm245, %v868, 0
      %v905 = vsel %vm245, %v869, 0
      %v908 = vsel %vm245, %v870, 0
      %v911 = vsel %vm245, %v871, 0
      %v914 = vsel %vm245, %v872, 0
      %v917 = vsel %vm245, %v873, 0
      %v920 = vsel %vm245, %v874, 0
      %v923 = vsel %vm245, %v875, 0
      %v926 = vsel %vm245, %v876, 0
      %928 = vmatprep.subr.mxu0 0.0
      %929 = vmatpush1.msra.mxu0 0.0
      %930 = vmatprep.subr.mxu0 0.0
      %931 = vmatpush1.msra.mxu0 0.0
      %932 = vmatprep.subr.mxu0 0.0
      %933 = vmatpush1.msra.mxu0 0.0
      %934 = vmatprep.subr.mxu0 0.0
      %935 = vmatpush1.msra.mxu0 0.0
      %936 = vmatprep.subr.mxu0 0.0
      %937 = vmatpush1.msra.mxu0 0.0
      %938 = vmatprep.subr.mxu0 0.0
      %939 = vmatpush1.msra.mxu0 0.0
      %940 = vmatprep.subr.mxu0 0.0
      %941 = vmatpush1.msra.mxu0 0.0
      %942 = vmatprep.subr.mxu0 0.0
      %943 = vmatpush1.msra.mxu0 0.0
      %944 = vmatprep.subr.mxu0 0.0
      %945 = vmatpush1.msra.mxu0 0.0
      %946 = vmatprep.subr.mxu0 0.0
      %947 = vmatpush1.msra.mxu0 0.0
      %948 = vmatprep.subr.mxu0 0.0
      %949 = vmatpush1.msra.mxu0 0.0
      %950 = vmatprep.subr.mxu0 0.0
      %951 = vmatpush1.msra.mxu0 0.0
      %952 = vmatprep.subr.mxu0 0.0
      %953 = vmatpush1.msra.mxu0 0.0
      %954 = vmatprep.subr.mxu0 0.0
      %955 = vmatpush1.msra.mxu0 0.0
      %956 = vmatprep.subr.mxu0 0.0
      %957 = vmatpush1.msra.mxu0 %v879
      %958 = vmatprep.subr.mxu0 0.0
      %959 = vmatpush1.msra.mxu0 %v878
      %960 = vmatprep.subr.mxu0 0.0
      %961 = vmatpush2.msra.mxu0 0.0
      %962 = vmatprep.subr.mxu0 0.0
      %963 = vmatpush2.msra.mxu0 0.0
      %964 = vmatprep.subr.mxu0 0.0
      %965 = vmatpush2.msra.mxu0 0.0
      %966 = vmatprep.subr.mxu0 0.0
      %967 = vmatpush2.msra.mxu0 0.0
      %968 = vmatprep.subr.mxu0 0.0
      %969 = vmatpush2.msra.mxu0 0.0
      %970 = vmatprep.subr.mxu0 0.0
      %971 = vmatpush2.msra.mxu0 0.0
      %972 = vmatprep.subr.mxu0 0.0
      %973 = vmatpush2.msra.mxu0 0.0
      %974 = vmatprep.subr.mxu0 0.0
      %975 = vmatpush2.msra.mxu0 0.0
      %976 = vmatprep.subr.mxu0 0.0
      %977 = vmatpush2.msra.mxu0 0.0
      %978 = vmatprep.subr.mxu0 0.0
      %979 = vmatpush2.msra.mxu0 0.0
      %980 = vmatprep.subr.mxu0 0.0
      %981 = vmatpush2.msra.mxu0 0.0
      %982 = vmatprep.subr.mxu0 0.0
      %983 = vmatpush2.msra.mxu0 0.0
      %984 = vmatprep.subr.mxu0 0.0
      %985 = vmatpush2.msra.mxu0 0.0
      %986 = vmatprep.subr.mxu0 0.0
      %987 = vmatpush2.msra.mxu0 0.0
      %988 = vmatprep.subr.mxu0 0.0
      %989 = vmatpush2.msra.mxu0 0.0
      %990 = vmatprep.subr.mxu0 0.0
      %991 = vmatpush2.msra.mxu0 0.0
      %992 = vmatprep.mubr.f32.mxu0 0.0
      %993 = vmatmul.mubr.f32.gmra.mxu0 %v881
      %v994 = vpop.f32.mrf.mxu0
      %v995 = vadd.f32 0.0, %v994
      %v996 = vpop.f32.mrf.mxu0
      %997 = vmatprep.mubr.f32.mxu0 0.0
      %998 = vmatmul.mubr.f32.gmra.mxu0 %v884
      %v999 = vpop.f32.mrf.mxu0
      %v1000 = vadd.f32 0.0, %v999
      %v1001 = vpop.f32.mrf.mxu0
      %1002 = vmatprep.mubr.f32.mxu0 0.0
      %1003 = vmatmul.mubr.f32.gmra.mxu0 %v887
      %v1004 = vpop.f32.mrf.mxu0
      %v1005 = vadd.f32 0.0, %v1004
      %v1006 = vpop.f32.mrf.mxu0
      %1007 = vmatprep.mubr.f32.mxu0 0.0
      %1008 = vmatmul.mubr.f32.gmra.mxu0 %v890
      %v1009 = vpop.f32.mrf.mxu0
      %v1010 = vadd.f32 0.0, %v1009
      %v1011 = vpop.f32.mrf.mxu0
      %1012 = vmatprep.mubr.f32.mxu0 0.0
      %1013 = vmatmul.mubr.f32.gmra.mxu0 %v893
      %v1014 = vpop.f32.mrf.mxu0
      %v1015 = vadd.f32 0.0, %v1014
      %v1016 = vpop.f32.mrf.mxu0
      %1017 = vmatprep.mubr.f32.mxu0 0.0
      %1018 = vmatmul.mubr.f32.gmra.mxu0 %v896
      %v1019 = vpop.f32.mrf.mxu0
      %v1020 = vadd.f32 0.0, %v1019
      %v1021 = vpop.f32.mrf.mxu0
      %1022 = vmatprep.mubr.f32.mxu0 0.0
      %1023 = vmatmul.mubr.f32.gmra.mxu0 %v899
      %v1024 = vpop.f32.mrf.mxu0
      %v1025 = vadd.f32 0.0, %v1024
      %v1026 = vpop.f32.mrf.mxu0
      %1027 = vmatprep.mubr.f32.mxu0 0.0
      %1028 = vmatmul.mubr.f32.gmra.mxu0 %v902
      %v1029 = vpop.f32.mrf.mxu0
      %v1030 = vadd.f32 0.0, %v1029
      %v1031 = vpop.f32.mrf.mxu0
      %1032 = vmatprep.mubr.f32.mxu0 0.0
      %1033 = vmatmul.mubr.f32.gmra.mxu0 %v905
      %v1034 = vpop.f32.mrf.mxu0
      %v1035 = vadd.f32 0.0, %v1034
      %v1036 = vpop.f32.mrf.mxu0
      %1037 = vmatprep.mubr.f32.mxu0 0.0
      %1038 = vmatmul.mubr.f32.gmra.mxu0 %v908
      %v1039 = vpop.f32.mrf.mxu0
      %v1040 = vadd.f32 0.0, %v1039
      %v1041 = vpop.f32.mrf.mxu0
      %1042 = vmatprep.mubr.f32.mxu0 0.0
      %1043 = vmatmul.mubr.f32.gmra.mxu0 %v911
      %v1044 = vpop.f32.mrf.mxu0
      %v1045 = vadd.f32 0.0, %v1044
      %v1046 = vpop.f32.mrf.mxu0
      %1047 = vmatprep.mubr.f32.mxu0 0.0
      %1048 = vmatmul.mubr.f32.gmra.mxu0 %v914
      %v1049 = vpop.f32.mrf.mxu0
      %v1050 = vadd.f32 0.0, %v1049
      %v1051 = vpop.f32.mrf.mxu0
      %1052 = vmatprep.mubr.f32.mxu0 0.0
      %1053 = vmatmul.mubr.f32.gmra.mxu0 %v917
      %v1054 = vpop.f32.mrf.mxu0
      %v1055 = vadd.f32 0.0, %v1054
      %v1056 = vpop.f32.mrf.mxu0
      %1057 = vmatprep.mubr.f32.mxu0 0.0
      %1058 = vmatmul.mubr.f32.gmra.mxu0 %v920
      %v1059 = vpop.f32.mrf.mxu0
      %v1060 = vadd.f32 0.0, %v1059
      %v1061 = vpop.f32.mrf.mxu0
      %1062 = vmatprep.mubr.f32.mxu0 0.0
      %1063 = vmatmul.mubr.f32.gmra.mxu0 %v923
      %v1064 = vpop.f32.mrf.mxu0
      %v1065 = vadd.f32 0.0, %v1064
      %v1066 = vpop.f32.mrf.mxu0
      %1067 = vmatprep.mubr.f32.mxu0 0.0
      %1068 = vmatmul.mubr.f32.gmra.mxu0 %v926
      %v1069 = vpop.f32.mrf.mxu0
      %v1070 = vadd.f32 0.0, %v1069
      %v1071 = vpop.f32.mrf.mxu0
      %1072 = vdwg.mxu0
      %v1073 = vadd.f32 %v845, %v995
      %v1074 = vadd.f32 %v846, %v1000
      %v1075 = vadd.f32 %v847, %v1005
      %v1076 = vadd.f32 %v848, %v1010
      %v1077 = vadd.f32 %v849, %v1015
      %v1078 = vadd.f32 %v850, %v1020
      %v1079 = vadd.f32 %v851, %v1025
      %v1080 = vadd.f32 %v852, %v1030
      %v1081 = vadd.f32 %v853, %v1035
      %v1082 = vadd.f32 %v854, %v1040
      %v1083 = vadd.f32 %v855, %v1045
      %v1084 = vadd.f32 %v856, %v1050
      %v1085 = vadd.f32 %v857, %v1055
      %v1086 = vadd.f32 %v858, %v1060
      %v1087 = vadd.f32 %v859, %v1065
      %v1088 = vadd.f32 %v860, %v1070
      %v1089 = vld [vmem:[%s2] sm:$0x1]
      %v1091 = vlaneseq
      %v1092 = vshrl.u32 %v1091, 7
      %v1093 = vsub.s32 0, %v1092
      %v1094 = vrot.slane %v1089, %v1093
      %v1096 = vadd.f32 %v1073, %v1094
      %v1097 = vadd.f32 %v1074, %v1094
      %v1098 = vadd.f32 %v1075, %v1094
      %v1099 = vadd.f32 %v1076, %v1094
      %v1100 = vadd.f32 %v1077, %v1094
      %v1101 = vadd.f32 %v1078, %v1094
      %v1102 = vadd.f32 %v1079, %v1094
      %v1103 = vadd.f32 %v1080, %v1094
      %v1104 = vadd.f32 %v1081, %v1094
      %v1105 = vadd.f32 %v1082, %v1094
      %v1106 = vadd.f32 %v1083, %v1094
      %v1107 = vadd.f32 %v1084, %v1094
      %v1108 = vadd.f32 %v1085, %v1094
      %v1109 = vadd.f32 %v1086, %v1094
      %v1110 = vadd.f32 %v1087, %v1094
      %v1111 = vadd.f32 %v1088, %v1094
      %vm1112 = vcmp.ge.f32.partialorder %v1096, 0.0
      %vm1113 = vcmp.ge.f32.partialorder %v1097, 0.0
      %vm1114 = vcmp.ge.f32.partialorder %v1098, 0.0
      %vm1115 = vcmp.ge.f32.partialorder %v1099, 0.0
      %vm1116 = vcmp.ge.f32.partialorder %v1100, 0.0
      %vm1117 = vcmp.ge.f32.partialorder %v1101, 0.0
      %vm1118 = vcmp.ge.f32.partialorder %v1102, 0.0
      %vm1119 = vcmp.ge.f32.partialorder %v1103, 0.0
      %vm1120 = vcmp.ge.f32.partialorder %v1104, 0.0
      %vm1121 = vcmp.ge.f32.partialorder %v1105, 0.0
      %vm1122 = vcmp.ge.f32.partialorder %v1106, 0.0
      %vm1123 = vcmp.ge.f32.partialorder %v1107, 0.0
      %vm1124 = vcmp.ge.f32.partialorder %v1108, 0.0
      %vm1125 = vcmp.ge.f32.partialorder %v1109, 0.0
      %vm1126 = vcmp.ge.f32.partialorder %v1110, 0.0
      %vm1127 = vcmp.ge.f32.partialorder %v1111, 0.0
      %v1128 = vmul.f32 %v1096, 0.2
      %v1129 = vmul.f32 %v1097, 0.2
      %v1130 = vmul.f32 %v1098, 0.2
      %v1131 = vmul.f32 %v1099, 0.2
      %v1132 = vmul.f32 %v1100, 0.2
      %v1133 = vmul.f32 %v1101, 0.2
      %v1134 = vmul.f32 %v1102, 0.2
      %v1135 = vmul.f32 %v1103, 0.2
      %v1136 = vmul.f32 %v1104, 0.2
      %v1137 = vmul.f32 %v1105, 0.2
      %v1138 = vmul.f32 %v1106, 0.2
      %v1139 = vmul.f32 %v1107, 0.2
      %v1140 = vmul.f32 %v1108, 0.2
      %v1141 = vmul.f32 %v1109, 0.2
      %v1142 = vmul.f32 %v1110, 0.2
      %v1143 = vmul.f32 %v1111, 0.2
      %v1144 = vsel %vm1112, %v1096, %v1128
      %v1145 = vsel %vm1113, %v1097, %v1129
      %v1146 = vsel %vm1114, %v1098, %v1130
      %v1147 = vsel %vm1115, %v1099, %v1131
      %v1148 = vsel %vm1116, %v1100, %v1132
      %v1149 = vsel %vm1117, %v1101, %v1133
      %v1150 = vsel %vm1118, %v1102, %v1134
      %v1151 = vsel %vm1119, %v1103, %v1135
      %v1152 = vsel %vm1120, %v1104, %v1136
      %v1153 = vsel %vm1121, %v1105, %v1137
      %v1154 = vsel %vm1122, %v1106, %v1138
      %v1155 = vsel %vm1123, %v1107, %v1139
      %v1156 = vsel %vm1124, %v1108, %v1140
      %v1157 = vsel %vm1125, %v1109, %v1141
      %v1158 = vsel %vm1126, %v1110, %v1142
      %v1159 = vsel %vm1127, %v1111, %v1143
      %vm1160 = vcmask 64512
      %1161 = vst.msk [vmem:[%s206] sm:$0xff] %vm1160, %v1144
      %1162 = vst.msk [vmem:[%s206 + $0x8] sm:$0xff] %vm1160, %v1145
      %1163 = vst.msk [vmem:[%s206 + $0x10] sm:$0xff] %vm1160, %v1146
      %1164 = vst.msk [vmem:[%s206 + $0x18] sm:$0xff] %vm1160, %v1147
      %1165 = vst.msk [vmem:[%s206 + $0x20] sm:$0xff] %vm1160, %v1148
      %1166 = vst.msk [vmem:[%s206 + $0x28] sm:$0xff] %vm1160, %v1149
      %1167 = vst.msk [vmem:[%s206 + $0x30] sm:$0xff] %vm1160, %v1150
      %1168 = vst.msk [vmem:[%s206 + $0x38] sm:$0xff] %vm1160, %v1151
      %1169 = vst.msk [vmem:[%s206 + $0x40] sm:$0xff] %vm1160, %v1152
      %1170 = vst.msk [vmem:[%s206 + $0x48] sm:$0xff] %vm1160, %v1153
      %1171 = vst.msk [vmem:[%s206 + $0x50] sm:$0xff] %vm1160, %v1154
      %1172 = vst.msk [vmem:[%s206 + $0x58] sm:$0xff] %vm1160, %v1155
      %1173 = vst.msk [vmem:[%s206 + $0x60] sm:$0xff] %vm1160, %v1156
      %1174 = vst.msk [vmem:[%s206 + $0x68] sm:$0xff] %vm1160, %v1157
      %1175 = vst.msk [vmem:[%s206 + $0x70] sm:$0xff] %vm1160, %v1158
      %1176 = vst.msk [vmem:[%s206 + $0x78] sm:$0xff] %vm1160, %v1159
      %s1177 = smul.u32 16, %s19
      %p1178 = scmp.lt.s32.totalorder %s18, 1
      %s1179 = scalar_select %p1178, %s18, 1
      %p1180 = scmp.lt.s32.totalorder %s1177, 31
      %s1181 = scalar_select %p1180, %s1177, 31
      %s1182 = smul.addr %s1179, 32
      %s1183 = sadd.s32 %s1181, %s1182
      %s1184 = smul.addr %s1183, 8
      %s1185 = scalar_lea.vmem %s3, %s1184
      // Predicated region
      $region33: #{light_fc_discriminator.5} parent=31 // pred_check
        %p1186 = pneg %p116
      $region34: #{light_fc_discriminator.5} parent=31 // pred_check_branch
        %1188 = sbr.rel (%p1186) target = $region36
      $region35: #{light_fc_discriminator.5} parent=31 // pred_region
        %s1189 = smul.u32 16, %s19
      $region36: #{light_fc_discriminator.5} parent=31 // pred_fallthru
        _
    $region32: #{light_fc_discriminator.5} parent=5 // pred_fallthru
      _
    %p1190 = scmp.le.s32.totalorder 2, %s9
    // Predicated region
    $region37: #{light_fc_discriminator.5} parent=5 // pred_check
      %p1191 = pneg %p1190
    $region38: #{light_fc_discriminator.5} parent=5 // pred_check_branch
      %1193 = sbr.rel (%p1191) target = $region40
    $region39: #{light_fc_discriminator.5} parent=5 // pred_region
      %s1194 = ssub.s32 %s9, 2
      // Predicated region
      $region41: #{light_fc_discriminator.5} parent=39 // pred_check
        %p1195 = pneg %p122
      $region42: #{light_fc_discriminator.5} parent=39 // pred_check_branch
        %1197 = sbr.rel (%p1195) target = $region44
      $region43: #{light_fc_discriminator.5} parent=39 // pred_region
        %s1198 = smul.u32 16, %s21
        %p1199 = scmp.lt.s32.totalorder %s20, 1
        %s1200 = scalar_select %p1199, %s20, 1
        %p1201 = scmp.lt.s32.totalorder %s1198, 31
        %s1202 = scalar_select %p1201, %s1198, 31
        %s1203 = smul.addr %s1200, 32
        %s1204 = sadd.s32 %s1202, %s1203
        %s1205 = smul.addr %s1204, 8
        %s1206 = scalar_lea.vmem %s3, %s1205
      $region44: #{light_fc_discriminator.5} parent=39 // pred_fallthru
        _
    $region40: #{light_fc_discriminator.5} parent=5 // pred_fallthru
      _
  $region6: #{light_fc_discriminator.5} parent=0 // loop_footer
    %s13 = sadd.s32 1, %s9
  $region7: #{light_fc_discriminator.5} parent=0 // loop_footer_branch
    %8 = sbr.rel target = $region3
  $region8: #{light_fc_discriminator.5} parent=0 // loop_exit
    _

// kernel: light_fc_discriminator.6
$region0: #{light_fc_discriminator.6}
  #allocation0 [shape = 'u32[]', space=smem, size = 0x4, offset = 0x4, fixed_abs, tag = 'smem constant byte address 0x4 - core index']
  #allocation1 [shape = 'u32[144,128]{1,0:T(1,128)}', space=vmem, size = 0x12000, scoped, tag = 'internal scratch']
  %s0 = inlined_call_operand.vmem [shape: f32[2,1,9,9,32], index: 0, kind: input, shape index: {}]
  %s1 = inlined_call_operand.vmem [shape: f32[4,32,16], index: 1, kind: input, shape index: {}]
  %s2 = inlined_call_operand.vmem [shape: f32[1,16], index: 2, kind: input, shape index: {}]
  %s3 = inlined_call_operand.vmem [shape: f32[2,64,16], index: 3, kind: output, shape index: {}]
  %s4 = sld [smem:[#allocation0]]
  $region45: #{light_fc_discriminator.6} parent=0
    _
  %s6 = ssub.s32 1, %s4
  %s7 = scalar_select 0, %s6, %s4
  loop: start=0, step=1, limit=4
  $region2: #{light_fc_discriminator.6} parent=0 // loop_pre_header
    _
  $region3: #{light_fc_discriminator.6} parent=0 // loop_header
    %s9 = sphi 0, %s13
    %p10 = scmp.ge.s32.totalorder %s9, 4
    %s16 = sphi 0, %s28
    %s17 = sphi 0, %s24
    %s18 = sphi 0, %s16
    %s19 = sphi 0, %s17
    %s20 = sphi 0, %s18
    %s21 = sphi 0, %s19
    %s33 = sphi 0, %s35
    %s36 = sphi 0, %s33
    %s37 = sphi 0, %s36
    %s53 = sphi 0, %s37
    %s57 = sphi 0, %s57
    %s59 = sphi 0, %s57
    %s60 = sphi 0, %s59
    %s74 = sphi 0, %s60
    %s78 = sphi 0, %s78
    %s80 = sphi 0, %s78
    %s81 = sphi 0, %s80
    %s95 = sphi 0, %s81
    %s103 = sphi 0, %s105
    %s106 = sphi 0, %s103
    %s107 = sphi 0, %s106
    %s123 = sphi 0, %s107
  $region4: #{light_fc_discriminator.6} parent=0 // loop_header_branch
    %12 = sbr.rel (%p10) target = $region8
  $region5: #{light_fc_discriminator.6} parent=0 // loop_body
    %s14 = ssub.s32 %s9, 1
    %s15 = ssub.s32 %s9, 2
    %s22 = sadd.s32 1, %s17
    %p23 = scmp.ge.s32.totalorder %s22, 1
    %s24 = scalar_select %p23, 0, %s22
    %s25 = sadd.s32 1, %s16
    %s26 = scalar_select %p23, %s25, %s16
    %p27 = scmp.ge.s32.totalorder %s26, 2
    %s28 = scalar_select %p27, 0, %s26
    %s29 = ssub.s32 %s16, %s28
    %s30 = ssub.s32 %s17, %s24
    %s31 = sor.u32 %s29, %s30
    %p32 = scmp.eq.s32.totalorder %s31, 0
    %s34 = sadd.s32 %s33, 1
    %s35 = scalar_select %p32, %s33, %s34
    %p38 = pneg %p32
    %p39 = scmp.eq.s32.totalorder %s9, 1
    %p40 = por %p38, %p39
    %p41 = scmp.ne.s32.totalorder %s33, %s36
    %p42 = scmp.eq.s32.totalorder %s9, 0
    %p43 = por %p41, %p42
    %p44 = scmp.ne.s32.totalorder %s33, %s36
    %p45 = scmp.eq.s32.totalorder %s14, 1
    %p46 = por %p44, %p45
    %p47 = scmp.ne.s32.totalorder %s36, %s37
    %p48 = scmp.eq.s32.totalorder %s14, 0
    %p49 = por %p47, %p48
    %p50 = scmp.ne.s32.totalorder %s36, %s37
    %p51 = scmp.eq.s32.totalorder %s15, 1
    %p52 = por %p50, %p51
    %p54 = scmp.ne.s32.totalorder %s37, %s53
    %p55 = scmp.eq.s32.totalorder %s15, 0
    %p56 = por %p54, %p55
    %s58 = sadd.s32 %s57, 1
    %p61 = scmp.eq.s32.totalorder %s9, 1
    %p62 = scmp.ne.s32.totalorder %s57, %s59
    %p63 = scmp.eq.s32.totalorder %s9, 0
    %p64 = por %p62, %p63
    %p65 = scmp.ne.s32.totalorder %s57, %s59
    %p66 = scmp.eq.s32.totalorder %s14, 1
    %p67 = por %p65, %p66
    %p68 = scmp.ne.s32.totalorder %s59, %s60
    %p69 = scmp.eq.s32.totalorder %s14, 0
    %p70 = por %p68, %p69
    %p71 = scmp.ne.s32.totalorder %s59, %s60
    %p72 = scmp.eq.s32.totalorder %s15, 1
    %p73 = por %p71, %p72
    %p75 = scmp.ne.s32.totalorder %s60, %s74
    %p76 = scmp.eq.s32.totalorder %s15, 0
    %p77 = por %p75, %p76
    %s79 = sadd.s32 %s78, 1
    %p82 = scmp.eq.s32.totalorder %s9, 1
    %p83 = scmp.ne.s32.totalorder %s78, %s80
    %p84 = scmp.eq.s32.totalorder %s9, 0
    %p85 = por %p83, %p84
    %p86 = scmp.ne.s32.totalorder %s78, %s80
    %p87 = scmp.eq.s32.totalorder %s14, 1
    %p88 = por %p86, %p87
    %p89 = scmp.ne.s32.totalorder %s80, %s81
    %p90 = scmp.eq.s32.totalorder %s14, 0
    %p91 = por %p89, %p90
    %p92 = scmp.ne.s32.totalorder %s80, %s81
    %p93 = scmp.eq.s32.totalorder %s15, 1
    %p94 = por %p92, %p93
    %p96 = scmp.ne.s32.totalorder %s81, %s95
    %p97 = scmp.eq.s32.totalorder %s15, 0
    %p98 = por %p96, %p97
    %s99 = ssub.s32 %s16, %s28
    %s100 = ssub.s32 %s17, %s24
    %s101 = sor.u32 %s99, %s100
    %p102 = scmp.eq.s32.totalorder %s101, 0
    %s104 = sadd.s32 %s103, 1
    %s105 = scalar_select %p102, %s103, %s104
    %p108 = pneg %p102
    %p109 = scmp.eq.s32.totalorder %s9, 1
    %p110 = por %p108, %p109
    %p111 = scmp.ne.s32.totalorder %s103, %s106
    %p112 = scmp.eq.s32.totalorder %s9, 0
    %p113 = por %p111, %p112
    %p114 = scmp.ne.s32.totalorder %s103, %s106
    %p115 = scmp.eq.s32.totalorder %s14, 1
    %p116 = por %p114, %p115
    %p117 = scmp.ne.s32.totalorder %s106, %s107
    %p118 = scmp.eq.s32.totalorder %s14, 0
    %p119 = por %p117, %p118
    %p120 = scmp.ne.s32.totalorder %s106, %s107
    %p121 = scmp.eq.s32.totalorder %s15, 1
    %p122 = por %p120, %p121
    %p124 = scmp.ne.s32.totalorder %s107, %s123
    %p125 = scmp.eq.s32.totalorder %s15, 0
    %p126 = por %p124, %p125
    %p127 = scmp.le.s32.totalorder 1, %s9
    %p128 = scmp.lt.s32.totalorder %s9, 3
    %p129 = pnand %p127, %p128
    %p130 = pneg %p129
    // Predicated region
    $region9: #{light_fc_discriminator.6} parent=5 // pred_check
      _
    $region10: #{light_fc_discriminator.6} parent=5 // pred_check_branch
      %132 = sbr.rel (%p129) target = $region12
    $region11: #{light_fc_discriminator.6} parent=5 // pred_region
      %s133 = ssub.s32 %s9, 1
      // Predicated region
      $region13: #{light_fc_discriminator.6} parent=11 // pred_check
        %p134 = pneg %p70
      $region14: #{light_fc_discriminator.6} parent=11 // pred_check_branch
        %136 = sbr.rel (%p134) target = $region16
      $region15: #{light_fc_discriminator.6} parent=11 // pred_region
        _
      $region16: #{light_fc_discriminator.6} parent=11 // pred_fallthru
        _
      // Predicated region
      $region17: #{light_fc_discriminator.6} parent=11 // pred_check
        %p137 = pneg %p91
      $region18: #{light_fc_discriminator.6} parent=11 // pred_check_branch
        %139 = sbr.rel (%p137) target = $region20
      $region19: #{light_fc_discriminator.6} parent=11 // pred_region
        _
      $region20: #{light_fc_discriminator.6} parent=11 // pred_fallthru
        _
    $region12: #{light_fc_discriminator.6} parent=5 // pred_fallthru
      _
    %p140 = scmp.lt.s32.totalorder %s9, 2
    // Predicated region
    $region21: #{light_fc_discriminator.6} parent=5 // pred_check
      %p141 = pneg %p140
    $region22: #{light_fc_discriminator.6} parent=5 // pred_check_branch
      %143 = sbr.rel (%p141) target = $region24
    $region23: #{light_fc_discriminator.6} parent=5 // pred_region
      // Predicated region
      $region25: #{light_fc_discriminator.6} parent=23 // pred_check
        %p144 = pneg %p43
      $region26: #{light_fc_discriminator.6} parent=23 // pred_check_branch
        %146 = sbr.rel (%p144) target = $region28
      $region27: #{light_fc_discriminator.6} parent=23 // pred_region
        %p147 = scmp.lt.s32.totalorder %s16, 1
        %s148 = scalar_select %p147, %s16, 1
        %p149 = scmp.lt.s32.totalorder %s17, 0
        %s150 = scalar_select %p149, %s17, 0
        %s151 = smul.addr %s150, 18
        %s152 = smul.addr %s148, 18
        %s153 = sadd.s32 %s151, %s152
        %s154 = smul.addr %s153, 8
        %s155 = scalar_lea.vmem %s0, %s154
      $region28: #{light_fc_discriminator.6} parent=23 // pred_fallthru
        _
    $region24: #{light_fc_discriminator.6} parent=5 // pred_fallthru
      _
    %p156 = scmp.le.s32.totalorder 1, %s9
    %p157 = scmp.lt.s32.totalorder %s9, 3
    %p158 = pnand %p156, %p157
    %p159 = pneg %p158
    // Predicated region
    $region29: #{light_fc_discriminator.6} parent=5 // pred_check
      _
    $region30: #{light_fc_discriminator.6} parent=5 // pred_check_branch
      %161 = sbr.rel (%p158) target = $region32
    $region31: #{light_fc_discriminator.6} parent=5 // pred_region
      %s162 = ssub.s32 %s9, 1
      %p163 = scmp.lt.s32.totalorder %s18, 1
      %s164 = scalar_select %p163, %s18, 1
      %p165 = scmp.lt.s32.totalorder %s19, 0
      %s166 = scalar_select %p165, %s19, 0
      %s167 = smul.addr %s166, 18
      %s168 = smul.addr %s164, 18
      %s169 = sadd.s32 %s167, %s168
      %s170 = smul.addr %s169, 8
      %s171 = scalar_lea.vmem %s0, %s170
      %p172 = pneg %p49
      %p173 = pneg %p46
      %p174 = pneg %p70
      %p175 = pneg %p67
      %p176 = pneg %p91
      %p177 = pneg %p88
      %p178 = pneg %p119
      %p179 = pneg %p116
      %s180 = smul.u32 8, %s19
      %p181 = scmp.lt.s32.totalorder %s18, 1
      %s182 = scalar_select %p181, %s18, 1
      %p183 = scmp.lt.s32.totalorder %s180, 7
      %s184 = scalar_select %p183, %s180, 7
      %s185 = smul.addr %s182, 8
      %s186 = sadd.s32 %s184, %s185
      %s187 = smul.addr %s186, 8
      %s188 = scalar_lea.vmem %s3, %s187
      %p189 = scmp.lt.s32.totalorder %s18, 1
      %s190 = scalar_select %p189, %s18, 1
      %p191 = scmp.lt.s32.totalorder %s19, 0
      %s192 = scalar_select %p191, %s19, 0
      %s193 = smul.addr %s192, 18
      %s194 = smul.addr %s190, 18
      %s195 = sadd.s32 %s193, %s194
      %s196 = smul.addr %s195, 8
      %s197 = scalar_lea.vmem %s0, %s196
      %s198 = smul.u32 8, %s19
      %p199 = scmp.lt.s32.totalorder %s18, 1
      %s200 = scalar_select %p199, %s18, 1
      %p201 = scmp.lt.s32.totalorder %s198, 7
      %s202 = scalar_select %p201, %s198, 7
      %s203 = smul.addr %s200, 8
      %s204 = sadd.s32 %s202, %s203
      %s205 = smul.addr %s204, 8
      %s206 = scalar_lea.vmem %s3, %s205
      %s207 = smul.u32 8, %s19
      %v208 = vld [vmem:[%s197] sm:$0xff]
      %v209 = vld [vmem:[%s197 + $0x10] sm:$0xff]
      %v210 = vld [vmem:[%s197 + $0x20] sm:$0xff]
      %v211 = vld [vmem:[%s197 + $0x30] sm:$0xff]
      %v212 = vld [vmem:[%s197 + $0x40] sm:$0xff]
      %v213 = vld [vmem:[%s197 + $0x50] sm:$0xff]
      %v214 = vld [vmem:[%s197 + $0x60] sm:$0xff]
      %v215 = vld [vmem:[%s197 + $0x70] sm:$0xff]
      %v216 = vld [vmem:[%s1] sm:$0xff]
      %v217 = vld [vmem:[%s1 + $0x8] sm:$0xff]
      %v218 = vld [vmem:[%s1 + $0x10] sm:$0xff]
      %v219 = vld [vmem:[%s1 + $0x18] sm:$0xff]
      %v220 = vld [vmem:[%s197 + $0x1] sm:$0xff]
      %v221 = vld [vmem:[%s197 + $0x11] sm:$0xff]
      %v222 = vld [vmem:[%s197 + $0x21] sm:$0xff]
      %v223 = vld [vmem:[%s197 + $0x31] sm:$0xff]
      %v224 = vld [vmem:[%s197 + $0x41] sm:$0xff]
      %v225 = vld [vmem:[%s197 + $0x51] sm:$0xff]
      %v226 = vld [vmem:[%s197 + $0x61] sm:$0xff]
      %v227 = vld [vmem:[%s197 + $0x71] sm:$0xff]
      %s228 = scalar_lea.vmem %s1, 32
      %v229 = vld [vmem:[%s228] sm:$0xff]
      %v230 = vld [vmem:[%s228 + $0x8] sm:$0xff]
      %v231 = vld [vmem:[%s228 + $0x10] sm:$0xff]
      %v232 = vld [vmem:[%s228 + $0x18] sm:$0xff]
      %vm233 = vcmask 261120
      %v235 = vsel %vm233, %v220, 0
      %v238 = vsel %vm233, %v221, 0
      %v241 = vsel %vm233, %v222, 0
      %v244 = vsel %vm233, %v223, 0
      %v247 = vsel %vm233, %v224, 0
      %v250 = vsel %vm233, %v225, 0
      %v253 = vsel %vm233, %v226, 0
      %v256 = vsel %vm233, %v227, 0
      %258 = vmatprep.subr.mxu0 0.0
      %259 = vmatpush1.msra.mxu0 0.0
      %260 = vmatprep.subr.mxu0 0.0
      %261 = vmatpush1.msra.mxu0 0.0
      %262 = vmatprep.subr.mxu0 0.0
      %263 = vmatpush1.msra.mxu0 0.0
      %264 = vmatprep.subr.mxu0 0.0
      %265 = vmatpush1.msra.mxu0 0.0
      %266 = vmatprep.subr.mxu0 0.0
      %267 = vmatpush1.msra.mxu0 0.0
      %268 = vmatprep.subr.mxu0 0.0
      %269 = vmatpush1.msra.mxu0 0.0
      %270 = vmatprep.subr.mxu0 0.0
      %271 = vmatpush1.msra.mxu0 0.0
      %272 = vmatprep.subr.mxu0 0.0
      %273 = vmatpush1.msra.mxu0 0.0
      %274 = vmatprep.subr.mxu0 0.0
      %275 = vmatpush1.msra.mxu0 0.0
      %276 = vmatprep.subr.mxu0 0.0
      %277 = vmatpush1.msra.mxu0 0.0
      %278 = vmatprep.subr.mxu0 0.0
      %279 = vmatpush1.msra.mxu0 0.0
      %280 = vmatprep.subr.mxu0 0.0
      %281 = vmatpush1.msra.mxu0 0.0
      %282 = vmatprep.subr.mxu0 0.0
      %283 = vmatpush1.msra.mxu0 %v232
      %284 = vmatprep.subr.mxu0 0.0
      %285 = vmatpush1.msra.mxu0 %v231
      %286 = vmatprep.subr.mxu0 0.0
      %287 = vmatpush1.msra.mxu0 %v230
      %288 = vmatprep.subr.mxu0 0.0
      %289 = vmatpush1.msra.mxu0 %v229
      %290 = vmatprep.subr.mxu0 0.0
      %291 = vmatpush2.msra.mxu0 0.0
      %292 = vmatprep.subr.mxu0 0.0
      %293 = vmatpush2.msra.mxu0 0.0
      %294 = vmatprep.subr.mxu0 0.0
      %295 = vmatpush2.msra.mxu0 0.0
      %296 = vmatprep.subr.mxu0 0.0
      %297 = vmatpush2.msra.mxu0 0.0
      %298 = vmatprep.subr.mxu0 0.0
      %299 = vmatpush2.msra.mxu0 0.0
      %300 = vmatprep.subr.mxu0 0.0
      %301 = vmatpush2.msra.mxu0 0.0
      %302 = vmatprep.subr.mxu0 0.0
      %303 = vmatpush2.msra.mxu0 0.0
      %304 = vmatprep.subr.mxu0 0.0
      %305 = vmatpush2.msra.mxu0 0.0
      %306 = vmatprep.subr.mxu0 0.0
      %307 = vmatpush2.msra.mxu0 0.0
      %308 = vmatprep.subr.mxu0 0.0
      %309 = vmatpush2.msra.mxu0 0.0
      %310 = vmatprep.subr.mxu0 0.0
      %311 = vmatpush2.msra.mxu0 0.0
      %312 = vmatprep.subr.mxu0 0.0
      %313 = vmatpush2.msra.mxu0 0.0
      %314 = vmatprep.subr.mxu0 0.0
      %315 = vmatpush2.msra.mxu0 0.0
      %316 = vmatprep.subr.mxu0 0.0
      %317 = vmatpush2.msra.mxu0 0.0
      %318 = vmatprep.subr.mxu0 0.0
      %319 = vmatpush2.msra.mxu0 0.0
      %320 = vmatprep.subr.mxu0 0.0
      %321 = vmatpush2.msra.mxu0 0.0
      %322 = vmatprep.mubr.f32.mxu0 0.0
      %323 = vmatmul.mubr.f32.gmra.mxu0 %v235
      %v324 = vpop.f32.mrf.mxu0
      %v325 = vadd.f32 0.0, %v324
      %v326 = vpop.f32.mrf.mxu0
      %327 = vmatprep.mubr.f32.mxu0 0.0
      %328 = vmatmul.mubr.f32.gmra.mxu0 %v238
      %v329 = vpop.f32.mrf.mxu0
      %v330 = vadd.f32 0.0, %v329
      %v331 = vpop.f32.mrf.mxu0
      %332 = vmatprep.mubr.f32.mxu0 0.0
      %333 = vmatmul.mubr.f32.gmra.mxu0 %v241
      %v334 = vpop.f32.mrf.mxu0
      %v335 = vadd.f32 0.0, %v334
      %v336 = vpop.f32.mrf.mxu0
      %337 = vmatprep.mubr.f32.mxu0 0.0
      %338 = vmatmul.mubr.f32.gmra.mxu0 %v244
      %v339 = vpop.f32.mrf.mxu0
      %v340 = vadd.f32 0.0, %v339
      %v341 = vpop.f32.mrf.mxu0
      %342 = vmatprep.mubr.f32.mxu0 0.0
      %343 = vmatmul.mubr.f32.gmra.mxu0 %v247
      %v344 = vpop.f32.mrf.mxu0
      %v345 = vadd.f32 0.0, %v344
      %v346 = vpop.f32.mrf.mxu0
      %347 = vmatprep.mubr.f32.mxu0 0.0
      %348 = vmatmul.mubr.f32.gmra.mxu0 %v250
      %v349 = vpop.f32.mrf.mxu0
      %v350 = vadd.f32 0.0, %v349
      %v351 = vpop.f32.mrf.mxu0
      %352 = vmatprep.mubr.f32.mxu0 0.0
      %353 = vmatmul.mubr.f32.gmra.mxu0 %v253
      %v354 = vpop.f32.mrf.mxu0
      %v355 = vadd.f32 0.0, %v354
      %v356 = vpop.f32.mrf.mxu0
      %357 = vmatprep.mubr.f32.mxu0 0.0
      %358 = vmatmul.mubr.f32.gmra.mxu0 %v256
      %v359 = vpop.f32.mrf.mxu0
      %v360 = vadd.f32 0.0, %v359
      %v361 = vpop.f32.mrf.mxu0
      %362 = vdwg.mxu0
      %v364 = vsel %vm233, %v208, 0
      %v367 = vsel %vm233, %v209, 0
      %v370 = vsel %vm233, %v210, 0
      %v373 = vsel %vm233, %v211, 0
      %v376 = vsel %vm233, %v212, 0
      %v379 = vsel %vm233, %v213, 0
      %v382 = vsel %vm233, %v214, 0
      %v385 = vsel %vm233, %v215, 0
      %387 = vmatprep.subr.mxu0 0.0
      %388 = vmatpush1.msra.mxu0 0.0
      %389 = vmatprep.subr.mxu0 0.0
      %390 = vmatpush1.msra.mxu0 0.0
      %391 = vmatprep.subr.mxu0 0.0
      %392 = vmatpush1.msra.mxu0 0.0
      %393 = vmatprep.subr.mxu0 0.0
      %394 = vmatpush1.msra.mxu0 0.0
      %395 = vmatprep.subr.mxu0 0.0
      %396 = vmatpush1.msra.mxu0 0.0
      %397 = vmatprep.subr.mxu0 0.0
      %398 = vmatpush1.msra.mxu0 0.0
      %399 = vmatprep.subr.mxu0 0.0
      %400 = vmatpush1.msra.mxu0 0.0
      %401 = vmatprep.subr.mxu0 0.0
      %402 = vmatpush1.msra.mxu0 0.0
      %403 = vmatprep.subr.mxu0 0.0
      %404 = vmatpush1.msra.mxu0 0.0
      %405 = vmatprep.subr.mxu0 0.0
      %406 = vmatpush1.msra.mxu0 0.0
      %407 = vmatprep.subr.mxu0 0.0
      %408 = vmatpush1.msra.mxu0 0.0
      %409 = vmatprep.subr.mxu0 0.0
      %410 = vmatpush1.msra.mxu0 0.0
      %411 = vmatprep.subr.mxu0 0.0
      %412 = vmatpush1.msra.mxu0 %v219
      %413 = vmatprep.subr.mxu0 0.0
      %414 = vmatpush1.msra.mxu0 %v218
      %415 = vmatprep.subr.mxu0 0.0
      %416 = vmatpush1.msra.mxu0 %v217
      %417 = vmatprep.subr.mxu0 0.0
      %418 = vmatpush1.msra.mxu0 %v216
      %419 = vmatprep.subr.mxu0 0.0
      %420 = vmatpush2.msra.mxu0 0.0
      %421 = vmatprep.subr.mxu0 0.0
      %422 = vmatpush2.msra.mxu0 0.0
      %423 = vmatprep.subr.mxu0 0.0
      %424 = vmatpush2.msra.mxu0 0.0
      %425 = vmatprep.subr.mxu0 0.0
      %426 = vmatpush2.msra.mxu0 0.0
      %427 = vmatprep.subr.mxu0 0.0
      %428 = vmatpush2.msra.mxu0 0.0
      %429 = vmatprep.subr.mxu0 0.0
      %430 = vmatpush2.msra.mxu0 0.0
      %431 = vmatprep.subr.mxu0 0.0
      %432 = vmatpush2.msra.mxu0 0.0
      %433 = vmatprep.subr.mxu0 0.0
      %434 = vmatpush2.msra.mxu0 0.0
      %435 = vmatprep.subr.mxu0 0.0
      %436 = vmatpush2.msra.mxu0 0.0
      %437 = vmatprep.subr.mxu0 0.0
      %438 = vmatpush2.msra.mxu0 0.0
      %439 = vmatprep.subr.mxu0 0.0
      %440 = vmatpush2.msra.mxu0 0.0
      %441 = vmatprep.subr.mxu0 0.0
      %442 = vmatpush2.msra.mxu0 0.0
      %443 = vmatprep.subr.mxu0 0.0
      %444 = vmatpush2.msra.mxu0 0.0
      %445 = vmatprep.subr.mxu0 0.0
      %446 = vmatpush2.msra.mxu0 0.0
      %447 = vmatprep.subr.mxu0 0.0
      %448 = vmatpush2.msra.mxu0 0.0
      %449 = vmatprep.subr.mxu0 0.0
      %450 = vmatpush2.msra.mxu0 0.0
      %451 = vmatprep.mubr.f32.mxu0 0.0
      %452 = vmatmul.mubr.f32.gmra.mxu0 %v364
      %v453 = vpop.f32.mrf.mxu0
      %v454 = vadd.f32 %v325, %v453
      %v455 = vpop.f32.mrf.mxu0
      %456 = vmatprep.mubr.f32.mxu0 0.0
      %457 = vmatmul.mubr.f32.gmra.mxu0 %v367
      %v458 = vpop.f32.mrf.mxu0
      %v459 = vadd.f32 %v330, %v458
      %v460 = vpop.f32.mrf.mxu0
      %461 = vmatprep.mubr.f32.mxu0 0.0
      %462 = vmatmul.mubr.f32.gmra.mxu0 %v370
      %v463 = vpop.f32.mrf.mxu0
      %v464 = vadd.f32 %v335, %v463
      %v465 = vpop.f32.mrf.mxu0
      %466 = vmatprep.mubr.f32.mxu0 0.0
      %467 = vmatmul.mubr.f32.gmra.mxu0 %v373
      %v468 = vpop.f32.mrf.mxu0
      %v469 = vadd.f32 %v340, %v468
      %v470 = vpop.f32.mrf.mxu0
      %471 = vmatprep.mubr.f32.mxu0 0.0
      %472 = vmatmul.mubr.f32.gmra.mxu0 %v376
      %v473 = vpop.f32.mrf.mxu0
      %v474 = vadd.f32 %v345, %v473
      %v475 = vpop.f32.mrf.mxu0
      %476 = vmatprep.mubr.f32.mxu0 0.0
      %477 = vmatmul.mubr.f32.gmra.mxu0 %v379
      %v478 = vpop.f32.mrf.mxu0
      %v479 = vadd.f32 %v350, %v478
      %v480 = vpop.f32.mrf.mxu0
      %481 = vmatprep.mubr.f32.mxu0 0.0
      %482 = vmatmul.mubr.f32.gmra.mxu0 %v382
      %v483 = vpop.f32.mrf.mxu0
      %v484 = vadd.f32 %v355, %v483
      %v485 = vpop.f32.mrf.mxu0
      %486 = vmatprep.mubr.f32.mxu0 0.0
      %487 = vmatmul.mubr.f32.gmra.mxu0 %v385
      %v488 = vpop.f32.mrf.mxu0
      %v489 = vadd.f32 %v360, %v488
      %v490 = vpop.f32.mrf.mxu0
      %491 = vdwg.mxu0
      %s492 = scalar_lea.vmem %s197, 16
      %v493 = vld [vmem:[%s492] sm:$0xff]
      %v494 = vld [vmem:[%s492 + $0x10] sm:$0xff]
      %v495 = vld [vmem:[%s492 + $0x20] sm:$0xff]
      %v496 = vld [vmem:[%s492 + $0x30] sm:$0xff]
      %v497 = vld [vmem:[%s492 + $0x40] sm:$0xff]
      %v498 = vld [vmem:[%s492 + $0x50] sm:$0xff]
      %v499 = vld [vmem:[%s492 + $0x60] sm:$0xff]
      %v500 = vld [vmem:[%s492 + $0x70] sm:$0xff]
      %s501 = scalar_lea.vmem %s1, 64
      %v502 = vld [vmem:[%s501] sm:$0xff]
      %v503 = vld [vmem:[%s501 + $0x8] sm:$0xff]
      %v504 = vld [vmem:[%s501 + $0x10] sm:$0xff]
      %v505 = vld [vmem:[%s501 + $0x18] sm:$0xff]
      %v507 = vsel %vm233, %v493, 0
      %v510 = vsel %vm233, %v494, 0
      %v513 = vsel %vm233, %v495, 0
      %v516 = vsel %vm233, %v496, 0
      %v519 = vsel %vm233, %v497, 0
      %v522 = vsel %vm233, %v498, 0
      %v525 = vsel %vm233, %v499, 0
      %v528 = vsel %vm233, %v500, 0
      %530 = vmatprep.subr.mxu0 0.0
      %531 = vmatpush1.msra.mxu0 0.0
      %532 = vmatprep.subr.mxu0 0.0
      %533 = vmatpush1.msra.mxu0 0.0
      %534 = vmatprep.subr.mxu0 0.0
      %535 = vmatpush1.msra.mxu0 0.0
      %536 = vmatprep.subr.mxu0 0.0
      %537 = vmatpush1.msra.mxu0 0.0
      %538 = vmatprep.subr.mxu0 0.0
      %539 = vmatpush1.msra.mxu0 0.0
      %540 = vmatprep.subr.mxu0 0.0
      %541 = vmatpush1.msra.mxu0 0.0
      %542 = vmatprep.subr.mxu0 0.0
      %543 = vmatpush1.msra.mxu0 0.0
      %544 = vmatprep.subr.mxu0 0.0
      %545 = vmatpush1.msra.mxu0 0.0
      %546 = vmatprep.subr.mxu0 0.0
      %547 = vmatpush1.msra.mxu0 0.0
      %548 = vmatprep.subr.mxu0 0.0
      %549 = vmatpush1.msra.mxu0 0.0
      %550 = vmatprep.subr.mxu0 0.0
      %551 = vmatpush1.msra.mxu0 0.0
      %552 = vmatprep.subr.mxu0 0.0
      %553 = vmatpush1.msra.mxu0 0.0
      %554 = vmatprep.subr.mxu0 0.0
      %555 = vmatpush1.msra.mxu0 %v505
      %556 = vmatprep.subr.mxu0 0.0
      %557 = vmatpush1.msra.mxu0 %v504
      %558 = vmatprep.subr.mxu0 0.0
      %559 = vmatpush1.msra.mxu0 %v503
      %560 = vmatprep.subr.mxu0 0.0
      %561 = vmatpush1.msra.mxu0 %v502
      %562 = vmatprep.subr.mxu0 0.0
      %563 = vmatpush2.msra.mxu0 0.0
      %564 = vmatprep.subr.mxu0 0.0
      %565 = vmatpush2.msra.mxu0 0.0
      %566 = vmatprep.subr.mxu0 0.0
      %567 = vmatpush2.msra.mxu0 0.0
      %568 = vmatprep.subr.mxu0 0.0
      %569 = vmatpush2.msra.mxu0 0.0
      %570 = vmatprep.subr.mxu0 0.0
      %571 = vmatpush2.msra.mxu0 0.0
      %572 = vmatprep.subr.mxu0 0.0
      %573 = vmatpush2.msra.mxu0 0.0
      %574 = vmatprep.subr.mxu0 0.0
      %575 = vmatpush2.msra.mxu0 0.0
      %576 = vmatprep.subr.mxu0 0.0
      %577 = vmatpush2.msra.mxu0 0.0
      %578 = vmatprep.subr.mxu0 0.0
      %579 = vmatpush2.msra.mxu0 0.0
      %580 = vmatprep.subr.mxu0 0.0
      %581 = vmatpush2.msra.mxu0 0.0
      %582 = vmatprep.subr.mxu0 0.0
      %583 = vmatpush2.msra.mxu0 0.0
      %584 = vmatprep.subr.mxu0 0.0
      %585 = vmatpush2.msra.mxu0 0.0
      %586 = vmatprep.subr.mxu0 0.0
      %587 = vmatpush2.msra.mxu0 0.0
      %588 = vmatprep.subr.mxu0 0.0
      %589 = vmatpush2.msra.mxu0 0.0
      %590 = vmatprep.subr.mxu0 0.0
      %591 = vmatpush2.msra.mxu0 0.0
      %592 = vmatprep.subr.mxu0 0.0
      %593 = vmatpush2.msra.mxu0 0.0
      %594 = vmatprep.mubr.f32.mxu0 0.0
      %595 = vmatmul.mubr.f32.gmra.mxu0 %v507
      %v596 = vpop.f32.mrf.mxu0
      %v597 = vadd.f32 0.0, %v596
      %v598 = vpop.f32.mrf.mxu0
      %599 = vmatprep.mubr.f32.mxu0 0.0
      %600 = vmatmul.mubr.f32.gmra.mxu0 %v510
      %v601 = vpop.f32.mrf.mxu0
      %v602 = vadd.f32 0.0, %v601
      %v603 = vpop.f32.mrf.mxu0
      %604 = vmatprep.mubr.f32.mxu0 0.0
      %605 = vmatmul.mubr.f32.gmra.mxu0 %v513
      %v606 = vpop.f32.mrf.mxu0
      %v607 = vadd.f32 0.0, %v606
      %v608 = vpop.f32.mrf.mxu0
      %609 = vmatprep.mubr.f32.mxu0 0.0
      %610 = vmatmul.mubr.f32.gmra.mxu0 %v516
      %v611 = vpop.f32.mrf.mxu0
      %v612 = vadd.f32 0.0, %v611
      %v613 = vpop.f32.mrf.mxu0
      %614 = vmatprep.mubr.f32.mxu0 0.0
      %615 = vmatmul.mubr.f32.gmra.mxu0 %v519
      %v616 = vpop.f32.mrf.mxu0
      %v617 = vadd.f32 0.0, %v616
      %v618 = vpop.f32.mrf.mxu0
      %619 = vmatprep.mubr.f32.mxu0 0.0
      %620 = vmatmul.mubr.f32.gmra.mxu0 %v522
      %v621 = vpop.f32.mrf.mxu0
      %v622 = vadd.f32 0.0, %v621
      %v623 = vpop.f32.mrf.mxu0
      %624 = vmatprep.mubr.f32.mxu0 0.0
      %625 = vmatmul.mubr.f32.gmra.mxu0 %v525
      %v626 = vpop.f32.mrf.mxu0
      %v627 = vadd.f32 0.0, %v626
      %v628 = vpop.f32.mrf.mxu0
      %629 = vmatprep.mubr.f32.mxu0 0.0
      %630 = vmatmul.mubr.f32.gmra.mxu0 %v528
      %v631 = vpop.f32.mrf.mxu0
      %v632 = vadd.f32 0.0, %v631
      %v633 = vpop.f32.mrf.mxu0
      %634 = vdwg.mxu0
      %v635 = vadd.f32 %v454, %v597
      %v636 = vadd.f32 %v459, %v602
      %v637 = vadd.f32 %v464, %v607
      %v638 = vadd.f32 %v469, %v612
      %v639 = vadd.f32 %v474, %v617
      %v640 = vadd.f32 %v479, %v622
      %v641 = vadd.f32 %v484, %v627
      %v642 = vadd.f32 %v489, %v632
      %v643 = vld [vmem:[%s492 + $0x1] sm:$0xff]
      %v644 = vld [vmem:[%s492 + $0x11] sm:$0xff]
      %v645 = vld [vmem:[%s492 + $0x21] sm:$0xff]
      %v646 = vld [vmem:[%s492 + $0x31] sm:$0xff]
      %v647 = vld [vmem:[%s492 + $0x41] sm:$0xff]
      %v648 = vld [vmem:[%s492 + $0x51] sm:$0xff]
      %v649 = vld [vmem:[%s492 + $0x61] sm:$0xff]
      %v650 = vld [vmem:[%s492 + $0x71] sm:$0xff]
      %s651 = scalar_lea.vmem %s1, 96
      %v652 = vld [vmem:[%s651] sm:$0xff]
      %v653 = vld [vmem:[%s651 + $0x8] sm:$0xff]
      %v654 = vld [vmem:[%s651 + $0x10] sm:$0xff]
      %v655 = vld [vmem:[%s651 + $0x18] sm:$0xff]
      %v657 = vsel %vm233, %v643, 0
      %v660 = vsel %vm233, %v644, 0
      %v663 = vsel %vm233, %v645, 0
      %v666 = vsel %vm233, %v646, 0
      %v669 = vsel %vm233, %v647, 0
      %v672 = vsel %vm233, %v648, 0
      %v675 = vsel %vm233, %v649, 0
      %v678 = vsel %vm233, %v650, 0
      %680 = vmatprep.subr.mxu0 0.0
      %681 = vmatpush1.msra.mxu0 0.0
      %682 = vmatprep.subr.mxu0 0.0
      %683 = vmatpush1.msra.mxu0 0.0
      %684 = vmatprep.subr.mxu0 0.0
      %685 = vmatpush1.msra.mxu0 0.0
      %686 = vmatprep.subr.mxu0 0.0
      %687 = vmatpush1.msra.mxu0 0.0
      %688 = vmatprep.subr.mxu0 0.0
      %689 = vmatpush1.msra.mxu0 0.0
      %690 = vmatprep.subr.mxu0 0.0
      %691 = vmatpush1.msra.mxu0 0.0
      %692 = vmatprep.subr.mxu0 0.0
      %693 = vmatpush1.msra.mxu0 0.0
      %694 = vmatprep.subr.mxu0 0.0
      %695 = vmatpush1.msra.mxu0 0.0
      %696 = vmatprep.subr.mxu0 0.0
      %697 = vmatpush1.msra.mxu0 0.0
      %698 = vmatprep.subr.mxu0 0.0
      %699 = vmatpush1.msra.mxu0 0.0
      %700 = vmatprep.subr.mxu0 0.0
      %701 = vmatpush1.msra.mxu0 0.0
      %702 = vmatprep.subr.mxu0 0.0
      %703 = vmatpush1.msra.mxu0 0.0
      %704 = vmatprep.subr.mxu0 0.0
      %705 = vmatpush1.msra.mxu0 %v655
      %706 = vmatprep.subr.mxu0 0.0
      %707 = vmatpush1.msra.mxu0 %v654
      %708 = vmatprep.subr.mxu0 0.0
      %709 = vmatpush1.msra.mxu0 %v653
      %710 = vmatprep.subr.mxu0 0.0
      %711 = vmatpush1.msra.mxu0 %v652
      %712 = vmatprep.subr.mxu0 0.0
      %713 = vmatpush2.msra.mxu0 0.0
      %714 = vmatprep.subr.mxu0 0.0
      %715 = vmatpush2.msra.mxu0 0.0
      %716 = vmatprep.subr.mxu0 0.0
      %717 = vmatpush2.msra.mxu0 0.0
      %718 = vmatprep.subr.mxu0 0.0
      %719 = vmatpush2.msra.mxu0 0.0
      %720 = vmatprep.subr.mxu0 0.0
      %721 = vmatpush2.msra.mxu0 0.0
      %722 = vmatprep.subr.mxu0 0.0
      %723 = vmatpush2.msra.mxu0 0.0
      %724 = vmatprep.subr.mxu0 0.0
      %725 = vmatpush2.msra.mxu0 0.0
      %726 = vmatprep.subr.mxu0 0.0
      %727 = vmatpush2.msra.mxu0 0.0
      %728 = vmatprep.subr.mxu0 0.0
      %729 = vmatpush2.msra.mxu0 0.0
      %730 = vmatprep.subr.mxu0 0.0
      %731 = vmatpush2.msra.mxu0 0.0
      %732 = vmatprep.subr.mxu0 0.0
      %733 = vmatpush2.msra.mxu0 0.0
      %734 = vmatprep.subr.mxu0 0.0
      %735 = vmatpush2.msra.mxu0 0.0
      %736 = vmatprep.subr.mxu0 0.0
      %737 = vmatpush2.msra.mxu0 0.0
      %738 = vmatprep.subr.mxu0 0.0
      %739 = vmatpush2.msra.mxu0 0.0
      %740 = vmatprep.subr.mxu0 0.0
      %741 = vmatpush2.msra.mxu0 0.0
      %742 = vmatprep.subr.mxu0 0.0
      %743 = vmatpush2.msra.mxu0 0.0
      %744 = vmatprep.mubr.f32.mxu0 0.0
      %745 = vmatmul.mubr.f32.gmra.mxu0 %v657
      %v746 = vpop.f32.mrf.mxu0
      %v747 = vadd.f32 0.0, %v746
      %v748 = vpop.f32.mrf.mxu0
      %749 = vmatprep.mubr.f32.mxu0 0.0
      %750 = vmatmul.mubr.f32.gmra.mxu0 %v660
      %v751 = vpop.f32.mrf.mxu0
      %v752 = vadd.f32 0.0, %v751
      %v753 = vpop.f32.mrf.mxu0
      %754 = vmatprep.mubr.f32.mxu0 0.0
      %755 = vmatmul.mubr.f32.gmra.mxu0 %v663
      %v756 = vpop.f32.mrf.mxu0
      %v757 = vadd.f32 0.0, %v756
      %v758 = vpop.f32.mrf.mxu0
      %759 = vmatprep.mubr.f32.mxu0 0.0
      %760 = vmatmul.mubr.f32.gmra.mxu0 %v666
      %v761 = vpop.f32.mrf.mxu0
      %v762 = vadd.f32 0.0, %v761
      %v763 = vpop.f32.mrf.mxu0
      %764 = vmatprep.mubr.f32.mxu0 0.0
      %765 = vmatmul.mubr.f32.gmra.mxu0 %v669
      %v766 = vpop.f32.mrf.mxu0
      %v767 = vadd.f32 0.0, %v766
      %v768 = vpop.f32.mrf.mxu0
      %769 = vmatprep.mubr.f32.mxu0 0.0
      %770 = vmatmul.mubr.f32.gmra.mxu0 %v672
      %v771 = vpop.f32.mrf.mxu0
      %v772 = vadd.f32 0.0, %v771
      %v773 = vpop.f32.mrf.mxu0
      %774 = vmatprep.mubr.f32.mxu0 0.0
      %775 = vmatmul.mubr.f32.gmra.mxu0 %v675
      %v776 = vpop.f32.mrf.mxu0
      %v777 = vadd.f32 0.0, %v776
      %v778 = vpop.f32.mrf.mxu0
      %779 = vmatprep.mubr.f32.mxu0 0.0
      %780 = vmatmul.mubr.f32.gmra.mxu0 %v678
      %v781 = vpop.f32.mrf.mxu0
      %v782 = vadd.f32 0.0, %v781
      %v783 = vpop.f32.mrf.mxu0
      %784 = vdwg.mxu0
      %v785 = vadd.f32 %v635, %v747
      %v786 = vadd.f32 %v636, %v752
      %v787 = vadd.f32 %v637, %v757
      %v788 = vadd.f32 %v638, %v762
      %v789 = vadd.f32 %v639, %v767
      %v790 = vadd.f32 %v640, %v772
      %v791 = vadd.f32 %v641, %v777
      %v792 = vadd.f32 %v642, %v782
      %v793 = vld [vmem:[%s2] sm:$0x1]
      %v795 = vlaneseq
      %v796 = vshrl.u32 %v795, 7
      %v797 = vsub.s32 0, %v796
      %v798 = vrot.slane %v793, %v797
      %v800 = vadd.f32 %v785, %v798
      %v801 = vadd.f32 %v786, %v798
      %v802 = vadd.f32 %v787, %v798
      %v803 = vadd.f32 %v788, %v798
      %v804 = vadd.f32 %v789, %v798
      %v805 = vadd.f32 %v790, %v798
      %v806 = vadd.f32 %v791, %v798
      %v807 = vadd.f32 %v792, %v798
      %vm808 = vcmp.ge.f32.partialorder %v800, 0.0
      %vm809 = vcmp.ge.f32.partialorder %v801, 0.0
      %vm810 = vcmp.ge.f32.partialorder %v802, 0.0
      %vm811 = vcmp.ge.f32.partialorder %v803, 0.0
      %vm812 = vcmp.ge.f32.partialorder %v804, 0.0
      %vm813 = vcmp.ge.f32.partialorder %v805, 0.0
      %vm814 = vcmp.ge.f32.partialorder %v806, 0.0
      %vm815 = vcmp.ge.f32.partialorder %v807, 0.0
      %v816 = vmul.f32 %v800, 0.2
      %v817 = vmul.f32 %v801, 0.2
      %v818 = vmul.f32 %v802, 0.2
      %v819 = vmul.f32 %v803, 0.2
      %v820 = vmul.f32 %v804, 0.2
      %v821 = vmul.f32 %v805, 0.2
      %v822 = vmul.f32 %v806, 0.2
      %v823 = vmul.f32 %v807, 0.2
      %v824 = vsel %vm808, %v800, %v816
      %v825 = vsel %vm809, %v801, %v817
      %v826 = vsel %vm810, %v802, %v818
      %v827 = vsel %vm811, %v803, %v819
      %v828 = vsel %vm812, %v804, %v820
      %v829 = vsel %vm813, %v805, %v821
      %v830 = vsel %vm814, %v806, %v822
      %v831 = vsel %vm815, %v807, %v823
      %vm832 = vcmask 130048
      %833 = vst.msk [vmem:[%s206] sm:$0xff] %vm832, %v824
      %834 = vst.msk [vmem:[%s206 + $0x8] sm:$0xff] %vm832, %v825
      %835 = vst.msk [vmem:[%s206 + $0x10] sm:$0xff] %vm832, %v826
      %836 = vst.msk [vmem:[%s206 + $0x18] sm:$0xff] %vm832, %v827
      %837 = vst.msk [vmem:[%s206 + $0x20] sm:$0xff] %vm832, %v828
      %838 = vst.msk [vmem:[%s206 + $0x28] sm:$0xff] %vm832, %v829
      %839 = vst.msk [vmem:[%s206 + $0x30] sm:$0xff] %vm832, %v830
      %840 = vst.msk [vmem:[%s206 + $0x38] sm:$0xff] %vm832, %v831
      %s841 = smul.u32 8, %s19
      %p842 = scmp.lt.s32.totalorder %s18, 1
      %s843 = scalar_select %p842, %s18, 1
      %p844 = scmp.lt.s32.totalorder %s841, 7
      %s845 = scalar_select %p844, %s841, 7
      %s846 = smul.addr %s843, 8
      %s847 = sadd.s32 %s845, %s846
      %s848 = smul.addr %s847, 8
      %s849 = scalar_lea.vmem %s3, %s848
      // Predicated region
      $region33: #{light_fc_discriminator.6} parent=31 // pred_check
        %p850 = pneg %p116
      $region34: #{light_fc_discriminator.6} parent=31 // pred_check_branch
        %852 = sbr.rel (%p850) target = $region36
      $region35: #{light_fc_discriminator.6} parent=31 // pred_region
        %s853 = smul.u32 8, %s19
      $region36: #{light_fc_discriminator.6} parent=31 // pred_fallthru
        _
    $region32: #{light_fc_discriminator.6} parent=5 // pred_fallthru
      _
    %p854 = scmp.le.s32.totalorder 2, %s9
    // Predicated region
    $region37: #{light_fc_discriminator.6} parent=5 // pred_check
      %p855 = pneg %p854
    $region38: #{light_fc_discriminator.6} parent=5 // pred_check_branch
      %857 = sbr.rel (%p855) target = $region40
    $region39: #{light_fc_discriminator.6} parent=5 // pred_region
      %s858 = ssub.s32 %s9, 2
      // Predicated region
      $region41: #{light_fc_discriminator.6} parent=39 // pred_check
        %p859 = pneg %p122
      $region42: #{light_fc_discriminator.6} parent=39 // pred_check_branch
        %861 = sbr.rel (%p859) target = $region44
      $region43: #{light_fc_discriminator.6} parent=39 // pred_region
        %s862 = smul.u32 8, %s21
        %p863 = scmp.lt.s32.totalorder %s20, 1
        %s864 = scalar_select %p863, %s20, 1
        %p865 = scmp.lt.s32.totalorder %s862, 7
        %s866 = scalar_select %p865, %s862, 7
        %s867 = smul.addr %s864, 8
        %s868 = sadd.s32 %s866, %s867
        %s869 = smul.addr %s868, 8
        %s870 = scalar_lea.vmem %s3, %s869
      $region44: #{light_fc_discriminator.6} parent=39 // pred_fallthru
        _
    $region40: #{light_fc_discriminator.6} parent=5 // pred_fallthru
      _
  $region6: #{light_fc_discriminator.6} parent=0 // loop_footer
    %s13 = sadd.s32 1, %s9
  $region7: #{light_fc_discriminator.6} parent=0 // loop_footer_branch
    %8 = sbr.rel target = $region3
  $region8: #{light_fc_discriminator.6} parent=0 // loop_exit
    _

// kernel: light_fc_discriminator.7
$region0: #{light_fc_discriminator.7}
  #allocation0 [shape = 'u32[]', space=smem, size = 0x4, offset = 0x4, fixed_abs, tag = 'smem constant byte address 0x4 - core index']
  #allocation1 [shape = 'u32[144,128]{1,0:T(1,128)}', space=vmem, size = 0x12000, scoped, tag = 'internal scratch']
  %s0 = inlined_call_operand.vmem [shape: f32[2,1,5,5,64], index: 0, kind: input, shape index: {}]
  %s1 = inlined_call_operand.vmem [shape: f32[4,64,32], index: 1, kind: input, shape index: {}]
  %s2 = inlined_call_operand.vmem [shape: f32[1,32], index: 2, kind: input, shape index: {}]
  %s3 = inlined_call_operand.vmem [shape: f32[2,16,32], index: 3, kind: output, shape index: {}]
  %s4 = sld [smem:[#allocation0]]
  $region45: #{light_fc_discriminator.7} parent=0
    _
  %s6 = ssub.s32 1, %s4
  %s7 = scalar_select 0, %s6, %s4
  loop: start=0, step=1, limit=4
  $region2: #{light_fc_discriminator.7} parent=0 // loop_pre_header
    _
  $region3: #{light_fc_discriminator.7} parent=0 // loop_header
    %s9 = sphi 0, %s13
    %p10 = scmp.ge.s32.totalorder %s9, 4
    %s16 = sphi 0, %s28
    %s17 = sphi 0, %s24
    %s18 = sphi 0, %s16
    %s19 = sphi 0, %s17
    %s20 = sphi 0, %s18
    %s21 = sphi 0, %s19
    %s33 = sphi 0, %s35
    %s36 = sphi 0, %s33
    %s37 = sphi 0, %s36
    %s53 = sphi 0, %s37
    %s57 = sphi 0, %s57
    %s59 = sphi 0, %s57
    %s60 = sphi 0, %s59
    %s74 = sphi 0, %s60
    %s78 = sphi 0, %s78
    %s80 = sphi 0, %s78
    %s81 = sphi 0, %s80
    %s95 = sphi 0, %s81
    %s103 = sphi 0, %s105
    %s106 = sphi 0, %s103
    %s107 = sphi 0, %s106
    %s123 = sphi 0, %s107
  $region4: #{light_fc_discriminator.7} parent=0 // loop_header_branch
    %12 = sbr.rel (%p10) target = $region8
  $region5: #{light_fc_discriminator.7} parent=0 // loop_body
    %s14 = ssub.s32 %s9, 1
    %s15 = ssub.s32 %s9, 2
    %s22 = sadd.s32 1, %s17
    %p23 = scmp.ge.s32.totalorder %s22, 1
    %s24 = scalar_select %p23, 0, %s22
    %s25 = sadd.s32 1, %s16
    %s26 = scalar_select %p23, %s25, %s16
    %p27 = scmp.ge.s32.totalorder %s26, 2
    %s28 = scalar_select %p27, 0, %s26
    %s29 = ssub.s32 %s16, %s28
    %s30 = ssub.s32 %s17, %s24
    %s31 = sor.u32 %s29, %s30
    %p32 = scmp.eq.s32.totalorder %s31, 0
    %s34 = sadd.s32 %s33, 1
    %s35 = scalar_select %p32, %s33, %s34
    %p38 = pneg %p32
    %p39 = scmp.eq.s32.totalorder %s9, 1
    %p40 = por %p38, %p39
    %p41 = scmp.ne.s32.totalorder %s33, %s36
    %p42 = scmp.eq.s32.totalorder %s9, 0
    %p43 = por %p41, %p42
    %p44 = scmp.ne.s32.totalorder %s33, %s36
    %p45 = scmp.eq.s32.totalorder %s14, 1
    %p46 = por %p44, %p45
    %p47 = scmp.ne.s32.totalorder %s36, %s37
    %p48 = scmp.eq.s32.totalorder %s14, 0
    %p49 = por %p47, %p48
    %p50 = scmp.ne.s32.totalorder %s36, %s37
    %p51 = scmp.eq.s32.totalorder %s15, 1
    %p52 = por %p50, %p51
    %p54 = scmp.ne.s32.totalorder %s37, %s53
    %p55 = scmp.eq.s32.totalorder %s15, 0
    %p56 = por %p54, %p55
    %s58 = sadd.s32 %s57, 1
    %p61 = scmp.eq.s32.totalorder %s9, 1
    %p62 = scmp.ne.s32.totalorder %s57, %s59
    %p63 = scmp.eq.s32.totalorder %s9, 0
    %p64 = por %p62, %p63
    %p65 = scmp.ne.s32.totalorder %s57, %s59
    %p66 = scmp.eq.s32.totalorder %s14, 1
    %p67 = por %p65, %p66
    %p68 = scmp.ne.s32.totalorder %s59, %s60
    %p69 = scmp.eq.s32.totalorder %s14, 0
    %p70 = por %p68, %p69
    %p71 = scmp.ne.s32.totalorder %s59, %s60
    %p72 = scmp.eq.s32.totalorder %s15, 1
    %p73 = por %p71, %p72
    %p75 = scmp.ne.s32.totalorder %s60, %s74
    %p76 = scmp.eq.s32.totalorder %s15, 0
    %p77 = por %p75, %p76
    %s79 = sadd.s32 %s78, 1
    %p82 = scmp.eq.s32.totalorder %s9, 1
    %p83 = scmp.ne.s32.totalorder %s78, %s80
    %p84 = scmp.eq.s32.totalorder %s9, 0
    %p85 = por %p83, %p84
    %p86 = scmp.ne.s32.totalorder %s78, %s80
    %p87 = scmp.eq.s32.totalorder %s14, 1
    %p88 = por %p86, %p87
    %p89 = scmp.ne.s32.totalorder %s80, %s81
    %p90 = scmp.eq.s32.totalorder %s14, 0
    %p91 = por %p89, %p90
    %p92 = scmp.ne.s32.totalorder %s80, %s81
    %p93 = scmp.eq.s32.totalorder %s15, 1
    %p94 = por %p92, %p93
    %p96 = scmp.ne.s32.totalorder %s81, %s95
    %p97 = scmp.eq.s32.totalorder %s15, 0
    %p98 = por %p96, %p97
    %s99 = ssub.s32 %s16, %s28
    %s100 = ssub.s32 %s17, %s24
    %s101 = sor.u32 %s99, %s100
    %p102 = scmp.eq.s32.totalorder %s101, 0
    %s104 = sadd.s32 %s103, 1
    %s105 = scalar_select %p102, %s103, %s104
    %p108 = pneg %p102
    %p109 = scmp.eq.s32.totalorder %s9, 1
    %p110 = por %p108, %p109
    %p111 = scmp.ne.s32.totalorder %s103, %s106
    %p112 = scmp.eq.s32.totalorder %s9, 0
    %p113 = por %p111, %p112
    %p114 = scmp.ne.s32.totalorder %s103, %s106
    %p115 = scmp.eq.s32.totalorder %s14, 1
    %p116 = por %p114, %p115
    %p117 = scmp.ne.s32.totalorder %s106, %s107
    %p118 = scmp.eq.s32.totalorder %s14, 0
    %p119 = por %p117, %p118
    %p120 = scmp.ne.s32.totalorder %s106, %s107
    %p121 = scmp.eq.s32.totalorder %s15, 1
    %p122 = por %p120, %p121
    %p124 = scmp.ne.s32.totalorder %s107, %s123
    %p125 = scmp.eq.s32.totalorder %s15, 0
    %p126 = por %p124, %p125
    %p127 = scmp.le.s32.totalorder 1, %s9
    %p128 = scmp.lt.s32.totalorder %s9, 3
    %p129 = pnand %p127, %p128
    %p130 = pneg %p129
    // Predicated region
    $region9: #{light_fc_discriminator.7} parent=5 // pred_check
      _
    $region10: #{light_fc_discriminator.7} parent=5 // pred_check_branch
      %132 = sbr.rel (%p129) target = $region12
    $region11: #{light_fc_discriminator.7} parent=5 // pred_region
      %s133 = ssub.s32 %s9, 1
      // Predicated region
      $region13: #{light_fc_discriminator.7} parent=11 // pred_check
        %p134 = pneg %p70
      $region14: #{light_fc_discriminator.7} parent=11 // pred_check_branch
        %136 = sbr.rel (%p134) target = $region16
      $region15: #{light_fc_discriminator.7} parent=11 // pred_region
        _
      $region16: #{light_fc_discriminator.7} parent=11 // pred_fallthru
        _
      // Predicated region
      $region17: #{light_fc_discriminator.7} parent=11 // pred_check
        %p137 = pneg %p91
      $region18: #{light_fc_discriminator.7} parent=11 // pred_check_branch
        %139 = sbr.rel (%p137) target = $region20
      $region19: #{light_fc_discriminator.7} parent=11 // pred_region
        _
      $region20: #{light_fc_discriminator.7} parent=11 // pred_fallthru
        _
    $region12: #{light_fc_discriminator.7} parent=5 // pred_fallthru
      _
    %p140 = scmp.lt.s32.totalorder %s9, 2
    // Predicated region
    $region21: #{light_fc_discriminator.7} parent=5 // pred_check
      %p141 = pneg %p140
    $region22: #{light_fc_discriminator.7} parent=5 // pred_check_branch
      %143 = sbr.rel (%p141) target = $region24
    $region23: #{light_fc_discriminator.7} parent=5 // pred_region
      // Predicated region
      $region25: #{light_fc_discriminator.7} parent=23 // pred_check
        %p144 = pneg %p43
      $region26: #{light_fc_discriminator.7} parent=23 // pred_check_branch
        %146 = sbr.rel (%p144) target = $region28
      $region27: #{light_fc_discriminator.7} parent=23 // pred_region
        %p147 = scmp.lt.s32.totalorder %s16, 1
        %s148 = scalar_select %p147, %s16, 1
        %p149 = scmp.lt.s32.totalorder %s17, 0
        %s150 = scalar_select %p149, %s17, 0
        %s151 = smul.addr %s150, 5
        %s152 = smul.addr %s148, 5
        %s153 = sadd.s32 %s151, %s152
        %s154 = smul.addr %s153, 8
        %s155 = scalar_lea.vmem %s0, %s154
      $region28: #{light_fc_discriminator.7} parent=23 // pred_fallthru
        _
    $region24: #{light_fc_discriminator.7} parent=5 // pred_fallthru
      _
    %p156 = scmp.le.s32.totalorder 1, %s9
    %p157 = scmp.lt.s32.totalorder %s9, 3
    %p158 = pnand %p156, %p157
    %p159 = pneg %p158
    // Predicated region
    $region29: #{light_fc_discriminator.7} parent=5 // pred_check
      _
    $region30: #{light_fc_discriminator.7} parent=5 // pred_check_branch
      %161 = sbr.rel (%p158) target = $region32
    $region31: #{light_fc_discriminator.7} parent=5 // pred_region
      %s162 = ssub.s32 %s9, 1
      %p163 = scmp.lt.s32.totalorder %s18, 1
      %s164 = scalar_select %p163, %s18, 1
      %p165 = scmp.lt.s32.totalorder %s19, 0
      %s166 = scalar_select %p165, %s19, 0
      %s167 = smul.addr %s166, 5
      %s168 = smul.addr %s164, 5
      %s169 = sadd.s32 %s167, %s168
      %s170 = smul.addr %s169, 8
      %s171 = scalar_lea.vmem %s0, %s170
      %p172 = pneg %p49
      %p173 = pneg %p46
      %p174 = pneg %p70
      %p175 = pneg %p67
      %p176 = pneg %p91
      %p177 = pneg %p88
      %p178 = pneg %p119
      %p179 = pneg %p116
      %s180 = smul.u32 2, %s19
      %p181 = scmp.lt.s32.totalorder %s18, 1
      %s182 = scalar_select %p181, %s18, 1
      %p183 = scmp.lt.s32.totalorder %s180, 1
      %s184 = scalar_select %p183, %s180, 1
      %s185 = smul.addr %s182, 2
      %s186 = sadd.s32 %s184, %s185
      %s187 = smul.addr %s186, 8
      %s188 = scalar_lea.vmem %s3, %s187
      %p189 = scmp.lt.s32.totalorder %s18, 1
      %s190 = scalar_select %p189, %s18, 1
      %p191 = scmp.lt.s32.totalorder %s19, 0
      %s192 = scalar_select %p191, %s19, 0
      %s193 = smul.addr %s192, 5
      %s194 = smul.addr %s190, 5
      %s195 = sadd.s32 %s193, %s194
      %s196 = smul.addr %s195, 8
      %s197 = scalar_lea.vmem %s0, %s196
      %s198 = smul.u32 2, %s19
      %p199 = scmp.lt.s32.totalorder %s18, 1
      %s200 = scalar_select %p199, %s18, 1
      %p201 = scmp.lt.s32.totalorder %s198, 1
      %s202 = scalar_select %p201, %s198, 1
      %s203 = smul.addr %s200, 2
      %s204 = sadd.s32 %s202, %s203
      %s205 = smul.addr %s204, 8
      %s206 = scalar_lea.vmem %s3, %s205
      %s207 = smul.u32 2, %s19
      %v208 = vld [vmem:[%s197] sm:$0xf]
      %v209 = vld [vmem:[%s197 + $0x8] sm:$0xf]
      %v210 = vld [vmem:[%s197 + $0x10] sm:$0xf]
      %v211 = vld [vmem:[%s197 + $0x18] sm:$0xf]
      %v212 = vld [vmem:[%s1] sm:$0xff]
      %v213 = vld [vmem:[%s1 + $0x8] sm:$0xff]
      %v214 = vld [vmem:[%s1 + $0x10] sm:$0xff]
      %v215 = vld [vmem:[%s1 + $0x18] sm:$0xff]
      %v216 = vld [vmem:[%s1 + $0x20] sm:$0xff]
      %v217 = vld [vmem:[%s1 + $0x28] sm:$0xff]
      %v218 = vld [vmem:[%s1 + $0x30] sm:$0xff]
      %v219 = vld [vmem:[%s1 + $0x38] sm:$0xff]
      %v220 = vld [vmem:[%s197 + $0x1] sm:$0xf]
      %v221 = vld [vmem:[%s197 + $0x9] sm:$0xf]
      %v222 = vld [vmem:[%s197 + $0x11] sm:$0xf]
      %v223 = vld [vmem:[%s197 + $0x19] sm:$0xf]
      %s224 = scalar_lea.vmem %s1, 64
      %v225 = vld [vmem:[%s224] sm:$0xff]
      %v226 = vld [vmem:[%s224 + $0x8] sm:$0xff]
      %v227 = vld [vmem:[%s224 + $0x10] sm:$0xff]
      %v228 = vld [vmem:[%s224 + $0x18] sm:$0xff]
      %v229 = vld [vmem:[%s224 + $0x20] sm:$0xff]
      %v230 = vld [vmem:[%s224 + $0x28] sm:$0xff]
      %v231 = vld [vmem:[%s224 + $0x30] sm:$0xff]
      %v232 = vld [vmem:[%s224 + $0x38] sm:$0xff]
      %v237 = vcombine.low %v220, %v221
      %v238 = vcombine.low %v222, %v223
      %vm239 = vcmask 523264
      %v240 = vsel %vm239, %v237, 0
      %v242 = vsel %vm239, %v238, 0
      %244 = vmatprep.subr.mxu0 0.0
      %245 = vmatpush1.msra.mxu0 0.0
      %246 = vmatprep.subr.mxu0 0.0
      %247 = vmatpush1.msra.mxu0 0.0
      %248 = vmatprep.subr.mxu0 0.0
      %249 = vmatpush1.msra.mxu0 0.0
      %250 = vmatprep.subr.mxu0 0.0
      %251 = vmatpush1.msra.mxu0 0.0
      %252 = vmatprep.subr.mxu0 0.0
      %253 = vmatpush1.msra.mxu0 0.0
      %254 = vmatprep.subr.mxu0 0.0
      %255 = vmatpush1.msra.mxu0 0.0
      %256 = vmatprep.subr.mxu0 0.0
      %257 = vmatpush1.msra.mxu0 0.0
      %258 = vmatprep.subr.mxu0 0.0
      %259 = vmatpush1.msra.mxu0 0.0
      %260 = vmatprep.subr.mxu0 0.0
      %261 = vmatpush1.msra.mxu0 %v232
      %262 = vmatprep.subr.mxu0 0.0
      %263 = vmatpush1.msra.mxu0 %v231
      %264 = vmatprep.subr.mxu0 0.0
      %265 = vmatpush1.msra.mxu0 %v230
      %266 = vmatprep.subr.mxu0 0.0
      %267 = vmatpush1.msra.mxu0 %v229
      %268 = vmatprep.subr.mxu0 0.0
      %269 = vmatpush1.msra.mxu0 %v228
      %270 = vmatprep.subr.mxu0 0.0
      %271 = vmatpush1.msra.mxu0 %v227
      %272 = vmatprep.subr.mxu0 0.0
      %273 = vmatpush1.msra.mxu0 %v226
      %274 = vmatprep.subr.mxu0 0.0
      %275 = vmatpush1.msra.mxu0 %v225
      %276 = vmatprep.subr.mxu0 0.0
      %277 = vmatpush2.msra.mxu0 0.0
      %278 = vmatprep.subr.mxu0 0.0
      %279 = vmatpush2.msra.mxu0 0.0
      %280 = vmatprep.subr.mxu0 0.0
      %281 = vmatpush2.msra.mxu0 0.0
      %282 = vmatprep.subr.mxu0 0.0
      %283 = vmatpush2.msra.mxu0 0.0
      %284 = vmatprep.subr.mxu0 0.0
      %285 = vmatpush2.msra.mxu0 0.0
      %286 = vmatprep.subr.mxu0 0.0
      %287 = vmatpush2.msra.mxu0 0.0
      %288 = vmatprep.subr.mxu0 0.0
      %289 = vmatpush2.msra.mxu0 0.0
      %290 = vmatprep.subr.mxu0 0.0
      %291 = vmatpush2.msra.mxu0 0.0
      %292 = vmatprep.subr.mxu0 0.0
      %293 = vmatpush2.msra.mxu0 0.0
      %294 = vmatprep.subr.mxu0 0.0
      %295 = vmatpush2.msra.mxu0 0.0
      %296 = vmatprep.subr.mxu0 0.0
      %297 = vmatpush2.msra.mxu0 0.0
      %298 = vmatprep.subr.mxu0 0.0
      %299 = vmatpush2.msra.mxu0 0.0
      %300 = vmatprep.subr.mxu0 0.0
      %301 = vmatpush2.msra.mxu0 0.0
      %302 = vmatprep.subr.mxu0 0.0
      %303 = vmatpush2.msra.mxu0 0.0
      %304 = vmatprep.subr.mxu0 0.0
      %305 = vmatpush2.msra.mxu0 0.0
      %306 = vmatprep.subr.mxu0 0.0
      %307 = vmatpush2.msra.mxu0 0.0
      %308 = vmatprep.mubr.f32.mxu0 0.0
      %309 = vmatmul.mubr.f32.gmra.mxu0 %v240
      %v310 = vpop.f32.mrf.mxu0
      %v311 = vadd.f32 0.0, %v310
      %v312 = vpop.f32.mrf.mxu0
      %313 = vmatprep.mubr.f32.mxu0 0.0
      %314 = vmatmul.mubr.f32.gmra.mxu0 %v242
      %v315 = vpop.f32.mrf.mxu0
      %v316 = vadd.f32 0.0, %v315
      %v317 = vpop.f32.mrf.mxu0
      %318 = vdwg.mxu0
      %v323 = vcombine.low %v208, %v209
      %v324 = vcombine.low %v210, %v211
      %v325 = vsel %vm239, %v323, 0
      %v327 = vsel %vm239, %v324, 0
      %329 = vmatprep.subr.mxu0 0.0
      %330 = vmatpush1.msra.mxu0 0.0
      %331 = vmatprep.subr.mxu0 0.0
      %332 = vmatpush1.msra.mxu0 0.0
      %333 = vmatprep.subr.mxu0 0.0
      %334 = vmatpush1.msra.mxu0 0.0
      %335 = vmatprep.subr.mxu0 0.0
      %336 = vmatpush1.msra.mxu0 0.0
      %337 = vmatprep.subr.mxu0 0.0
      %338 = vmatpush1.msra.mxu0 0.0
      %339 = vmatprep.subr.mxu0 0.0
      %340 = vmatpush1.msra.mxu0 0.0
      %341 = vmatprep.subr.mxu0 0.0
      %342 = vmatpush1.msra.mxu0 0.0
      %343 = vmatprep.subr.mxu0 0.0
      %344 = vmatpush1.msra.mxu0 0.0
      %345 = vmatprep.subr.mxu0 0.0
      %346 = vmatpush1.msra.mxu0 %v219
      %347 = vmatprep.subr.mxu0 0.0
      %348 = vmatpush1.msra.mxu0 %v218
      %349 = vmatprep.subr.mxu0 0.0
      %350 = vmatpush1.msra.mxu0 %v217
      %351 = vmatprep.subr.mxu0 0.0
      %352 = vmatpush1.msra.mxu0 %v216
      %353 = vmatprep.subr.mxu0 0.0
      %354 = vmatpush1.msra.mxu0 %v215
      %355 = vmatprep.subr.mxu0 0.0
      %356 = vmatpush1.msra.mxu0 %v214
      %357 = vmatprep.subr.mxu0 0.0
      %358 = vmatpush1.msra.mxu0 %v213
      %359 = vmatprep.subr.mxu0 0.0
      %360 = vmatpush1.msra.mxu0 %v212
      %361 = vmatprep.subr.mxu0 0.0
      %362 = vmatpush2.msra.mxu0 0.0
      %363 = vmatprep.subr.mxu0 0.0
      %364 = vmatpush2.msra.mxu0 0.0
      %365 = vmatprep.subr.mxu0 0.0
      %366 = vmatpush2.msra.mxu0 0.0
      %367 = vmatprep.subr.mxu0 0.0
      %368 = vmatpush2.msra.mxu0 0.0
      %369 = vmatprep.subr.mxu0 0.0
      %370 = vmatpush2.msra.mxu0 0.0
      %371 = vmatprep.subr.mxu0 0.0
      %372 = vmatpush2.msra.mxu0 0.0
      %373 = vmatprep.subr.mxu0 0.0
      %374 = vmatpush2.msra.mxu0 0.0
      %375 = vmatprep.subr.mxu0 0.0
      %376 = vmatpush2.msra.mxu0 0.0
      %377 = vmatprep.subr.mxu0 0.0
      %378 = vmatpush2.msra.mxu0 0.0
      %379 = vmatprep.subr.mxu0 0.0
      %380 = vmatpush2.msra.mxu0 0.0
      %381 = vmatprep.subr.mxu0 0.0
      %382 = vmatpush2.msra.mxu0 0.0
      %383 = vmatprep.subr.mxu0 0.0
      %384 = vmatpush2.msra.mxu0 0.0
      %385 = vmatprep.subr.mxu0 0.0
      %386 = vmatpush2.msra.mxu0 0.0
      %387 = vmatprep.subr.mxu0 0.0
      %388 = vmatpush2.msra.mxu0 0.0
      %389 = vmatprep.subr.mxu0 0.0
      %390 = vmatpush2.msra.mxu0 0.0
      %391 = vmatprep.subr.mxu0 0.0
      %392 = vmatpush2.msra.mxu0 0.0
      %393 = vmatprep.mubr.f32.mxu0 0.0
      %394 = vmatmul.mubr.f32.gmra.mxu0 %v325
      %v395 = vpop.f32.mrf.mxu0
      %v396 = vadd.f32 %v311, %v395
      %v397 = vpop.f32.mrf.mxu0
      %398 = vmatprep.mubr.f32.mxu0 0.0
      %399 = vmatmul.mubr.f32.gmra.mxu0 %v327
      %v400 = vpop.f32.mrf.mxu0
      %v401 = vadd.f32 %v316, %v400
      %v402 = vpop.f32.mrf.mxu0
      %403 = vdwg.mxu0
      %s404 = scalar_lea.vmem %s197, 8
      %v405 = vld [vmem:[%s404] sm:$0xf]
      %v406 = vld [vmem:[%s404 + $0x8] sm:$0xf]
      %v407 = vld [vmem:[%s404 + $0x10] sm:$0xf]
      %v408 = vld [vmem:[%s404 + $0x18] sm:$0xf]
      %s409 = scalar_lea.vmem %s1, 128
      %v410 = vld [vmem:[%s409] sm:$0xff]
      %v411 = vld [vmem:[%s409 + $0x8] sm:$0xff]
      %v412 = vld [vmem:[%s409 + $0x10] sm:$0xff]
      %v413 = vld [vmem:[%s409 + $0x18] sm:$0xff]
      %v414 = vld [vmem:[%s409 + $0x20] sm:$0xff]
      %v415 = vld [vmem:[%s409 + $0x28] sm:$0xff]
      %v416 = vld [vmem:[%s409 + $0x30] sm:$0xff]
      %v417 = vld [vmem:[%s409 + $0x38] sm:$0xff]
      %v422 = vcombine.low %v405, %v406
      %v423 = vcombine.low %v407, %v408
      %v424 = vsel %vm239, %v422, 0
      %v426 = vsel %vm239, %v423, 0
      %428 = vmatprep.subr.mxu0 0.0
      %429 = vmatpush1.msra.mxu0 0.0
      %430 = vmatprep.subr.mxu0 0.0
      %431 = vmatpush1.msra.mxu0 0.0
      %432 = vmatprep.subr.mxu0 0.0
      %433 = vmatpush1.msra.mxu0 0.0
      %434 = vmatprep.subr.mxu0 0.0
      %435 = vmatpush1.msra.mxu0 0.0
      %436 = vmatprep.subr.mxu0 0.0
      %437 = vmatpush1.msra.mxu0 0.0
      %438 = vmatprep.subr.mxu0 0.0
      %439 = vmatpush1.msra.mxu0 0.0
      %440 = vmatprep.subr.mxu0 0.0
      %441 = vmatpush1.msra.mxu0 0.0
      %442 = vmatprep.subr.mxu0 0.0
      %443 = vmatpush1.msra.mxu0 0.0
      %444 = vmatprep.subr.mxu0 0.0
      %445 = vmatpush1.msra.mxu0 %v417
      %446 = vmatprep.subr.mxu0 0.0
      %447 = vmatpush1.msra.mxu0 %v416
      %448 = vmatprep.subr.mxu0 0.0
      %449 = vmatpush1.msra.mxu0 %v415
      %450 = vmatprep.subr.mxu0 0.0
      %451 = vmatpush1.msra.mxu0 %v414
      %452 = vmatprep.subr.mxu0 0.0
      %453 = vmatpush1.msra.mxu0 %v413
      %454 = vmatprep.subr.mxu0 0.0
      %455 = vmatpush1.msra.mxu0 %v412
      %456 = vmatprep.subr.mxu0 0.0
      %457 = vmatpush1.msra.mxu0 %v411
      %458 = vmatprep.subr.mxu0 0.0
      %459 = vmatpush1.msra.mxu0 %v410
      %460 = vmatprep.subr.mxu0 0.0
      %461 = vmatpush2.msra.mxu0 0.0
      %462 = vmatprep.subr.mxu0 0.0
      %463 = vmatpush2.msra.mxu0 0.0
      %464 = vmatprep.subr.mxu0 0.0
      %465 = vmatpush2.msra.mxu0 0.0
      %466 = vmatprep.subr.mxu0 0.0
      %467 = vmatpush2.msra.mxu0 0.0
      %468 = vmatprep.subr.mxu0 0.0
      %469 = vmatpush2.msra.mxu0 0.0
      %470 = vmatprep.subr.mxu0 0.0
      %471 = vmatpush2.msra.mxu0 0.0
      %472 = vmatprep.subr.mxu0 0.0
      %473 = vmatpush2.msra.mxu0 0.0
      %474 = vmatprep.subr.mxu0 0.0
      %475 = vmatpush2.msra.mxu0 0.0
      %476 = vmatprep.subr.mxu0 0.0
      %477 = vmatpush2.msra.mxu0 0.0
      %478 = vmatprep.subr.mxu0 0.0
      %479 = vmatpush2.msra.mxu0 0.0
      %480 = vmatprep.subr.mxu0 0.0
      %481 = vmatpush2.msra.mxu0 0.0
      %482 = vmatprep.subr.mxu0 0.0
      %483 = vmatpush2.msra.mxu0 0.0
      %484 = vmatprep.subr.mxu0 0.0
      %485 = vmatpush2.msra.mxu0 0.0
      %486 = vmatprep.subr.mxu0 0.0
      %487 = vmatpush2.msra.mxu0 0.0
      %488 = vmatprep.subr.mxu0 0.0
      %489 = vmatpush2.msra.mxu0 0.0
      %490 = vmatprep.subr.mxu0 0.0
      %491 = vmatpush2.msra.mxu0 0.0
      %492 = vmatprep.mubr.f32.mxu0 0.0
      %493 = vmatmul.mubr.f32.gmra.mxu0 %v424
      %v494 = vpop.f32.mrf.mxu0
      %v495 = vadd.f32 0.0, %v494
      %v496 = vpop.f32.mrf.mxu0
      %497 = vmatprep.mubr.f32.mxu0 0.0
      %498 = vmatmul.mubr.f32.gmra.mxu0 %v426
      %v499 = vpop.f32.mrf.mxu0
      %v500 = vadd.f32 0.0, %v499
      %v501 = vpop.f32.mrf.mxu0
      %502 = vdwg.mxu0
      %v503 = vadd.f32 %v396, %v495
      %v504 = vadd.f32 %v401, %v500
      %v505 = vld [vmem:[%s404 + $0x1] sm:$0xf]
      %v506 = vld [vmem:[%s404 + $0x9] sm:$0xf]
      %v507 = vld [vmem:[%s404 + $0x11] sm:$0xf]
      %v508 = vld [vmem:[%s404 + $0x19] sm:$0xf]
      %s509 = scalar_lea.vmem %s1, 192
      %v510 = vld [vmem:[%s509] sm:$0xff]
      %v511 = vld [vmem:[%s509 + $0x8] sm:$0xff]
      %v512 = vld [vmem:[%s509 + $0x10] sm:$0xff]
      %v513 = vld [vmem:[%s509 + $0x18] sm:$0xff]
      %v514 = vld [vmem:[%s509 + $0x20] sm:$0xff]
      %v515 = vld [vmem:[%s509 + $0x28] sm:$0xff]
      %v516 = vld [vmem:[%s509 + $0x30] sm:$0xff]
      %v517 = vld [vmem:[%s509 + $0x38] sm:$0xff]
      %v522 = vcombine.low %v505, %v506
      %v523 = vcombine.low %v507, %v508
      %v524 = vsel %vm239, %v522, 0
      %v526 = vsel %vm239, %v523, 0
      %528 = vmatprep.subr.mxu0 0.0
      %529 = vmatpush1.msra.mxu0 0.0
      %530 = vmatprep.subr.mxu0 0.0
      %531 = vmatpush1.msra.mxu0 0.0
      %532 = vmatprep.subr.mxu0 0.0
      %533 = vmatpush1.msra.mxu0 0.0
      %534 = vmatprep.subr.mxu0 0.0
      %535 = vmatpush1.msra.mxu0 0.0
      %536 = vmatprep.subr.mxu0 0.0
      %537 = vmatpush1.msra.mxu0 0.0
      %538 = vmatprep.subr.mxu0 0.0
      %539 = vmatpush1.msra.mxu0 0.0
      %540 = vmatprep.subr.mxu0 0.0
      %541 = vmatpush1.msra.mxu0 0.0
      %542 = vmatprep.subr.mxu0 0.0
      %543 = vmatpush1.msra.mxu0 0.0
      %544 = vmatprep.subr.mxu0 0.0
      %545 = vmatpush1.msra.mxu0 %v517
      %546 = vmatprep.subr.mxu0 0.0
      %547 = vmatpush1.msra.mxu0 %v516
      %548 = vmatprep.subr.mxu0 0.0
      %549 = vmatpush1.msra.mxu0 %v515
      %550 = vmatprep.subr.mxu0 0.0
      %551 = vmatpush1.msra.mxu0 %v514
      %552 = vmatprep.subr.mxu0 0.0
      %553 = vmatpush1.msra.mxu0 %v513
      %554 = vmatprep.subr.mxu0 0.0
      %555 = vmatpush1.msra.mxu0 %v512
      %556 = vmatprep.subr.mxu0 0.0
      %557 = vmatpush1.msra.mxu0 %v511
      %558 = vmatprep.subr.mxu0 0.0
      %559 = vmatpush1.msra.mxu0 %v510
      %560 = vmatprep.subr.mxu0 0.0
      %561 = vmatpush2.msra.mxu0 0.0
      %562 = vmatprep.subr.mxu0 0.0
      %563 = vmatpush2.msra.mxu0 0.0
      %564 = vmatprep.subr.mxu0 0.0
      %565 = vmatpush2.msra.mxu0 0.0
      %566 = vmatprep.subr.mxu0 0.0
      %567 = vmatpush2.msra.mxu0 0.0
      %568 = vmatprep.subr.mxu0 0.0
      %569 = vmatpush2.msra.mxu0 0.0
      %570 = vmatprep.subr.mxu0 0.0
      %571 = vmatpush2.msra.mxu0 0.0
      %572 = vmatprep.subr.mxu0 0.0
      %573 = vmatpush2.msra.mxu0 0.0
      %574 = vmatprep.subr.mxu0 0.0
      %575 = vmatpush2.msra.mxu0 0.0
      %576 = vmatprep.subr.mxu0 0.0
      %577 = vmatpush2.msra.mxu0 0.0
      %578 = vmatprep.subr.mxu0 0.0
      %579 = vmatpush2.msra.mxu0 0.0
      %580 = vmatprep.subr.mxu0 0.0
      %581 = vmatpush2.msra.mxu0 0.0
      %582 = vmatprep.subr.mxu0 0.0
      %583 = vmatpush2.msra.mxu0 0.0
      %584 = vmatprep.subr.mxu0 0.0
      %585 = vmatpush2.msra.mxu0 0.0
      %586 = vmatprep.subr.mxu0 0.0
      %587 = vmatpush2.msra.mxu0 0.0
      %588 = vmatprep.subr.mxu0 0.0
      %589 = vmatpush2.msra.mxu0 0.0
      %590 = vmatprep.subr.mxu0 0.0
      %591 = vmatpush2.msra.mxu0 0.0
      %592 = vmatprep.mubr.f32.mxu0 0.0
      %593 = vmatmul.mubr.f32.gmra.mxu0 %v524
      %v594 = vpop.f32.mrf.mxu0
      %v595 = vadd.f32 0.0, %v594
      %v596 = vpop.f32.mrf.mxu0
      %597 = vmatprep.mubr.f32.mxu0 0.0
      %598 = vmatmul.mubr.f32.gmra.mxu0 %v526
      %v599 = vpop.f32.mrf.mxu0
      %v600 = vadd.f32 0.0, %v599
      %v601 = vpop.f32.mrf.mxu0
      %602 = vdwg.mxu0
      %v603 = vadd.f32 %v503, %v595
      %v604 = vadd.f32 %v504, %v600
      %v605 = vld [vmem:[%s2] sm:$0x1]
      %v607 = vlaneseq
      %v608 = vshrl.u32 %v607, 7
      %v609 = vsub.s32 0, %v608
      %v610 = vrot.slane %v605, %v609
      %v612 = vadd.f32 %v603, %v610
      %v613 = vadd.f32 %v604, %v610
      %vm614 = vcmp.ge.f32.partialorder %v612, 0.0
      %vm615 = vcmp.ge.f32.partialorder %v613, 0.0
      %v616 = vmul.f32 %v612, 0.2
      %v617 = vmul.f32 %v613, 0.2
      %v618 = vsel %vm614, %v612, %v616
      %v619 = vsel %vm615, %v613, %v617
      %vm620 = vcmask 261120
      %621 = vst.msk [vmem:[%s206] sm:$0xff] %vm620, %v618
      %622 = vst.msk [vmem:[%s206 + $0x8] sm:$0xff] %vm620, %v619
      %s623 = smul.u32 2, %s19
      %p624 = scmp.lt.s32.totalorder %s18, 1
      %s625 = scalar_select %p624, %s18, 1
      %p626 = scmp.lt.s32.totalorder %s623, 1
      %s627 = scalar_select %p626, %s623, 1
      %s628 = smul.addr %s625, 2
      %s629 = sadd.s32 %s627, %s628
      %s630 = smul.addr %s629, 8
      %s631 = scalar_lea.vmem %s3, %s630
      // Predicated region
      $region33: #{light_fc_discriminator.7} parent=31 // pred_check
        %p632 = pneg %p116
      $region34: #{light_fc_discriminator.7} parent=31 // pred_check_branch
        %634 = sbr.rel (%p632) target = $region36
      $region35: #{light_fc_discriminator.7} parent=31 // pred_region
        %s635 = smul.u32 2, %s19
      $region36: #{light_fc_discriminator.7} parent=31 // pred_fallthru
        _
    $region32: #{light_fc_discriminator.7} parent=5 // pred_fallthru
      _
    %p636 = scmp.le.s32.totalorder 2, %s9
    // Predicated region
    $region37: #{light_fc_discriminator.7} parent=5 // pred_check
      %p637 = pneg %p636
    $region38: #{light_fc_discriminator.7} parent=5 // pred_check_branch
      %639 = sbr.rel (%p637) target = $region40
    $region39: #{light_fc_discriminator.7} parent=5 // pred_region
      %s640 = ssub.s32 %s9, 2
      // Predicated region
      $region41: #{light_fc_discriminator.7} parent=39 // pred_check
        %p641 = pneg %p122
      $region42: #{light_fc_discriminator.7} parent=39 // pred_check_branch
        %643 = sbr.rel (%p641) target = $region44
      $region43: #{light_fc_discriminator.7} parent=39 // pred_region
        %s644 = smul.u32 2, %s21
        %p645 = scmp.lt.s32.totalorder %s20, 1
        %s646 = scalar_select %p645, %s20, 1
        %p647 = scmp.lt.s32.totalorder %s644, 1
        %s648 = scalar_select %p647, %s644, 1
        %s649 = smul.addr %s646, 2
        %s650 = sadd.s32 %s648, %s649
        %s651 = smul.addr %s650, 8
        %s652 = scalar_lea.vmem %s3, %s651
      $region44: #{light_fc_discriminator.7} parent=39 // pred_fallthru
        _
    $region40: #{light_fc_discriminator.7} parent=5 // pred_fallthru
      _
  $region6: #{light_fc_discriminator.7} parent=0 // loop_footer
    %s13 = sadd.s32 1, %s9
  $region7: #{light_fc_discriminator.7} parent=0 // loop_footer_branch
    %8 = sbr.rel target = $region3
  $region8: #{light_fc_discriminator.7} parent=0 // loop_exit
    _

// kernel: light_fc_discriminator.8
$region0: #{light_fc_discriminator.8}
  #allocation0 [shape = 'u32[]', space=smem, size = 0x4, offset = 0x4, fixed_abs, tag = 'smem constant byte address 0x4 - core index']
  #allocation1 [shape = 'u32[144,128]{1,0:T(1,128)}', space=vmem, size = 0x12000, scoped, tag = 'internal scratch']
  %s0 = inlined_call_operand.vmem [shape: f32[2,1,3,3,128], index: 0, kind: input, shape index: {}]
  %s1 = inlined_call_operand.vmem [shape: f32[4,128,64], index: 1, kind: input, shape index: {}]
  %s2 = inlined_call_operand.vmem [shape: f32[1,64], index: 2, kind: input, shape index: {}]
  %s3 = inlined_call_operand.vmem [shape: f32[2,4,64], index: 3, kind: output, shape index: {}]
  %s4 = sld [smem:[#allocation0]]
  $region45: #{light_fc_discriminator.8} parent=0
    _
  %s6 = ssub.s32 1, %s4
  %s7 = scalar_select 0, %s6, %s4
  loop: start=0, step=1, limit=4
  $region2: #{light_fc_discriminator.8} parent=0 // loop_pre_header
    _
  $region3: #{light_fc_discriminator.8} parent=0 // loop_header
    %s9 = sphi 0, %s13
    %p10 = scmp.ge.s32.totalorder %s9, 4
    %s16 = sphi 0, %s28
    %s17 = sphi 0, %s24
    %s18 = sphi 0, %s16
    %s19 = sphi 0, %s17
    %s20 = sphi 0, %s18
    %s21 = sphi 0, %s19
    %s33 = sphi 0, %s35
    %s36 = sphi 0, %s33
    %s37 = sphi 0, %s36
    %s53 = sphi 0, %s37
    %s57 = sphi 0, %s57
    %s59 = sphi 0, %s57
    %s60 = sphi 0, %s59
    %s74 = sphi 0, %s60
    %s78 = sphi 0, %s78
    %s80 = sphi 0, %s78
    %s81 = sphi 0, %s80
    %s95 = sphi 0, %s81
    %s103 = sphi 0, %s105
    %s106 = sphi 0, %s103
    %s107 = sphi 0, %s106
    %s123 = sphi 0, %s107
  $region4: #{light_fc_discriminator.8} parent=0 // loop_header_branch
    %12 = sbr.rel (%p10) target = $region8
  $region5: #{light_fc_discriminator.8} parent=0 // loop_body
    %s14 = ssub.s32 %s9, 1
    %s15 = ssub.s32 %s9, 2
    %s22 = sadd.s32 1, %s17
    %p23 = scmp.ge.s32.totalorder %s22, 1
    %s24 = scalar_select %p23, 0, %s22
    %s25 = sadd.s32 1, %s16
    %s26 = scalar_select %p23, %s25, %s16
    %p27 = scmp.ge.s32.totalorder %s26, 2
    %s28 = scalar_select %p27, 0, %s26
    %s29 = ssub.s32 %s16, %s28
    %s30 = ssub.s32 %s17, %s24
    %s31 = sor.u32 %s29, %s30
    %p32 = scmp.eq.s32.totalorder %s31, 0
    %s34 = sadd.s32 %s33, 1
    %s35 = scalar_select %p32, %s33, %s34
    %p38 = pneg %p32
    %p39 = scmp.eq.s32.totalorder %s9, 1
    %p40 = por %p38, %p39
    %p41 = scmp.ne.s32.totalorder %s33, %s36
    %p42 = scmp.eq.s32.totalorder %s9, 0
    %p43 = por %p41, %p42
    %p44 = scmp.ne.s32.totalorder %s33, %s36
    %p45 = scmp.eq.s32.totalorder %s14, 1
    %p46 = por %p44, %p45
    %p47 = scmp.ne.s32.totalorder %s36, %s37
    %p48 = scmp.eq.s32.totalorder %s14, 0
    %p49 = por %p47, %p48
    %p50 = scmp.ne.s32.totalorder %s36, %s37
    %p51 = scmp.eq.s32.totalorder %s15, 1
    %p52 = por %p50, %p51
    %p54 = scmp.ne.s32.totalorder %s37, %s53
    %p55 = scmp.eq.s32.totalorder %s15, 0
    %p56 = por %p54, %p55
    %s58 = sadd.s32 %s57, 1
    %p61 = scmp.eq.s32.totalorder %s9, 1
    %p62 = scmp.ne.s32.totalorder %s57, %s59
    %p63 = scmp.eq.s32.totalorder %s9, 0
    %p64 = por %p62, %p63
    %p65 = scmp.ne.s32.totalorder %s57, %s59
    %p66 = scmp.eq.s32.totalorder %s14, 1
    %p67 = por %p65, %p66
    %p68 = scmp.ne.s32.totalorder %s59, %s60
    %p69 = scmp.eq.s32.totalorder %s14, 0
    %p70 = por %p68, %p69
    %p71 = scmp.ne.s32.totalorder %s59, %s60
    %p72 = scmp.eq.s32.totalorder %s15, 1
    %p73 = por %p71, %p72
    %p75 = scmp.ne.s32.totalorder %s60, %s74
    %p76 = scmp.eq.s32.totalorder %s15, 0
    %p77 = por %p75, %p76
    %s79 = sadd.s32 %s78, 1
    %p82 = scmp.eq.s32.totalorder %s9, 1
    %p83 = scmp.ne.s32.totalorder %s78, %s80
    %p84 = scmp.eq.s32.totalorder %s9, 0
    %p85 = por %p83, %p84
    %p86 = scmp.ne.s32.totalorder %s78, %s80
    %p87 = scmp.eq.s32.totalorder %s14, 1
    %p88 = por %p86, %p87
    %p89 = scmp.ne.s32.totalorder %s80, %s81
    %p90 = scmp.eq.s32.totalorder %s14, 0
    %p91 = por %p89, %p90
    %p92 = scmp.ne.s32.totalorder %s80, %s81
    %p93 = scmp.eq.s32.totalorder %s15, 1
    %p94 = por %p92, %p93
    %p96 = scmp.ne.s32.totalorder %s81, %s95
    %p97 = scmp.eq.s32.totalorder %s15, 0
    %p98 = por %p96, %p97
    %s99 = ssub.s32 %s16, %s28
    %s100 = ssub.s32 %s17, %s24
    %s101 = sor.u32 %s99, %s100
    %p102 = scmp.eq.s32.totalorder %s101, 0
    %s104 = sadd.s32 %s103, 1
    %s105 = scalar_select %p102, %s103, %s104
    %p108 = pneg %p102
    %p109 = scmp.eq.s32.totalorder %s9, 1
    %p110 = por %p108, %p109
    %p111 = scmp.ne.s32.totalorder %s103, %s106
    %p112 = scmp.eq.s32.totalorder %s9, 0
    %p113 = por %p111, %p112
    %p114 = scmp.ne.s32.totalorder %s103, %s106
    %p115 = scmp.eq.s32.totalorder %s14, 1
    %p116 = por %p114, %p115
    %p117 = scmp.ne.s32.totalorder %s106, %s107
    %p118 = scmp.eq.s32.totalorder %s14, 0
    %p119 = por %p117, %p118
    %p120 = scmp.ne.s32.totalorder %s106, %s107
    %p121 = scmp.eq.s32.totalorder %s15, 1
    %p122 = por %p120, %p121
    %p124 = scmp.ne.s32.totalorder %s107, %s123
    %p125 = scmp.eq.s32.totalorder %s15, 0
    %p126 = por %p124, %p125
    %p127 = scmp.le.s32.totalorder 1, %s9
    %p128 = scmp.lt.s32.totalorder %s9, 3
    %p129 = pnand %p127, %p128
    %p130 = pneg %p129
    // Predicated region
    $region9: #{light_fc_discriminator.8} parent=5 // pred_check
      _
    $region10: #{light_fc_discriminator.8} parent=5 // pred_check_branch
      %132 = sbr.rel (%p129) target = $region12
    $region11: #{light_fc_discriminator.8} parent=5 // pred_region
      %s133 = ssub.s32 %s9, 1
      // Predicated region
      $region13: #{light_fc_discriminator.8} parent=11 // pred_check
        %p134 = pneg %p70
      $region14: #{light_fc_discriminator.8} parent=11 // pred_check_branch
        %136 = sbr.rel (%p134) target = $region16
      $region15: #{light_fc_discriminator.8} parent=11 // pred_region
        _
      $region16: #{light_fc_discriminator.8} parent=11 // pred_fallthru
        _
      // Predicated region
      $region17: #{light_fc_discriminator.8} parent=11 // pred_check
        %p137 = pneg %p91
      $region18: #{light_fc_discriminator.8} parent=11 // pred_check_branch
        %139 = sbr.rel (%p137) target = $region20
      $region19: #{light_fc_discriminator.8} parent=11 // pred_region
        _
      $region20: #{light_fc_discriminator.8} parent=11 // pred_fallthru
        _
    $region12: #{light_fc_discriminator.8} parent=5 // pred_fallthru
      _
    %p140 = scmp.lt.s32.totalorder %s9, 2
    // Predicated region
    $region21: #{light_fc_discriminator.8} parent=5 // pred_check
      %p141 = pneg %p140
    $region22: #{light_fc_discriminator.8} parent=5 // pred_check_branch
      %143 = sbr.rel (%p141) target = $region24
    $region23: #{light_fc_discriminator.8} parent=5 // pred_region
      // Predicated region
      $region25: #{light_fc_discriminator.8} parent=23 // pred_check
        %p144 = pneg %p43
      $region26: #{light_fc_discriminator.8} parent=23 // pred_check_branch
        %146 = sbr.rel (%p144) target = $region28
      $region27: #{light_fc_discriminator.8} parent=23 // pred_region
        %p147 = scmp.lt.s32.totalorder %s16, 1
        %s148 = scalar_select %p147, %s16, 1
        %p149 = scmp.lt.s32.totalorder %s17, 0
        %s150 = scalar_select %p149, %s17, 0
        %s151 = smul.addr %s150, 3
        %s152 = smul.addr %s148, 3
        %s153 = sadd.s32 %s151, %s152
        %s154 = smul.addr %s153, 4
        %s155 = scalar_lea.vmem %s0, %s154
      $region28: #{light_fc_discriminator.8} parent=23 // pred_fallthru
        _
    $region24: #{light_fc_discriminator.8} parent=5 // pred_fallthru
      _
    %p156 = scmp.le.s32.totalorder 1, %s9
    %p157 = scmp.lt.s32.totalorder %s9, 3
    %p158 = pnand %p156, %p157
    %p159 = pneg %p158
    // Predicated region
    $region29: #{light_fc_discriminator.8} parent=5 // pred_check
      _
    $region30: #{light_fc_discriminator.8} parent=5 // pred_check_branch
      %161 = sbr.rel (%p158) target = $region32
    $region31: #{light_fc_discriminator.8} parent=5 // pred_region
      %s162 = ssub.s32 %s9, 1
      %p163 = scmp.lt.s32.totalorder %s18, 1
      %s164 = scalar_select %p163, %s18, 1
      %p165 = scmp.lt.s32.totalorder %s19, 0
      %s166 = scalar_select %p165, %s19, 0
      %s167 = smul.addr %s166, 3
      %s168 = smul.addr %s164, 3
      %s169 = sadd.s32 %s167, %s168
      %s170 = smul.addr %s169, 4
      %s171 = scalar_lea.vmem %s0, %s170
      %p172 = pneg %p49
      %p173 = pneg %p46
      %p174 = pneg %p70
      %p175 = pneg %p67
      %p176 = pneg %p91
      %p177 = pneg %p88
      %p178 = pneg %p119
      %p179 = pneg %p116
      %p180 = scmp.lt.s32.totalorder %s18, 1
      %s181 = scalar_select %p180, %s18, 1
      %p182 = scmp.lt.s32.totalorder %s19, 0
      %s183 = scalar_select %p182, %s19, 0
      %s184 = sadd.s32 %s183, %s181
      %s185 = smul.addr %s184, 4
      %s186 = scalar_lea.vmem %s3, %s185
      %p187 = scmp.lt.s32.totalorder %s18, 1
      %s188 = scalar_select %p187, %s18, 1
      %p189 = scmp.lt.s32.totalorder %s19, 0
      %s190 = scalar_select %p189, %s19, 0
      %s191 = smul.addr %s190, 3
      %s192 = smul.addr %s188, 3
      %s193 = sadd.s32 %s191, %s192
      %s194 = smul.addr %s193, 4
      %s195 = scalar_lea.vmem %s0, %s194
      %p196 = scmp.lt.s32.totalorder %s18, 1
      %s197 = scalar_select %p196, %s18, 1
      %p198 = scmp.lt.s32.totalorder %s19, 0
      %s199 = scalar_select %p198, %s19, 0
      %s200 = sadd.s32 %s199, %s197
      %s201 = smul.addr %s200, 4
      %s202 = scalar_lea.vmem %s3, %s201
      %v203 = vld [vmem:[%s195] sm:$0x3]
      %v204 = vld [vmem:[%s195 + $0x4] sm:$0x3]
      %v205 = vld [vmem:[%s1] sm:$0xff]
      %v206 = vld [vmem:[%s1 + $0x8] sm:$0xff]
      %v207 = vld [vmem:[%s1 + $0x10] sm:$0xff]
      %v208 = vld [vmem:[%s1 + $0x18] sm:$0xff]
      %v209 = vld [vmem:[%s1 + $0x20] sm:$0xff]
      %v210 = vld [vmem:[%s1 + $0x28] sm:$0xff]
      %v211 = vld [vmem:[%s1 + $0x30] sm:$0xff]
      %v212 = vld [vmem:[%s1 + $0x38] sm:$0xff]
      %v213 = vld [vmem:[%s1 + $0x40] sm:$0xff]
      %v214 = vld [vmem:[%s1 + $0x48] sm:$0xff]
      %v215 = vld [vmem:[%s1 + $0x50] sm:$0xff]
      %v216 = vld [vmem:[%s1 + $0x58] sm:$0xff]
      %v217 = vld [vmem:[%s1 + $0x60] sm:$0xff]
      %v218 = vld [vmem:[%s1 + $0x68] sm:$0xff]
      %v219 = vld [vmem:[%s1 + $0x70] sm:$0xff]
      %v220 = vld [vmem:[%s1 + $0x78] sm:$0xff]
      %v221 = vld [vmem:[%s195 + $0x1] sm:$0x3]
      %v222 = vld [vmem:[%s195 + $0x5] sm:$0x3]
      %s223 = scalar_lea.vmem %s1, 128
      %v224 = vld [vmem:[%s223] sm:$0xff]
      %v225 = vld [vmem:[%s223 + $0x8] sm:$0xff]
      %v226 = vld [vmem:[%s223 + $0x10] sm:$0xff]
      %v227 = vld [vmem:[%s223 + $0x18] sm:$0xff]
      %v228 = vld [vmem:[%s223 + $0x20] sm:$0xff]
      %v229 = vld [vmem:[%s223 + $0x28] sm:$0xff]
      %v230 = vld [vmem:[%s223 + $0x30] sm:$0xff]
      %v231 = vld [vmem:[%s223 + $0x38] sm:$0xff]
      %v232 = vld [vmem:[%s223 + $0x40] sm:$0xff]
      %v233 = vld [vmem:[%s223 + $0x48] sm:$0xff]
      %v234 = vld [vmem:[%s223 + $0x50] sm:$0xff]
      %v235 = vld [vmem:[%s223 + $0x58] sm:$0xff]
      %v236 = vld [vmem:[%s223 + $0x60] sm:$0xff]
      %v237 = vld [vmem:[%s223 + $0x68] sm:$0xff]
      %v238 = vld [vmem:[%s223 + $0x70] sm:$0xff]
      %v239 = vld [vmem:[%s223 + $0x78] sm:$0xff]
      %v242 = vcombine.low %v221, %v222
      %v244 = vunpack.c.l.s4 1983009808
      %v245 = vunpack.c.0.s8 %v244
      %v246 = vlaneseq
      %v247 = vshrl.u32 %v246, 7
      %v248 = vsub.s32 %v245, %v247
      %v249 = vrot.slane %v242, %v248
      %251 = vmatprep.subr.mxu0 0.0
      %252 = vmatpush1.msra.mxu0 %v239
      %253 = vmatprep.subr.mxu0 0.0
      %254 = vmatpush1.msra.mxu0 %v238
      %255 = vmatprep.subr.mxu0 0.0
      %256 = vmatpush1.msra.mxu0 %v237
      %257 = vmatprep.subr.mxu0 0.0
      %258 = vmatpush1.msra.mxu0 %v236
      %259 = vmatprep.subr.mxu0 0.0
      %260 = vmatpush1.msra.mxu0 %v235
      %261 = vmatprep.subr.mxu0 0.0
      %262 = vmatpush1.msra.mxu0 %v234
      %263 = vmatprep.subr.mxu0 0.0
      %264 = vmatpush1.msra.mxu0 %v233
      %265 = vmatprep.subr.mxu0 0.0
      %266 = vmatpush1.msra.mxu0 %v232
      %267 = vmatprep.subr.mxu0 0.0
      %268 = vmatpush1.msra.mxu0 %v231
      %269 = vmatprep.subr.mxu0 0.0
      %270 = vmatpush1.msra.mxu0 %v230
      %271 = vmatprep.subr.mxu0 0.0
      %272 = vmatpush1.msra.mxu0 %v229
      %273 = vmatprep.subr.mxu0 0.0
      %274 = vmatpush1.msra.mxu0 %v228
      %275 = vmatprep.subr.mxu0 0.0
      %276 = vmatpush1.msra.mxu0 %v227
      %277 = vmatprep.subr.mxu0 0.0
      %278 = vmatpush1.msra.mxu0 %v226
      %279 = vmatprep.subr.mxu0 0.0
      %280 = vmatpush1.msra.mxu0 %v225
      %281 = vmatprep.subr.mxu0 0.0
      %282 = vmatpush1.msra.mxu0 %v224
      %283 = vmatprep.subr.mxu0 0.0
      %284 = vmatpush2.msra.mxu0 0.0
      %285 = vmatprep.subr.mxu0 0.0
      %286 = vmatpush2.msra.mxu0 0.0
      %287 = vmatprep.subr.mxu0 0.0
      %288 = vmatpush2.msra.mxu0 0.0
      %289 = vmatprep.subr.mxu0 0.0
      %290 = vmatpush2.msra.mxu0 0.0
      %291 = vmatprep.subr.mxu0 0.0
      %292 = vmatpush2.msra.mxu0 0.0
      %293 = vmatprep.subr.mxu0 0.0
      %294 = vmatpush2.msra.mxu0 0.0
      %295 = vmatprep.subr.mxu0 0.0
      %296 = vmatpush2.msra.mxu0 0.0
      %297 = vmatprep.subr.mxu0 0.0
      %298 = vmatpush2.msra.mxu0 0.0
      %299 = vmatprep.subr.mxu0 0.0
      %300 = vmatpush2.msra.mxu0 0.0
      %301 = vmatprep.subr.mxu0 0.0
      %302 = vmatpush2.msra.mxu0 0.0
      %303 = vmatprep.subr.mxu0 0.0
      %304 = vmatpush2.msra.mxu0 0.0
      %305 = vmatprep.subr.mxu0 0.0
      %306 = vmatpush2.msra.mxu0 0.0
      %307 = vmatprep.subr.mxu0 0.0
      %308 = vmatpush2.msra.mxu0 0.0
      %309 = vmatprep.subr.mxu0 0.0
      %310 = vmatpush2.msra.mxu0 0.0
      %311 = vmatprep.subr.mxu0 0.0
      %312 = vmatpush2.msra.mxu0 0.0
      %313 = vmatprep.subr.mxu0 0.0
      %314 = vmatpush2.msra.mxu0 0.0
      %315 = vmatprep.mubr.f32.mxu0 0.0
      %316 = vmatmul.mubr.f32.gmra.mxu0 %v249
      %v317 = vpop.f32.mrf.mxu0
      %v318 = vadd.f32 0.0, %v317
      %v319 = vpop.f32.mrf.mxu0
      %320 = vdwg.mxu0
      %v323 = vcombine.low %v203, %v204
      %v325 = vunpack.c.l.s4 1983009808
      %v326 = vunpack.c.0.s8 %v325
      %v327 = vlaneseq
      %v328 = vshrl.u32 %v327, 7
      %v329 = vsub.s32 %v326, %v328
      %v330 = vrot.slane %v323, %v329
      %332 = vmatprep.subr.mxu0 0.0
      %333 = vmatpush1.msra.mxu0 %v220
      %334 = vmatprep.subr.mxu0 0.0
      %335 = vmatpush1.msra.mxu0 %v219
      %336 = vmatprep.subr.mxu0 0.0
      %337 = vmatpush1.msra.mxu0 %v218
      %338 = vmatprep.subr.mxu0 0.0
      %339 = vmatpush1.msra.mxu0 %v217
      %340 = vmatprep.subr.mxu0 0.0
      %341 = vmatpush1.msra.mxu0 %v216
      %342 = vmatprep.subr.mxu0 0.0
      %343 = vmatpush1.msra.mxu0 %v215
      %344 = vmatprep.subr.mxu0 0.0
      %345 = vmatpush1.msra.mxu0 %v214
      %346 = vmatprep.subr.mxu0 0.0
      %347 = vmatpush1.msra.mxu0 %v213
      %348 = vmatprep.subr.mxu0 0.0
      %349 = vmatpush1.msra.mxu0 %v212
      %350 = vmatprep.subr.mxu0 0.0
      %351 = vmatpush1.msra.mxu0 %v211
      %352 = vmatprep.subr.mxu0 0.0
      %353 = vmatpush1.msra.mxu0 %v210
      %354 = vmatprep.subr.mxu0 0.0
      %355 = vmatpush1.msra.mxu0 %v209
      %356 = vmatprep.subr.mxu0 0.0
      %357 = vmatpush1.msra.mxu0 %v208
      %358 = vmatprep.subr.mxu0 0.0
      %359 = vmatpush1.msra.mxu0 %v207
      %360 = vmatprep.subr.mxu0 0.0
      %361 = vmatpush1.msra.mxu0 %v206
      %362 = vmatprep.subr.mxu0 0.0
      %363 = vmatpush1.msra.mxu0 %v205
      %364 = vmatprep.subr.mxu0 0.0
      %365 = vmatpush2.msra.mxu0 0.0
      %366 = vmatprep.subr.mxu0 0.0
      %367 = vmatpush2.msra.mxu0 0.0
      %368 = vmatprep.subr.mxu0 0.0
      %369 = vmatpush2.msra.mxu0 0.0
      %370 = vmatprep.subr.mxu0 0.0
      %371 = vmatpush2.msra.mxu0 0.0
      %372 = vmatprep.subr.mxu0 0.0
      %373 = vmatpush2.msra.mxu0 0.0
      %374 = vmatprep.subr.mxu0 0.0
      %375 = vmatpush2.msra.mxu0 0.0
      %376 = vmatprep.subr.mxu0 0.0
      %377 = vmatpush2.msra.mxu0 0.0
      %378 = vmatprep.subr.mxu0 0.0
      %379 = vmatpush2.msra.mxu0 0.0
      %380 = vmatprep.subr.mxu0 0.0
      %381 = vmatpush2.msra.mxu0 0.0
      %382 = vmatprep.subr.mxu0 0.0
      %383 = vmatpush2.msra.mxu0 0.0
      %384 = vmatprep.subr.mxu0 0.0
      %385 = vmatpush2.msra.mxu0 0.0
      %386 = vmatprep.subr.mxu0 0.0
      %387 = vmatpush2.msra.mxu0 0.0
      %388 = vmatprep.subr.mxu0 0.0
      %389 = vmatpush2.msra.mxu0 0.0
      %390 = vmatprep.subr.mxu0 0.0
      %391 = vmatpush2.msra.mxu0 0.0
      %392 = vmatprep.subr.mxu0 0.0
      %393 = vmatpush2.msra.mxu0 0.0
      %394 = vmatprep.subr.mxu0 0.0
      %395 = vmatpush2.msra.mxu0 0.0
      %396 = vmatprep.mubr.f32.mxu0 0.0
      %397 = vmatmul.mubr.f32.gmra.mxu0 %v330
      %v398 = vpop.f32.mrf.mxu0
      %v399 = vadd.f32 %v318, %v398
      %v400 = vpop.f32.mrf.mxu0
      %401 = vdwg.mxu0
      %s402 = scalar_lea.vmem %s195, 4
      %v403 = vld [vmem:[%s402] sm:$0x3]
      %v404 = vld [vmem:[%s402 + $0x4] sm:$0x3]
      %s405 = scalar_lea.vmem %s1, 256
      %v406 = vld [vmem:[%s405] sm:$0xff]
      %v407 = vld [vmem:[%s405 + $0x8] sm:$0xff]
      %v408 = vld [vmem:[%s405 + $0x10] sm:$0xff]
      %v409 = vld [vmem:[%s405 + $0x18] sm:$0xff]
      %v410 = vld [vmem:[%s405 + $0x20] sm:$0xff]
      %v411 = vld [vmem:[%s405 + $0x28] sm:$0xff]
      %v412 = vld [vmem:[%s405 + $0x30] sm:$0xff]
      %v413 = vld [vmem:[%s405 + $0x38] sm:$0xff]
      %v414 = vld [vmem:[%s405 + $0x40] sm:$0xff]
      %v415 = vld [vmem:[%s405 + $0x48] sm:$0xff]
      %v416 = vld [vmem:[%s405 + $0x50] sm:$0xff]
      %v417 = vld [vmem:[%s405 + $0x58] sm:$0xff]
      %v418 = vld [vmem:[%s405 + $0x60] sm:$0xff]
      %v419 = vld [vmem:[%s405 + $0x68] sm:$0xff]
      %v420 = vld [vmem:[%s405 + $0x70] sm:$0xff]
      %v421 = vld [vmem:[%s405 + $0x78] sm:$0xff]
      %v424 = vcombine.low %v403, %v404
      %v426 = vunpack.c.l.s4 1983009808
      %v427 = vunpack.c.0.s8 %v426
      %v428 = vlaneseq
      %v429 = vshrl.u32 %v428, 7
      %v430 = vsub.s32 %v427, %v429
      %v431 = vrot.slane %v424, %v430
      %433 = vmatprep.subr.mxu0 0.0
      %434 = vmatpush1.msra.mxu0 %v421
      %435 = vmatprep.subr.mxu0 0.0
      %436 = vmatpush1.msra.mxu0 %v420
      %437 = vmatprep.subr.mxu0 0.0
      %438 = vmatpush1.msra.mxu0 %v419
      %439 = vmatprep.subr.mxu0 0.0
      %440 = vmatpush1.msra.mxu0 %v418
      %441 = vmatprep.subr.mxu0 0.0
      %442 = vmatpush1.msra.mxu0 %v417
      %443 = vmatprep.subr.mxu0 0.0
      %444 = vmatpush1.msra.mxu0 %v416
      %445 = vmatprep.subr.mxu0 0.0
      %446 = vmatpush1.msra.mxu0 %v415
      %447 = vmatprep.subr.mxu0 0.0
      %448 = vmatpush1.msra.mxu0 %v414
      %449 = vmatprep.subr.mxu0 0.0
      %450 = vmatpush1.msra.mxu0 %v413
      %451 = vmatprep.subr.mxu0 0.0
      %452 = vmatpush1.msra.mxu0 %v412
      %453 = vmatprep.subr.mxu0 0.0
      %454 = vmatpush1.msra.mxu0 %v411
      %455 = vmatprep.subr.mxu0 0.0
      %456 = vmatpush1.msra.mxu0 %v410
      %457 = vmatprep.subr.mxu0 0.0
      %458 = vmatpush1.msra.mxu0 %v409
      %459 = vmatprep.subr.mxu0 0.0
      %460 = vmatpush1.msra.mxu0 %v408
      %461 = vmatprep.subr.mxu0 0.0
      %462 = vmatpush1.msra.mxu0 %v407
      %463 = vmatprep.subr.mxu0 0.0
      %464 = vmatpush1.msra.mxu0 %v406
      %465 = vmatprep.subr.mxu0 0.0
      %466 = vmatpush2.msra.mxu0 0.0
      %467 = vmatprep.subr.mxu0 0.0
      %468 = vmatpush2.msra.mxu0 0.0
      %469 = vmatprep.subr.mxu0 0.0
      %470 = vmatpush2.msra.mxu0 0.0
      %471 = vmatprep.subr.mxu0 0.0
      %472 = vmatpush2.msra.mxu0 0.0
      %473 = vmatprep.subr.mxu0 0.0
      %474 = vmatpush2.msra.mxu0 0.0
      %475 = vmatprep.subr.mxu0 0.0
      %476 = vmatpush2.msra.mxu0 0.0
      %477 = vmatprep.subr.mxu0 0.0
      %478 = vmatpush2.msra.mxu0 0.0
      %479 = vmatprep.subr.mxu0 0.0
      %480 = vmatpush2.msra.mxu0 0.0
      %481 = vmatprep.subr.mxu0 0.0
      %482 = vmatpush2.msra.mxu0 0.0
      %483 = vmatprep.subr.mxu0 0.0
      %484 = vmatpush2.msra.mxu0 0.0
      %485 = vmatprep.subr.mxu0 0.0
      %486 = vmatpush2.msra.mxu0 0.0
      %487 = vmatprep.subr.mxu0 0.0
      %488 = vmatpush2.msra.mxu0 0.0
      %489 = vmatprep.subr.mxu0 0.0
      %490 = vmatpush2.msra.mxu0 0.0
      %491 = vmatprep.subr.mxu0 0.0
      %492 = vmatpush2.msra.mxu0 0.0
      %493 = vmatprep.subr.mxu0 0.0
      %494 = vmatpush2.msra.mxu0 0.0
      %495 = vmatprep.subr.mxu0 0.0
      %496 = vmatpush2.msra.mxu0 0.0
      %497 = vmatprep.mubr.f32.mxu0 0.0
      %498 = vmatmul.mubr.f32.gmra.mxu0 %v431
      %v499 = vpop.f32.mrf.mxu0
      %v500 = vadd.f32 0.0, %v499
      %v501 = vpop.f32.mrf.mxu0
      %502 = vdwg.mxu0
      %v503 = vadd.f32 %v399, %v500
      %v504 = vld [vmem:[%s402 + $0x1] sm:$0x3]
      %v505 = vld [vmem:[%s402 + $0x5] sm:$0x3]
      %s506 = scalar_lea.vmem %s1, 384
      %v507 = vld [vmem:[%s506] sm:$0xff]
      %v508 = vld [vmem:[%s506 + $0x8] sm:$0xff]
      %v509 = vld [vmem:[%s506 + $0x10] sm:$0xff]
      %v510 = vld [vmem:[%s506 + $0x18] sm:$0xff]
      %v511 = vld [vmem:[%s506 + $0x20] sm:$0xff]
      %v512 = vld [vmem:[%s506 + $0x28] sm:$0xff]
      %v513 = vld [vmem:[%s506 + $0x30] sm:$0xff]
      %v514 = vld [vmem:[%s506 + $0x38] sm:$0xff]
      %v515 = vld [vmem:[%s506 + $0x40] sm:$0xff]
      %v516 = vld [vmem:[%s506 + $0x48] sm:$0xff]
      %v517 = vld [vmem:[%s506 + $0x50] sm:$0xff]
      %v518 = vld [vmem:[%s506 + $0x58] sm:$0xff]
      %v519 = vld [vmem:[%s506 + $0x60] sm:$0xff]
      %v520 = vld [vmem:[%s506 + $0x68] sm:$0xff]
      %v521 = vld [vmem:[%s506 + $0x70] sm:$0xff]
      %v522 = vld [vmem:[%s506 + $0x78] sm:$0xff]
      %v525 = vcombine.low %v504, %v505
      %v527 = vunpack.c.l.s4 1983009808
      %v528 = vunpack.c.0.s8 %v527
      %v529 = vlaneseq
      %v530 = vshrl.u32 %v529, 7
      %v531 = vsub.s32 %v528, %v530
      %v532 = vrot.slane %v525, %v531
      %534 = vmatprep.subr.mxu0 0.0
      %535 = vmatpush1.msra.mxu0 %v522
      %536 = vmatprep.subr.mxu0 0.0
      %537 = vmatpush1.msra.mxu0 %v521
      %538 = vmatprep.subr.mxu0 0.0
      %539 = vmatpush1.msra.mxu0 %v520
      %540 = vmatprep.subr.mxu0 0.0
      %541 = vmatpush1.msra.mxu0 %v519
      %542 = vmatprep.subr.mxu0 0.0
      %543 = vmatpush1.msra.mxu0 %v518
      %544 = vmatprep.subr.mxu0 0.0
      %545 = vmatpush1.msra.mxu0 %v517
      %546 = vmatprep.subr.mxu0 0.0
      %547 = vmatpush1.msra.mxu0 %v516
      %548 = vmatprep.subr.mxu0 0.0
      %549 = vmatpush1.msra.mxu0 %v515
      %550 = vmatprep.subr.mxu0 0.0
      %551 = vmatpush1.msra.mxu0 %v514
      %552 = vmatprep.subr.mxu0 0.0
      %553 = vmatpush1.msra.mxu0 %v513
      %554 = vmatprep.subr.mxu0 0.0
      %555 = vmatpush1.msra.mxu0 %v512
      %556 = vmatprep.subr.mxu0 0.0
      %557 = vmatpush1.msra.mxu0 %v511
      %558 = vmatprep.subr.mxu0 0.0
      %559 = vmatpush1.msra.mxu0 %v510
      %560 = vmatprep.subr.mxu0 0.0
      %561 = vmatpush1.msra.mxu0 %v509
      %562 = vmatprep.subr.mxu0 0.0
      %563 = vmatpush1.msra.mxu0 %v508
      %564 = vmatprep.subr.mxu0 0.0
      %565 = vmatpush1.msra.mxu0 %v507
      %566 = vmatprep.subr.mxu0 0.0
      %567 = vmatpush2.msra.mxu0 0.0
      %568 = vmatprep.subr.mxu0 0.0
      %569 = vmatpush2.msra.mxu0 0.0
      %570 = vmatprep.subr.mxu0 0.0
      %571 = vmatpush2.msra.mxu0 0.0
      %572 = vmatprep.subr.mxu0 0.0
      %573 = vmatpush2.msra.mxu0 0.0
      %574 = vmatprep.subr.mxu0 0.0
      %575 = vmatpush2.msra.mxu0 0.0
      %576 = vmatprep.subr.mxu0 0.0
      %577 = vmatpush2.msra.mxu0 0.0
      %578 = vmatprep.subr.mxu0 0.0
      %579 = vmatpush2.msra.mxu0 0.0
      %580 = vmatprep.subr.mxu0 0.0
      %581 = vmatpush2.msra.mxu0 0.0
      %582 = vmatprep.subr.mxu0 0.0
      %583 = vmatpush2.msra.mxu0 0.0
      %584 = vmatprep.subr.mxu0 0.0
      %585 = vmatpush2.msra.mxu0 0.0
      %586 = vmatprep.subr.mxu0 0.0
      %587 = vmatpush2.msra.mxu0 0.0
      %588 = vmatprep.subr.mxu0 0.0
      %589 = vmatpush2.msra.mxu0 0.0
      %590 = vmatprep.subr.mxu0 0.0
      %591 = vmatpush2.msra.mxu0 0.0
      %592 = vmatprep.subr.mxu0 0.0
      %593 = vmatpush2.msra.mxu0 0.0
      %594 = vmatprep.subr.mxu0 0.0
      %595 = vmatpush2.msra.mxu0 0.0
      %596 = vmatprep.subr.mxu0 0.0
      %597 = vmatpush2.msra.mxu0 0.0
      %598 = vmatprep.mubr.f32.mxu0 0.0
      %599 = vmatmul.mubr.f32.gmra.mxu0 %v532
      %v600 = vpop.f32.mrf.mxu0
      %v601 = vadd.f32 0.0, %v600
      %v602 = vpop.f32.mrf.mxu0
      %603 = vdwg.mxu0
      %v604 = vadd.f32 %v503, %v601
      %v605 = vld [vmem:[%s2] sm:$0x1]
      %v607 = vlaneseq
      %v608 = vshrl.u32 %v607, 7
      %v609 = vsub.s32 0, %v608
      %v610 = vrot.slane %v605, %v609
      %v612 = vadd.f32 %v604, %v610
      %vm613 = vcmp.ge.f32.partialorder %v612, 0.0
      %v614 = vmul.f32 %v612, 0.2
      %v615 = vsel %vm613, %v612, %v614
      %vm616 = vcmask 519168
      %617 = vst.msk [vmem:[%s202] sm:$0xf] %vm616, %v615
      %p618 = scmp.lt.s32.totalorder %s18, 1
      %s619 = scalar_select %p618, %s18, 1
      %p620 = scmp.lt.s32.totalorder %s19, 0
      %s621 = scalar_select %p620, %s19, 0
      %s622 = sadd.s32 %s621, %s619
      %s623 = smul.addr %s622, 4
      %s624 = scalar_lea.vmem %s3, %s623
      // Predicated region
      $region33: #{light_fc_discriminator.8} parent=31 // pred_check
        %p625 = pneg %p116
      $region34: #{light_fc_discriminator.8} parent=31 // pred_check_branch
        %627 = sbr.rel (%p625) target = $region36
      $region35: #{light_fc_discriminator.8} parent=31 // pred_region
        _
      $region36: #{light_fc_discriminator.8} parent=31 // pred_fallthru
        _
    $region32: #{light_fc_discriminator.8} parent=5 // pred_fallthru
      _
    %p628 = scmp.le.s32.totalorder 2, %s9
    // Predicated region
    $region37: #{light_fc_discriminator.8} parent=5 // pred_check
      %p629 = pneg %p628
    $region38: #{light_fc_discriminator.8} parent=5 // pred_check_branch
      %631 = sbr.rel (%p629) target = $region40
    $region39: #{light_fc_discriminator.8} parent=5 // pred_region
      %s632 = ssub.s32 %s9, 2
      // Predicated region
      $region41: #{light_fc_discriminator.8} parent=39 // pred_check
        %p633 = pneg %p122
      $region42: #{light_fc_discriminator.8} parent=39 // pred_check_branch
        %635 = sbr.rel (%p633) target = $region44
      $region43: #{light_fc_discriminator.8} parent=39 // pred_region
        %p636 = scmp.lt.s32.totalorder %s20, 1
        %s637 = scalar_select %p636, %s20, 1
        %p638 = scmp.lt.s32.totalorder %s21, 0
        %s639 = scalar_select %p638, %s21, 0
        %s640 = sadd.s32 %s639, %s637
        %s641 = smul.addr %s640, 4
        %s642 = scalar_lea.vmem %s3, %s641
      $region44: #{light_fc_discriminator.8} parent=39 // pred_fallthru
        _
    $region40: #{light_fc_discriminator.8} parent=5 // pred_fallthru
      _
  $region6: #{light_fc_discriminator.8} parent=0 // loop_footer
    %s13 = sadd.s32 1, %s9
  $region7: #{light_fc_discriminator.8} parent=0 // loop_footer_branch
    %8 = sbr.rel target = $region3
  $region8: #{light_fc_discriminator.8} parent=0 // loop_exit
    _

// kernel: light_fc_discriminator.9
$region0: #{light_fc_discriminator.9}
  #allocation0 [shape = 'u32[]', space=smem, size = 0x4, offset = 0x4, fixed_abs, tag = 'smem constant byte address 0x4 - core index']
  #allocation1 [shape = 'u32[144,128]{1,0:T(1,128)}', space=vmem, size = 0x12000, scoped, tag = 'internal scratch']
  #allocation2 [shape = 'f32[1,1]{1,0:T(1,128)S(1)}', space=vmem, size = 0x200, scoped, tag = 'scoped memory for light_fc_discriminator.9']
  %s0 = inlined_call_operand.vmem [shape: f32[2,2,2,256], index: 0, kind: input, shape index: {}]
  %s1 = inlined_call_operand.vmem [shape: f32[4,1,256], index: 1, kind: input, shape index: {}]
  %s2 = inlined_call_operand.<no memory space> [shape: f32[1,1], index: 2, kind: input, shape index: {}]
  %s3 = inlined_call_operand.vmem [shape: f32[32,1], index: 3, kind: input, shape index: {}]
  %s4 = inlined_call_operand.vmem [shape: f32[1,32], index: 4, kind: input, shape index: {}]
  %s5 = inlined_call_operand.hbm [shape: f32[2,32,32], index: 5, kind: output, shape index: {}]
  %s6 = sld [smem:[#allocation0]]
  $region53: #{light_fc_discriminator.9} parent=0
    _
  %s8 = ssub.s32 1, %s6
  %s9 = scalar_select 0, %s8, %s6
  %v10 = vstv %s2
  %11 = vst [vmem:[#allocation2] sm:$0x1] %v10
  $region1: #{light_fc_discriminator.9} parent=0
    #allocation3 [shape = 'u8[32768]{0}', space=vmem, size = 0x8000, scoped, tag = 'output window, operand 0']
    #allocation4 [shape = 's32[2]{0}', space=sflag, size = 0x8, scoped, tag = 'scoped memory for light_fc_discriminator.9']
    %12 = vsyncpa [#allocation4], 0
    %s13 = scalar_lea.sflag [#allocation4], 1
    %14 = vsyncpa %s13, 0
    loop: start=0, step=1, limit=4
    $region2: #{light_fc_discriminator.9} parent=1 // loop_pre_header
      _
    $region3: #{light_fc_discriminator.9} parent=1 // loop_header
      %s16 = sphi 0, %s20
      %p17 = scmp.ge.s32.totalorder %s16, 4
      %s26 = sphi 0, %s28
      %s29 = sphi 0, %s26
      %s30 = sphi 0, %s29
      %s46 = sphi 0, %s30
      %s50 = sphi 0, %s50
      %s52 = sphi 0, %s50
      %s53 = sphi 0, %s52
      %s67 = sphi 0, %s53
      %s71 = sphi 0, %s71
      %s73 = sphi 0, %s71
      %s74 = sphi 0, %s73
      %s88 = sphi 0, %s74
      %s92 = sphi 0, %s92
      %s94 = sphi 0, %s92
      %s95 = sphi 0, %s94
      %s109 = sphi 0, %s95
      %s113 = sphi 0, %s113
      %s115 = sphi 0, %s113
      %s116 = sphi 0, %s115
      %s130 = sphi 0, %s116
      %s136 = sphi 0, %s138
      %s139 = sphi 0, %s136
      %s140 = sphi 0, %s139
      %s156 = sphi 0, %s140
    $region4: #{light_fc_discriminator.9} parent=1 // loop_header_branch
      %19 = sbr.rel (%p17) target = $region8
    $region5: #{light_fc_discriminator.9} parent=1 // loop_body
      %s21 = ssub.s32 %s16, 1
      %s22 = ssub.s32 %s16, 2
      %s23 = sadd.s32 %s16, 1
      %s24 = ssub.s32 %s16, %s23
      %p25 = scmp.eq.s32.totalorder %s24, 0
      %s27 = sadd.s32 %s26, 1
      %s28 = scalar_select %p25, %s26, %s27
      %p31 = pneg %p25
      %p32 = scmp.eq.s32.totalorder %s16, 1
      %p33 = por %p31, %p32
      %p34 = scmp.ne.s32.totalorder %s26, %s29
      %p35 = scmp.eq.s32.totalorder %s16, 0
      %p36 = por %p34, %p35
      %p37 = scmp.ne.s32.totalorder %s26, %s29
      %p38 = scmp.eq.s32.totalorder %s21, 1
      %p39 = por %p37, %p38
      %p40 = scmp.ne.s32.totalorder %s29, %s30
      %p41 = scmp.eq.s32.totalorder %s21, 0
      %p42 = por %p40, %p41
      %p43 = scmp.ne.s32.totalorder %s29, %s30
      %p44 = scmp.eq.s32.totalorder %s22, 1
      %p45 = por %p43, %p44
      %p47 = scmp.ne.s32.totalorder %s30, %s46
      %p48 = scmp.eq.s32.totalorder %s22, 0
      %p49 = por %p47, %p48
      %s51 = sadd.s32 %s50, 1
      %p54 = scmp.eq.s32.totalorder %s16, 1
      %p55 = scmp.ne.s32.totalorder %s50, %s52
      %p56 = scmp.eq.s32.totalorder %s16, 0
      %p57 = por %p55, %p56
      %p58 = scmp.ne.s32.totalorder %s50, %s52
      %p59 = scmp.eq.s32.totalorder %s21, 1
      %p60 = por %p58, %p59
      %p61 = scmp.ne.s32.totalorder %s52, %s53
      %p62 = scmp.eq.s32.totalorder %s21, 0
      %p63 = por %p61, %p62
      %p64 = scmp.ne.s32.totalorder %s52, %s53
      %p65 = scmp.eq.s32.totalorder %s22, 1
      %p66 = por %p64, %p65
      %p68 = scmp.ne.s32.totalorder %s53, %s67
      %p69 = scmp.eq.s32.totalorder %s22, 0
      %p70 = por %p68, %p69
      %s72 = sadd.s32 %s71, 1
      %p75 = scmp.eq.s32.totalorder %s16, 1
      %p76 = scmp.ne.s32.totalorder %s71, %s73
      %p77 = scmp.eq.s32.totalorder %s16, 0
      %p78 = por %p76, %p77
      %p79 = scmp.ne.s32.totalorder %s71, %s73
      %p80 = scmp.eq.s32.totalorder %s21, 1
      %p81 = por %p79, %p80
      %p82 = scmp.ne.s32.totalorder %s73, %s74
      %p83 = scmp.eq.s32.totalorder %s21, 0
      %p84 = por %p82, %p83
      %p85 = scmp.ne.s32.totalorder %s73, %s74
      %p86 = scmp.eq.s32.totalorder %s22, 1
      %p87 = por %p85, %p86
      %p89 = scmp.ne.s32.totalorder %s74, %s88
      %p90 = scmp.eq.s32.totalorder %s22, 0
      %p91 = por %p89, %p90
      %s93 = sadd.s32 %s92, 1
      %p96 = scmp.eq.s32.totalorder %s16, 1
      %p97 = scmp.ne.s32.totalorder %s92, %s94
      %p98 = scmp.eq.s32.totalorder %s16, 0
      %p99 = por %p97, %p98
      %p100 = scmp.ne.s32.totalorder %s92, %s94
      %p101 = scmp.eq.s32.totalorder %s21, 1
      %p102 = por %p100, %p101
      %p103 = scmp.ne.s32.totalorder %s94, %s95
      %p104 = scmp.eq.s32.totalorder %s21, 0
      %p105 = por %p103, %p104
      %p106 = scmp.ne.s32.totalorder %s94, %s95
      %p107 = scmp.eq.s32.totalorder %s22, 1
      %p108 = por %p106, %p107
      %p110 = scmp.ne.s32.totalorder %s95, %s109
      %p111 = scmp.eq.s32.totalorder %s22, 0
      %p112 = por %p110, %p111
      %s114 = sadd.s32 %s113, 1
      %p117 = scmp.eq.s32.totalorder %s16, 1
      %p118 = scmp.ne.s32.totalorder %s113, %s115
      %p119 = scmp.eq.s32.totalorder %s16, 0
      %p120 = por %p118, %p119
      %p121 = scmp.ne.s32.totalorder %s113, %s115
      %p122 = scmp.eq.s32.totalorder %s21, 1
      %p123 = por %p121, %p122
      %p124 = scmp.ne.s32.totalorder %s115, %s116
      %p125 = scmp.eq.s32.totalorder %s21, 0
      %p126 = por %p124, %p125
      %p127 = scmp.ne.s32.totalorder %s115, %s116
      %p128 = scmp.eq.s32.totalorder %s22, 1
      %p129 = por %p127, %p128
      %p131 = scmp.ne.s32.totalorder %s116, %s130
      %p132 = scmp.eq.s32.totalorder %s22, 0
      %p133 = por %p131, %p132
      %s134 = ssub.s32 %s16, %s23
      %p135 = scmp.eq.s32.totalorder %s134, 0
      %s137 = sadd.s32 %s136, 1
      %s138 = scalar_select %p135, %s136, %s137
      %p141 = pneg %p135
      %p142 = scmp.eq.s32.totalorder %s16, 1
      %p143 = por %p141, %p142
      %p144 = scmp.ne.s32.totalorder %s136, %s139
      %p145 = scmp.eq.s32.totalorder %s16, 0
      %p146 = por %p144, %p145
      %p147 = scmp.ne.s32.totalorder %s136, %s139
      %p148 = scmp.eq.s32.totalorder %s21, 1
      %p149 = por %p147, %p148
      %p150 = scmp.ne.s32.totalorder %s139, %s140
      %p151 = scmp.eq.s32.totalorder %s21, 0
      %p152 = por %p150, %p151
      %p153 = scmp.ne.s32.totalorder %s139, %s140
      %p154 = scmp.eq.s32.totalorder %s22, 1
      %p155 = por %p153, %p154
      %p157 = scmp.ne.s32.totalorder %s140, %s156
      %p158 = scmp.eq.s32.totalorder %s22, 0
      %p159 = por %p157, %p158
      %p160 = scmp.le.s32.totalorder 1, %s16
      %p161 = scmp.lt.s32.totalorder %s16, 3
      %p162 = pnand %p160, %p161
      %p163 = pneg %p162
      // Predicated region
      $region9: #{light_fc_discriminator.9} parent=5 // pred_check
        _
      $region10: #{light_fc_discriminator.9} parent=5 // pred_check_branch
        %165 = sbr.rel (%p162) target = $region12
      $region11: #{light_fc_discriminator.9} parent=5 // pred_region
        %s166 = ssub.s32 %s16, 1
        // Predicated region
        $region13: #{light_fc_discriminator.9} parent=11 // pred_check
          %p167 = pneg %p63
        $region14: #{light_fc_discriminator.9} parent=11 // pred_check_branch
          %169 = sbr.rel (%p167) target = $region16
        $region15: #{light_fc_discriminator.9} parent=11 // pred_region
          _
        $region16: #{light_fc_discriminator.9} parent=11 // pred_fallthru
          _
        // Predicated region
        $region17: #{light_fc_discriminator.9} parent=11 // pred_check
          %p170 = pneg %p84
        $region18: #{light_fc_discriminator.9} parent=11 // pred_check_branch
          %172 = sbr.rel (%p170) target = $region20
        $region19: #{light_fc_discriminator.9} parent=11 // pred_region
          _
        $region20: #{light_fc_discriminator.9} parent=11 // pred_fallthru
          _
        // Predicated region
        $region21: #{light_fc_discriminator.9} parent=11 // pred_check
          %p173 = pneg %p105
        $region22: #{light_fc_discriminator.9} parent=11 // pred_check_branch
          %175 = sbr.rel (%p173) target = $region24
        $region23: #{light_fc_discriminator.9} parent=11 // pred_region
          _
        $region24: #{light_fc_discriminator.9} parent=11 // pred_fallthru
          _
        // Predicated region
        $region25: #{light_fc_discriminator.9} parent=11 // pred_check
          %p176 = pneg %p126
        $region26: #{light_fc_discriminator.9} parent=11 // pred_check_branch
          %178 = sbr.rel (%p176) target = $region28
        $region27: #{light_fc_discriminator.9} parent=11 // pred_region
          _
        $region28: #{light_fc_discriminator.9} parent=11 // pred_fallthru
          _
      $region12: #{light_fc_discriminator.9} parent=5 // pred_fallthru
        _
      %p179 = scmp.lt.s32.totalorder %s16, 2
      // Predicated region
      $region29: #{light_fc_discriminator.9} parent=5 // pred_check
        %p180 = pneg %p179
      $region30: #{light_fc_discriminator.9} parent=5 // pred_check_branch
        %182 = sbr.rel (%p180) target = $region32
      $region31: #{light_fc_discriminator.9} parent=5 // pred_region
        // Predicated region
        $region33: #{light_fc_discriminator.9} parent=31 // pred_check
          %p183 = pneg %p36
        $region34: #{light_fc_discriminator.9} parent=31 // pred_check_branch
          %185 = sbr.rel (%p183) target = $region36
        $region35: #{light_fc_discriminator.9} parent=31 // pred_region
          %p186 = scmp.lt.s32.totalorder %s16, 1
          %s187 = scalar_select %p186, %s16, 1
          %s188 = smul.addr %s187, 4
          %s189 = smul.addr %s188, 2
          %s190 = scalar_lea.vmem %s0, %s189
        $region36: #{light_fc_discriminator.9} parent=31 // pred_fallthru
          _
      $region32: #{light_fc_discriminator.9} parent=5 // pred_fallthru
        _
      %p191 = scmp.le.s32.totalorder 1, %s16
      %p192 = scmp.lt.s32.totalorder %s16, 3
      %p193 = pnand %p191, %p192
      %p194 = pneg %p193
      // Predicated region
      $region37: #{light_fc_discriminator.9} parent=5 // pred_check
        _
      $region38: #{light_fc_discriminator.9} parent=5 // pred_check_branch
        %196 = sbr.rel (%p193) target = $region40
      $region39: #{light_fc_discriminator.9} parent=5 // pred_region
        %s197 = ssub.s32 %s16, 1
        %p198 = scmp.lt.s32.totalorder %s21, 1
        %s199 = scalar_select %p198, %s21, 1
        %s200 = smul.addr %s199, 4
        %s201 = smul.addr %s200, 2
        %s202 = scalar_lea.vmem %s0, %s201
        %p203 = pneg %p42
        %p204 = pneg %p39
        %p205 = pneg %p63
        %p206 = pneg %p60
        %p207 = pneg %p84
        %p208 = pneg %p81
        %p209 = pneg %p105
        %p210 = pneg %p102
        %p211 = pneg %p126
        %p212 = pneg %p123
        %p213 = pneg %p152
        %p214 = pneg %p149
        %s215 = sand.u32 %s139, 1
        %s216 = scalar_lea.sflag [#allocation4], %s215
        %s217 = sand.u32 %s139, 1
        %s218 = smul.addr %s217, 32
        %s219 = scalar_lea.vmem [#allocation3], %s218
        %p220 = scmp.lt.s32.totalorder %s21, 1
        %s221 = scalar_select %p220, %s21, 1
        %s222 = smul.addr %s221, 4
        %s223 = smul.addr %s222, 2
        %s224 = scalar_lea.vmem %s0, %s223
        %v225 = vld [vmem:[%s224] ss:$2 sm:$0x3]
        %v226 = vld [vmem:[%s1] sm:$0x3]
        %v227 = vmul.f32 %v225, %v226
        %v229 = vlaneseq
        %v230 = vshrl.u32 %v229, 7
        %v231 = vsub.s32 0, %v230
        %v232 = vrot.slane %v227, %v231
        %v233 = vlaneseq
        %v234 = vshrl.u32 %v233, 7
        %v235 = vsub.s32 1, %v234
        %v236 = vrot.slane %v227, %v235
        %vm239 = vcmask 1040384
        %v240 = vsel %vm239, %v232, 0.0
        %v241 = vsel %vm239, %v236, 0.0
        %v242 = vadd.f32 %v240, %v241
        %243 = vadd.xlane.f32.xlu0 %v242
        %v244 = vpop.xlane.xlu0 %243
        %v245 = vadd.f32 %v244, 0.0
        %s246 = scalar_lea.vmem %s224, 1
        %v247 = vld [vmem:[%s246] ss:$2 sm:$0x3]
        %s248 = scalar_lea.vmem %s1, 2
        %v249 = vld [vmem:[%s248] sm:$0x3]
        %v250 = vmul.f32 %v247, %v249
        %v252 = vlaneseq
        %v253 = vshrl.u32 %v252, 7
        %v254 = vsub.s32 0, %v253
        %v255 = vrot.slane %v250, %v254
        %v256 = vlaneseq
        %v257 = vshrl.u32 %v256, 7
        %v258 = vsub.s32 1, %v257
        %v259 = vrot.slane %v250, %v258
        %v262 = vsel %vm239, %v255, 0.0
        %v263 = vsel %vm239, %v259, 0.0
        %v264 = vadd.f32 %v262, %v263
        %265 = vadd.xlane.f32.xlu0 %v264
        %v266 = vpop.xlane.xlu0 %265
        %v267 = vadd.f32 %v245, %v266
        %s268 = scalar_lea.vmem %s224, 4
        %v269 = vld [vmem:[%s268] ss:$2 sm:$0x3]
        %s270 = scalar_lea.vmem %s1, 4
        %v271 = vld [vmem:[%s270] sm:$0x3]
        %v272 = vmul.f32 %v269, %v271
        %v274 = vlaneseq
        %v275 = vshrl.u32 %v274, 7
        %v276 = vsub.s32 0, %v275
        %v277 = vrot.slane %v272, %v276
        %v278 = vlaneseq
        %v279 = vshrl.u32 %v278, 7
        %v280 = vsub.s32 1, %v279
        %v281 = vrot.slane %v272, %v280
        %v284 = vsel %vm239, %v277, 0.0
        %v285 = vsel %vm239, %v281, 0.0
        %v286 = vadd.f32 %v284, %v285
        %287 = vadd.xlane.f32.xlu0 %v286
        %v288 = vpop.xlane.xlu0 %287
        %v289 = vadd.f32 %v267, %v288
        %s290 = scalar_lea.vmem %s268, 1
        %v291 = vld [vmem:[%s290] ss:$2 sm:$0x3]
        %s292 = scalar_lea.vmem %s1, 6
        %v293 = vld [vmem:[%s292] sm:$0x3]
        %v294 = vmul.f32 %v291, %v293
        %v296 = vlaneseq
        %v297 = vshrl.u32 %v296, 7
        %v298 = vsub.s32 0, %v297
        %v299 = vrot.slane %v294, %v298
        %v300 = vlaneseq
        %v301 = vshrl.u32 %v300, 7
        %v302 = vsub.s32 1, %v301
        %v303 = vrot.slane %v294, %v302
        %v306 = vsel %vm239, %v299, 0.0
        %v307 = vsel %vm239, %v303, 0.0
        %v308 = vadd.f32 %v306, %v307
        %309 = vadd.xlane.f32.xlu0 %v308
        %v310 = vpop.xlane.xlu0 %309
        %v311 = vadd.f32 %v289, %v310
        %v312 = vld [vmem:[#allocation2] sm:$0x1]
        %v313 = vadd.f32 %v311, %v312
        %v314 = vld [vmem:[%s3] sm:$0xff]
        %v315 = vld [vmem:[%s3 + $0x8] sm:$0xff]
        %v316 = vld [vmem:[%s3 + $0x10] sm:$0xff]
        %v317 = vld [vmem:[%s3 + $0x18] sm:$0xff]
        %vm318 = vcmask 7168
        %v320 = vsel %vm318, %v314, 0
        %v323 = vsel %vm318, %v315, 0
        %v326 = vsel %vm318, %v316, 0
        %v329 = vsel %vm318, %v317, 0
        %v332 = vsel %vm239, %v313, 0
        %334 = vmatprep.subr.mxu0 0.0
        %335 = vmatpush1.msra.mxu0 0.0
        %336 = vmatprep.subr.mxu0 0.0
        %337 = vmatpush1.msra.mxu0 0.0
        %338 = vmatprep.subr.mxu0 0.0
        %339 = vmatpush1.msra.mxu0 0.0
        %340 = vmatprep.subr.mxu0 0.0
        %341 = vmatpush1.msra.mxu0 0.0
        %342 = vmatprep.subr.mxu0 0.0
        %343 = vmatpush1.msra.mxu0 0.0
        %344 = vmatprep.subr.mxu0 0.0
        %345 = vmatpush1.msra.mxu0 0.0
        %346 = vmatprep.subr.mxu0 0.0
        %347 = vmatpush1.msra.mxu0 0.0
        %348 = vmatprep.subr.mxu0 0.0
        %349 = vmatpush1.msra.mxu0 0.0
        %350 = vmatprep.subr.mxu0 0.0
        %351 = vmatpush1.msra.mxu0 0.0
        %352 = vmatprep.subr.mxu0 0.0
        %353 = vmatpush1.msra.mxu0 0.0
        %354 = vmatprep.subr.mxu0 0.0
        %355 = vmatpush1.msra.mxu0 0.0
        %356 = vmatprep.subr.mxu0 0.0
        %357 = vmatpush1.msra.mxu0 0.0
        %358 = vmatprep.subr.mxu0 0.0
        %359 = vmatpush1.msra.mxu0 0.0
        %360 = vmatprep.subr.mxu0 0.0
        %361 = vmatpush1.msra.mxu0 0.0
        %362 = vmatprep.subr.mxu0 0.0
        %363 = vmatpush1.msra.mxu0 0.0
        %364 = vmatprep.subr.mxu0 0.0
        %365 = vmatpush1.msra.mxu0 %v332
        %366 = vmatprep.subr.mxu0 0.0
        %367 = vmatpush2.msra.mxu0 0.0
        %368 = vmatprep.subr.mxu0 0.0
        %369 = vmatpush2.msra.mxu0 0.0
        %370 = vmatprep.subr.mxu0 0.0
        %371 = vmatpush2.msra.mxu0 0.0
        %372 = vmatprep.subr.mxu0 0.0
        %373 = vmatpush2.msra.mxu0 0.0
        %374 = vmatprep.subr.mxu0 0.0
        %375 = vmatpush2.msra.mxu0 0.0
        %376 = vmatprep.subr.mxu0 0.0
        %377 = vmatpush2.msra.mxu0 0.0
        %378 = vmatprep.subr.mxu0 0.0
        %379 = vmatpush2.msra.mxu0 0.0
        %380 = vmatprep.subr.mxu0 0.0
        %381 = vmatpush2.msra.mxu0 0.0
        %382 = vmatprep.subr.mxu0 0.0
        %383 = vmatpush2.msra.mxu0 0.0
        %384 = vmatprep.subr.mxu0 0.0
        %385 = vmatpush2.msra.mxu0 0.0
        %386 = vmatprep.subr.mxu0 0.0
        %387 = vmatpush2.msra.mxu0 0.0
        %388 = vmatprep.subr.mxu0 0.0
        %389 = vmatpush2.msra.mxu0 0.0
        %390 = vmatprep.subr.mxu0 0.0
        %391 = vmatpush2.msra.mxu0 0.0
        %392 = vmatprep.subr.mxu0 0.0
        %393 = vmatpush2.msra.mxu0 0.0
        %394 = vmatprep.subr.mxu0 0.0
        %395 = vmatpush2.msra.mxu0 0.0
        %396 = vmatprep.subr.mxu0 0.0
        %397 = vmatpush2.msra.mxu0 0.0
        %398 = vmatprep.mubr.f32.mxu0 0.0
        %399 = vmatmul.mubr.f32.gmra.mxu0 %v320
        %v400 = vpop.f32.mrf.mxu0
        %v401 = vadd.f32 0.0, %v400
        %v402 = vpop.f32.mrf.mxu0
        %403 = vmatprep.mubr.f32.mxu0 0.0
        %404 = vmatmul.mubr.f32.gmra.mxu0 %v323
        %v405 = vpop.f32.mrf.mxu0
        %v406 = vadd.f32 0.0, %v405
        %v407 = vpop.f32.mrf.mxu0
        %408 = vmatprep.mubr.f32.mxu0 0.0
        %409 = vmatmul.mubr.f32.gmra.mxu0 %v326
        %v410 = vpop.f32.mrf.mxu0
        %v411 = vadd.f32 0.0, %v410
        %v412 = vpop.f32.mrf.mxu0
        %413 = vmatprep.mubr.f32.mxu0 0.0
        %414 = vmatmul.mubr.f32.gmra.mxu0 %v329
        %v415 = vpop.f32.mrf.mxu0
        %v416 = vadd.f32 0.0, %v415
        %v417 = vpop.f32.mrf.mxu0
        %418 = vdwg.mxu0
        %v419 = vld [vmem:[%s4] sm:$0x1]
        %v421 = vsel %vm318, %v401, 0
        %v424 = vsel %vm318, %v406, 0
        %v427 = vsel %vm318, %v411, 0
        %v430 = vsel %vm318, %v416, 0
        %v433 = vsel %vm239, %v419, 0
        %435 = vmatprep.subr.mxu0 0.0
        %436 = vmatpush1.msra.mxu0 0.0
        %437 = vmatprep.subr.mxu0 0.0
        %438 = vmatpush1.msra.mxu0 0.0
        %439 = vmatprep.subr.mxu0 0.0
        %440 = vmatpush1.msra.mxu0 0.0
        %441 = vmatprep.subr.mxu0 0.0
        %442 = vmatpush1.msra.mxu0 0.0
        %443 = vmatprep.subr.mxu0 0.0
        %444 = vmatpush1.msra.mxu0 0.0
        %445 = vmatprep.subr.mxu0 0.0
        %446 = vmatpush1.msra.mxu0 0.0
        %447 = vmatprep.subr.mxu0 0.0
        %448 = vmatpush1.msra.mxu0 0.0
        %449 = vmatprep.subr.mxu0 0.0
        %450 = vmatpush1.msra.mxu0 0.0
        %451 = vmatprep.subr.mxu0 0.0
        %452 = vmatpush1.msra.mxu0 0.0
        %453 = vmatprep.subr.mxu0 0.0
        %454 = vmatpush1.msra.mxu0 0.0
        %455 = vmatprep.subr.mxu0 0.0
        %456 = vmatpush1.msra.mxu0 0.0
        %457 = vmatprep.subr.mxu0 0.0
        %458 = vmatpush1.msra.mxu0 0.0
        %459 = vmatprep.subr.mxu0 0.0
        %460 = vmatpush1.msra.mxu0 0.0
        %461 = vmatprep.subr.mxu0 0.0
        %462 = vmatpush1.msra.mxu0 0.0
        %463 = vmatprep.subr.mxu0 0.0
        %464 = vmatpush1.msra.mxu0 0.0
        %465 = vmatprep.subr.mxu0 0.0
        %466 = vmatpush1.msra.mxu0 %v433
        %467 = vmatprep.subr.mxu0 0.0
        %468 = vmatpush2.msra.mxu0 0.0
        %469 = vmatprep.subr.mxu0 0.0
        %470 = vmatpush2.msra.mxu0 0.0
        %471 = vmatprep.subr.mxu0 0.0
        %472 = vmatpush2.msra.mxu0 0.0
        %473 = vmatprep.subr.mxu0 0.0
        %474 = vmatpush2.msra.mxu0 0.0
        %475 = vmatprep.subr.mxu0 0.0
        %476 = vmatpush2.msra.mxu0 0.0
        %477 = vmatprep.subr.mxu0 0.0
        %478 = vmatpush2.msra.mxu0 0.0
        %479 = vmatprep.subr.mxu0 0.0
        %480 = vmatpush2.msra.mxu0 0.0
        %481 = vmatprep.subr.mxu0 0.0
        %482 = vmatpush2.msra.mxu0 0.0
        %483 = vmatprep.subr.mxu0 0.0
        %484 = vmatpush2.msra.mxu0 0.0
        %485 = vmatprep.subr.mxu0 0.0
        %486 = vmatpush2.msra.mxu0 0.0
        %487 = vmatprep.subr.mxu0 0.0
        %488 = vmatpush2.msra.mxu0 0.0
        %489 = vmatprep.subr.mxu0 0.0
        %490 = vmatpush2.msra.mxu0 0.0
        %491 = vmatprep.subr.mxu0 0.0
        %492 = vmatpush2.msra.mxu0 0.0
        %493 = vmatprep.subr.mxu0 0.0
        %494 = vmatpush2.msra.mxu0 0.0
        %495 = vmatprep.subr.mxu0 0.0
        %496 = vmatpush2.msra.mxu0 0.0
        %497 = vmatprep.subr.mxu0 0.0
        %498 = vmatpush2.msra.mxu0 0.0
        %499 = vmatprep.mubr.f32.mxu0 0.0
        %500 = vmatmul.mubr.f32.gmra.mxu0 %v421
        %v501 = vpop.f32.mrf.mxu0
        %v502 = vadd.f32 0.0, %v501
        %v503 = vpop.f32.mrf.mxu0
        %504 = vmatprep.mubr.f32.mxu0 0.0
        %505 = vmatmul.mubr.f32.gmra.mxu0 %v424
        %v506 = vpop.f32.mrf.mxu0
        %v507 = vadd.f32 0.0, %v506
        %v508 = vpop.f32.mrf.mxu0
        %509 = vmatprep.mubr.f32.mxu0 0.0
        %510 = vmatmul.mubr.f32.gmra.mxu0 %v427
        %v511 = vpop.f32.mrf.mxu0
        %v512 = vadd.f32 0.0, %v511
        %v513 = vpop.f32.mrf.mxu0
        %514 = vmatprep.mubr.f32.mxu0 0.0
        %515 = vmatmul.mubr.f32.gmra.mxu0 %v430
        %v516 = vpop.f32.mrf.mxu0
        %v517 = vadd.f32 0.0, %v516
        %v518 = vpop.f32.mrf.mxu0
        %519 = vdwg.mxu0
        %vm520 = vcmask 261120
        %521 = vst.msk [vmem:[%s219] sm:$0xff] %vm520, %v502
        %522 = vst.msk [vmem:[%s219 + $0x8] sm:$0xff] %vm520, %v507
        %523 = vst.msk [vmem:[%s219 + $0x10] sm:$0xff] %vm520, %v512
        %524 = vst.msk [vmem:[%s219 + $0x18] sm:$0xff] %vm520, %v517
        %s525 = sand.u32 %s139, 1
        %s526 = scalar_lea.sflag [#allocation4], %s525
        %s527 = sand.u32 %s139, 1
        %s528 = smul.addr %s527, 32
        %s529 = scalar_lea.vmem [#allocation3], %s528
        // Predicated region
        $region41: #{light_fc_discriminator.9} parent=39 // pred_check
          %p530 = pneg %p149
        $region42: #{light_fc_discriminator.9} parent=39 // pred_check_branch
          %532 = sbr.rel (%p530) target = $region44
        $region43: #{light_fc_discriminator.9} parent=39 // pred_region
          %s534 = ssub.s32 512, 512
          %535 = vsyncadd %s526, %s534
          %s536 = smul.addr %s21, 4
          %s537 = smul.addr %s536, 128
          %s538 = scalar_lea.hbm %s5, %s537
          %s539 = sshll.u32 %s529, 4
          %s540 = int_to_ptr.vmem [resolvable:$true] %s539
          %545 = dma.vmem_to_hbm [thread:$0]  %s540, 512, %s538, %s526, 128, 128, 8
        $region44: #{light_fc_discriminator.9} parent=39 // pred_fallthru
          _
      $region40: #{light_fc_discriminator.9} parent=5 // pred_fallthru
        _
      %p546 = scmp.le.s32.totalorder 2, %s16
      // Predicated region
      $region45: #{light_fc_discriminator.9} parent=5 // pred_check
        %p547 = pneg %p546
      $region46: #{light_fc_discriminator.9} parent=5 // pred_check_branch
        %549 = sbr.rel (%p547) target = $region48
      $region47: #{light_fc_discriminator.9} parent=5 // pred_region
        %s550 = ssub.s32 %s16, 2
        // Predicated region
        $region49: #{light_fc_discriminator.9} parent=47 // pred_check
          %p551 = pneg %p155
        $region50: #{light_fc_discriminator.9} parent=47 // pred_check_branch
          %553 = sbr.rel (%p551) target = $region52
        $region51: #{light_fc_discriminator.9} parent=47 // pred_region
          %s554 = sand.u32 %s140, 1
          %s555 = scalar_lea.sflag [#allocation4], %s554
          %s556 = sand.u32 %s140, 1
          %s557 = smul.addr %s556, 32
          %s558 = scalar_lea.vmem [#allocation3], %s557
          %559 = dma.done %s555, 512
        $region52: #{light_fc_discriminator.9} parent=47 // pred_fallthru
          _
      $region48: #{light_fc_discriminator.9} parent=5 // pred_fallthru
        _
    $region6: #{light_fc_discriminator.9} parent=1 // loop_footer
      %s20 = sadd.s32 1, %s16
    $region7: #{light_fc_discriminator.9} parent=1 // loop_footer_branch
      %15 = sbr.rel target = $region3
    $region8: #{light_fc_discriminator.9} parent=1 // loop_exit
      _
    %560 = vsyncpa [#allocation4], 1
    %s561 = scalar_lea.sflag [#allocation4], 1
    %562 = vsyncpa %s561, 1

</llo_original>
